<compile_context>
chip_gen: v5e
topology: v5e:2x2
jax: 0.10.0
libtpu: 0.0.40
codegen_flags: <defaults>
</compile_context>

<pallas_src>
import math
import functools

import jax
import jax.numpy as jnp
from jax.experimental import pallas as pl
from jax.experimental.pallas import tpu as pltpu

LANE = 128  # lane width / MXU column granularity


# ----------------------------- Pallas kernels ------------------------------

def conv_gdn_kernel(patch_ref, w_ref, b_ref, gT_ref, beta_ref, out_ref):
    # patch_ref: (TP, K) bf16   w_ref: (K, N) bf16   b_ref: (1, N) f32
    # gT_ref:   (N, N)  bf16   beta_ref: (1, N) f32  out_ref: (TP, N) bf16/f32
    x = jnp.dot(patch_ref[...], w_ref[...], preferred_element_type=jnp.float32)
    x = x + b_ref[...]                                  # conv bias (f32, VPU)
    x2 = x * x                                          # f32 element-wise
    # GDN: y_i = x_i / sqrt(beta_i + sum_j gamma[i, j] * x_j^2)
    norm = jnp.dot(x2.astype(gT_ref.dtype), gT_ref[...],
                   preferred_element_type=jnp.float32) + beta_ref[...]
    out_ref[...] = (x * jax.lax.rsqrt(norm)).astype(out_ref.dtype)


def conv_only_kernel(patch_ref, w_ref, out_ref):
    # Final conv4: no bias, no GDN.
    out_ref[...] = jnp.dot(patch_ref[...], w_ref[...],
                           preferred_element_type=jnp.float32).astype(out_ref.dtype)


# ------------------------------- wrappers ----------------------------------

def _round_up(x, m):
    return ((x + m - 1) // m) * m


def _choose_tile(P, tile_p):
    """Pick the pixel tile: big (multiple of 8/128), but keep >=2 grid steps
    when possible so v7x's two TensorCores both get work."""
    tp = min(tile_p, _round_up(P, 8))
    if pl.cdiv(P, tp) < 2 and P > 8:
        tp = _round_up(pl.cdiv(P, 2), 8)
    return tp


def fused_conv_gdn(patches, w_mat, bias_row, gammaT, beta_row, *,
                   tile_p=512, out_dtype=jnp.bfloat16):
    """patches: (P, K) bf16, w_mat: (K, N) bf16, bias/beta: (1, N) f32,
    gammaT: (N, N) bf16.  Returns (P, N) in out_dtype."""
    P, K = patches.shape
    N = w_mat.shape[1]
    tp = _choose_tile(P, tile_p)
    return pl.pallas_call(
        conv_gdn_kernel,
        out_shape=jax.ShapeDtypeStruct((P, N), out_dtype),
        grid=(pl.cdiv(P, tp),),
        in_specs=[
            pl.BlockSpec((tp, K), lambda i: (i, 0)),
            pl.BlockSpec((K, N), lambda i: (0, 0)),
            pl.BlockSpec((1, N), lambda i: (0, 0)),
            pl.BlockSpec((N, N), lambda i: (0, 0)),
            pl.BlockSpec((1, N), lambda i: (0, 0)),
        ],
        out_specs=pl.BlockSpec((tp, N), lambda i: (i, 0)),
        compiler_params=pltpu.CompilerParams(
            dimension_semantics=("parallel",)),
    )(patches, w_mat, bias_row, gammaT, beta_row)


def fused_conv(patches, w_mat, *, tile_p=512, out_dtype=jnp.float32):
    P, K = patches.shape
    N = w_mat.shape[1]
    tp = _choose_tile(P, tile_p)
    return pl.pallas_call(
        conv_only_kernel,
        out_shape=jax.ShapeDtypeStruct((P, N), out_dtype),
        grid=(pl.cdiv(P, tp),),
        in_specs=[
            pl.BlockSpec((tp, K), lambda i: (i, 0)),
            pl.BlockSpec((K, N), lambda i: (0, 0)),
        ],
        out_specs=pl.BlockSpec((tp, N), lambda i: (i, 0)),
        compiler_params=pltpu.CompilerParams(
            dimension_semantics=("parallel",)),
    )(patches, w_mat)


# ------------------------------ im2col glue --------------------------------

def im2col_nhwc(x, kh, kw, stride, pad):
    """x: (B, H, W, C) -> patches (B*Ho*Wo, kh*kw*C), Ho, Wo.
    K is ordered (kh, kw, C) with channels innermost (lane-contiguous)."""
    B, H, W, C = x.shape
    xp = jnp.pad(x, ((0, 0), (pad, pad), (pad, pad), (0, 0)))
    Ho = (H + 2 * pad - kh) // stride + 1
    Wo = (W + 2 * pad - kw) // stride + 1
    cols = []
    for i in range(kh):
        for j in range(kw):
            cols.append(xp[:, i:i + stride * Ho:stride,
                           j:j + stride * Wo:stride, :])
    p = jnp.stack(cols, axis=3)                      # (B, Ho, Wo, kh*kw, C)
    p = p.reshape(B * Ho * Wo, kh * kw * C)
    return p, Ho, Wo


def conv_layer(x_nhwc, layer, *, kh, kw, stride, pad, use_gdn, out_dtype,
               tile_p=512):
    """x_nhwc: (B, H, W, Cin) bf16 -> (B, Ho, Wo, Npad) in out_dtype."""
    B = x_nhwc.shape[0]
    patches, Ho, Wo = im2col_nhwc(x_nhwc, kh, kw, stride, pad)
    if use_gdn:
        y = fused_conv_gdn(patches, layer["w"], layer["b"], layer["gT"],
                           layer["beta"], tile_p=tile_p, out_dtype=out_dtype)
    else:
        y = fused_conv(patches, layer["w"], tile_p=tile_p, out_dtype=out_dtype)
    return y.reshape(B, Ho, Wo, -1)


# ------------------------------ parameters ---------------------------------

def xavier_normal(key, shape, gain):
    # shape = (out_c, in_c, kh, kw), PyTorch xavier_normal_ semantics.
    fan_in = shape[1] * shape[2] * shape[3]
    fan_out = shape[0] * shape[2] * shape[3]
    std = gain * math.sqrt(2.0 / (fan_in + fan_out))
    return std * jax.random.normal(key, shape, dtype=jnp.float32)


def init_params(key, out_channel_N=64):
    N = out_channel_N
    ks = jax.random.split(key, 4)
    params = {
        "w1": xavier_normal(ks[0], (N, 3, 9, 9), math.sqrt(2 * (3 + N) / 6)),
        "b1": jnp.full((N,), 0.01, jnp.float32),
        "w2": xavier_normal(ks[1], (N, N, 5, 5), math.sqrt(2.0)),
        "b2": jnp.full((N,), 0.01, jnp.float32),
        "w3": xavier_normal(ks[2], (N, N, 3, 3), math.sqrt(2.0)),
        "b3": jnp.full((N,), 0.01, jnp.float32),
        "w4": xavier_normal(ks[3], (N, N, 5, 5), math.sqrt(2.0)),
    }
    # GDN default init: beta = 1, gamma = 0.1 * I (effective values after reparam).
    # TODO(synk): if training, add GDN's lower-bound/reparameterization of beta/gamma.
    for i in (1, 2, 3):
        params[f"beta{i}"] = jnp.ones((N,), jnp.float32)
        params[f"gamma{i}"] = 0.1 * jnp.eye(N, dtype=jnp.float32)
    return params


def prepare_params(params, out_channel_N):
    """Pad channels to a multiple of 128, flatten weights to (K, Npad) with K
    ordered (kh, kw, Cin), cast MXU operands to bf16 and pre-transpose gamma.
    Padded output channels produce exact zeros (zero weights/bias, beta=1)."""
    N = out_channel_N
    Npad = _round_up(N, LANE)

    def pad_axis(a, axis, new):
        pads = [(0, 0)] * a.ndim
        pads[axis] = (0, new - a.shape[axis])
        return jnp.pad(a, pads)

    def conv_mat(w, cin_pad=None):
        # w: (N, Cin, kh, kw) -> (kh*kw*Cin_pad, Npad) bf16, K order (kh,kw,C).
        _, cin, kh, kw = w.shape
        w = pad_axis(w, 0, Npad)
        if cin_pad is not None and cin_pad != cin:
            w = pad_axis(w, 1, cin_pad)
            cin = cin_pad
        return (w.transpose(2, 3, 1, 0)
                 .reshape(kh * kw * cin, Npad)
                 .astype(jnp.bfloat16))

    def bias_row(b):
        return pad_axis(b, 0, Npad).reshape(1, Npad).astype(jnp.float32)

    def beta_row(b):
        return jnp.pad(b, (0, Npad - N), constant_values=1.0) \
                  .reshape(1, Npad).astype(jnp.float32)

    def gamma_T(g):
        g = jnp.pad(g, ((0, Npad - N), (0, Npad - N)))
        return g.T.astype(jnp.bfloat16)

    prep = {
        "l1": {"w": conv_mat(params["w1"]),                # Cin = 3 (image)
               "b": bias_row(params["b1"]),
               "gT": gamma_T(params["gamma1"]),
               "beta": beta_row(params["beta1"])},
        "l2": {"w": conv_mat(params["w2"], cin_pad=Npad),
               "b": bias_row(params["b2"]),
               "gT": gamma_T(params["gamma2"]),
               "beta": beta_row(params["beta2"])},
        "l3": {"w": conv_mat(params["w3"], cin_pad=Npad),
               "b": bias_row(params["b3"]),
               "gT": gamma_T(params["gamma3"]),
               "beta": beta_row(params["beta3"])},
        "l4": {"w": conv_mat(params["w4"], cin_pad=Npad)},
    }
    return prep, Npad


# ------------------------------- encoder ------------------------------------

@functools.partial(jax.jit, static_argnames=("out_channel_N",))
def expand_encoder(x_nchw, prep, *, out_channel_N):
    # One NCHW -> NHWC transpose + one f32 -> bf16 cast at the boundary;
    # everything in between stays NHWC / bf16 with padded channels.
    x = jnp.transpose(x_nchw, (0, 2, 3, 1)).astype(jnp.bfloat16)
    x = conv_layer(x, prep["l1"], kh=9, kw=9, stride=4, pad=4,
                   use_gdn=True, out_dtype=jnp.bfloat16)
    x = conv_layer(x, prep["l2"], kh=5, kw=5, stride=2, pad=2,
                   use_gdn=True, out_dtype=jnp.bfloat16)
    x = conv_layer(x, prep["l3"], kh=3, kw=3, stride=1, pad=1,
                   use_gdn=True, out_dtype=jnp.bfloat16)
    x = conv_layer(x, prep["l4"], kh=5, kw=5, stride=2, pad=2,
                   use_gdn=False, out_dtype=jnp.float32)
    x = x[..., :out_channel_N]                    # drop lane padding
    return jnp.transpose(x, (0, 3, 1, 2))         # back to NCHW, once


# --------------------------------- main -------------------------------------

if __name__ == "__main__":
    key = jax.random.PRNGKey(0)
    k_x, k_p = jax.random.split(key)

    out_channel_N = 64                        # small synthetic size (PyTorch default 192)
    x = jax.random.normal(k_x, (2, 3, 32, 32), dtype=jnp.float32)   # NCHW
    params = init_params(k_p, out_channel_N)
    prep, _ = prepare_params(params, out_channel_N)

    y = expand_encoder(x, prep, out_channel_N=out_channel_N)
    y = jax.block_until_ready(y)

    assert y.shape == (2, out_channel_N, 2, 2), y.shape
    assert bool(jnp.all(jnp.isfinite(y)))
    print("KERNEL_OK")
</pallas_src>

<mosaic_0001>
module attributes {stable_mosaic.version = 11 : i64} {
  func.func @conv_gdn_kernel(%arg0: i32, %arg1: memref<64x243xbf16, #tpu.memory_space<vmem>>, %arg2: memref<243x128xbf16, #tpu.memory_space<vmem>>, %arg3: memref<1x128xf32, #tpu.memory_space<vmem>>, %arg4: memref<128x128xbf16, #tpu.memory_space<vmem>>, %arg5: memref<1x128xf32, #tpu.memory_space<vmem>>, %arg6: memref<64x128xbf16, #tpu.memory_space<vmem>>) attributes {dimension_semantics = [#tpu.dimension_semantics<parallel>], iteration_bounds = array<i64: 2>, scalar_prefetch = 0 : i64, scratch_operands = 0 : i64, tpu.core_type = #tpu.core_type<tc>, window_params = [{transform_indices = @transform_0, window_bounds = array<i64: 64, 243>}, {pipeline_mode = #tpu.pipeline_mode<synchronous>, transform_indices = @transform_1, window_bounds = array<i64: 243, 128>}, {pipeline_mode = #tpu.pipeline_mode<synchronous>, transform_indices = @transform_2, window_bounds = array<i64: 1, 128>}, {pipeline_mode = #tpu.pipeline_mode<synchronous>, transform_indices = @transform_3, window_bounds = array<i64: 128, 128>}, {pipeline_mode = #tpu.pipeline_mode<synchronous>, transform_indices = @transform_4, window_bounds = array<i64: 1, 128>}, {transform_indices = @transform_5, window_bounds = array<i64: 64, 128>}]} {
    %c0 = arith.constant 0 : index
    %c0_0 = arith.constant 0 : index
    %0 = vector.load %arg1[%c0, %c0_0] : memref<64x243xbf16, #tpu.memory_space<vmem>>, vector<64x243xbf16>
    %c0_1 = arith.constant 0 : index
    %c0_2 = arith.constant 0 : index
    %1 = vector.load %arg2[%c0_1, %c0_2] : memref<243x128xbf16, #tpu.memory_space<vmem>>, vector<243x128xbf16>
    %cst = arith.constant dense<0.000000e+00> : vector<64x128xf32>
    %2 = tpu.matmul %0, %1, %cst {dimension_numbers = #tpu.dot_dimension_numbers<[1], [0], [0], [1], [0, 0, 1, 1], [], []>} : vector<64x243xbf16>, vector<243x128xbf16>, vector<64x128xf32> -> vector<64x128xf32>
    %c0_3 = arith.constant 0 : index
    %c0_4 = arith.constant 0 : index
    %3 = vector.load %arg3[%c0_3, %c0_4] : memref<1x128xf32, #tpu.memory_space<vmem>>, vector<1x128xf32>
    %4 = vector.broadcast %3 : vector<1x128xf32> to vector<64x128xf32>
    %5 = arith.addf %2, %4 : vector<64x128xf32>
    %6 = arith.mulf %5, %5 : vector<64x128xf32>
    %7 = arith.truncf %6 : vector<64x128xf32> to vector<64x128xbf16>
    %c0_5 = arith.constant 0 : index
    %c0_6 = arith.constant 0 : index
    %8 = vector.load %arg4[%c0_5, %c0_6] : memref<128x128xbf16, #tpu.memory_space<vmem>>, vector<128x128xbf16>
    %cst_7 = arith.constant dense<0.000000e+00> : vector<64x128xf32>
    %9 = tpu.matmul %7, %8, %cst_7 {dimension_numbers = #tpu.dot_dimension_numbers<[1], [0], [0], [1], [0, 0, 1, 1], [], []>} : vector<64x128xbf16>, vector<128x128xbf16>, vector<64x128xf32> -> vector<64x128xf32>
    %c0_8 = arith.constant 0 : index
    %c0_9 = arith.constant 0 : index
    %10 = vector.load %arg5[%c0_8, %c0_9] : memref<1x128xf32, #tpu.memory_space<vmem>>, vector<1x128xf32>
    %11 = vector.broadcast %10 : vector<1x128xf32> to vector<64x128xf32>
    %12 = arith.addf %9, %11 : vector<64x128xf32>
    %13 = math.rsqrt %12 : vector<64x128xf32>
    %14 = arith.mulf %5, %13 : vector<64x128xf32>
    %15 = arith.truncf %14 : vector<64x128xf32> to vector<64x128xbf16>
    %c0_10 = arith.constant 0 : index
    %c0_11 = arith.constant 0 : index
    %16 = vector.load %arg6[%c0_10, %c0_11] : memref<64x128xbf16, #tpu.memory_space<vmem>>, vector<64x128xbf16>
    tpu.vector_store %arg6[%c0_10, %c0_11], %15 {strides = array<i32>} : memref<64x128xbf16, #tpu.memory_space<vmem>>, vector<64x128xbf16>,
    return
  }
  func.func @transform_0(%arg0: i32) -> (i32, i32) {
    %c0_i32 = arith.constant 0 : i32
    %c0_i32_0 = arith.constant 0 : i32
    return %arg0, %c0_i32 : i32, i32
  }
  func.func @transform_1(%arg0: i32) -> (i32, i32) {
    %c0_i32 = arith.constant 0 : i32
    %c0_i32_0 = arith.constant 0 : i32
    %c0_i32_1 = arith.constant 0 : i32
    return %c0_i32, %c0_i32_0 : i32, i32
  }
  func.func @transform_2(%arg0: i32) -> (i32, i32) {
    %c0_i32 = arith.constant 0 : i32
    %c0_i32_0 = arith.constant 0 : i32
    %c0_i32_1 = arith.constant 0 : i32
    return %c0_i32, %c0_i32_0 : i32, i32
  }
  func.func @transform_3(%arg0: i32) -> (i32, i32) {
    %c0_i32 = arith.constant 0 : i32
    %c0_i32_0 = arith.constant 0 : i32
    %c0_i32_1 = arith.constant 0 : i32
    return %c0_i32, %c0_i32_0 : i32, i32
  }
  func.func @transform_4(%arg0: i32) -> (i32, i32) {
    %c0_i32 = arith.constant 0 : i32
    %c0_i32_0 = arith.constant 0 : i32
    %c0_i32_1 = arith.constant 0 : i32
    return %c0_i32, %c0_i32_0 : i32, i32
  }
  func.func @transform_5(%arg0: i32) -> (i32, i32) {
    %c0_i32 = arith.constant 0 : i32
    %c0_i32_0 = arith.constant 0 : i32
    return %arg0, %c0_i32 : i32, i32
  }
}

module attributes {stable_mosaic.version = 11 : i64} {
  func.func @conv_gdn_kernel(%arg0: i32, %arg1: memref<16x3200xbf16, #tpu.memory_space<vmem>>, %arg2: memref<3200x128xbf16, #tpu.memory_space<vmem>>, %arg3: memref<1x128xf32, #tpu.memory_space<vmem>>, %arg4: memref<128x128xbf16, #tpu.memory_space<vmem>>, %arg5: memref<1x128xf32, #tpu.memory_space<vmem>>, %arg6: memref<16x128xbf16, #tpu.memory_space<vmem>>) attributes {dimension_semantics = [#tpu.dimension_semantics<parallel>], iteration_bounds = array<i64: 2>, scalar_prefetch = 0 : i64, scratch_operands = 0 : i64, tpu.core_type = #tpu.core_type<tc>, window_params = [{transform_indices = @transform_0, window_bounds = array<i64: 16, 3200>}, {pipeline_mode = #tpu.pipeline_mode<synchronous>, transform_indices = @transform_1, window_bounds = array<i64: 3200, 128>}, {pipeline_mode = #tpu.pipeline_mode<synchronous>, transform_indices = @transform_2, window_bounds = array<i64: 1, 128>}, {pipeline_mode = #tpu.pipeline_mode<synchronous>, transform_indices = @transform_3, window_bounds = array<i64: 128, 128>}, {pipeline_mode = #tpu.pipeline_mode<synchronous>, transform_indices = @transform_4, window_bounds = array<i64: 1, 128>}, {transform_indices = @transform_5, window_bounds = array<i64: 16, 128>}]} {
    %c0 = arith.constant 0 : index
    %c0_0 = arith.constant 0 : index
    %0 = vector.load %arg1[%c0, %c0_0] : memref<16x3200xbf16, #tpu.memory_space<vmem>>, vector<16x3200xbf16>
    %c0_1 = arith.constant 0 : index
    %c0_2 = arith.constant 0 : index
    %1 = vector.load %arg2[%c0_1, %c0_2] : memref<3200x128xbf16, #tpu.memory_space<vmem>>, vector<3200x128xbf16>
    %cst = arith.constant dense<0.000000e+00> : vector<16x128xf32>
    %2 = tpu.matmul %0, %1, %cst {dimension_numbers = #tpu.dot_dimension_numbers<[1], [0], [0], [1], [0, 0, 1, 1], [], []>} : vector<16x3200xbf16>, vector<3200x128xbf16>, vector<16x128xf32> -> vector<16x128xf32>
    %c0_3 = arith.constant 0 : index
    %c0_4 = arith.constant 0 : index
    %3 = vector.load %arg3[%c0_3, %c0_4] : memref<1x128xf32, #tpu.memory_space<vmem>>, vector<1x128xf32>
    %4 = vector.broadcast %3 : vector<1x128xf32> to vector<16x128xf32>
    %5 = arith.addf %2, %4 : vector<16x128xf32>
    %6 = arith.mulf %5, %5 : vector<16x128xf32>
    %7 = arith.truncf %6 : vector<16x128xf32> to vector<16x128xbf16>
    %c0_5 = arith.constant 0 : index
    %c0_6 = arith.constant 0 : index
    %8 = vector.load %arg4[%c0_5, %c0_6] : memref<128x128xbf16, #tpu.memory_space<vmem>>, vector<128x128xbf16>
    %cst_7 = arith.constant dense<0.000000e+00> : vector<16x128xf32>
    %9 = tpu.matmul %7, %8, %cst_7 {dimension_numbers = #tpu.dot_dimension_numbers<[1], [0], [0], [1], [0, 0, 1, 1], [], []>} : vector<16x128xbf16>, vector<128x128xbf16>, vector<16x128xf32> -> vector<16x128xf32>
    %c0_8 = arith.constant 0 : index
    %c0_9 = arith.constant 0 : index
    %10 = vector.load %arg5[%c0_8, %c0_9] : memref<1x128xf32, #tpu.memory_space<vmem>>, vector<1x128xf32>
    %11 = vector.broadcast %10 : vector<1x128xf32> to vector<16x128xf32>
    %12 = arith.addf %9, %11 : vector<16x128xf32>
    %13 = math.rsqrt %12 : vector<16x128xf32>
    %14 = arith.mulf %5, %13 : vector<16x128xf32>
    %15 = arith.truncf %14 : vector<16x128xf32> to vector<16x128xbf16>
    %c0_10 = arith.constant 0 : index
    %c0_11 = arith.constant 0 : index
    %16 = vector.load %arg6[%c0_10, %c0_11] : memref<16x128xbf16, #tpu.memory_space<vmem>>, vector<16x128xbf16>
    tpu.vector_store %arg6[%c0_10, %c0_11], %15 {strides = array<i32>} : memref<16x128xbf16, #tpu.memory_space<vmem>>, vector<16x128xbf16>,
    return
  }
  func.func @transform_0(%arg0: i32) -> (i32, i32) {
    %c0_i32 = arith.constant 0 : i32
    %c0_i32_0 = arith.constant 0 : i32
    return %arg0, %c0_i32 : i32, i32
  }
  func.func @transform_1(%arg0: i32) -> (i32, i32) {
    %c0_i32 = arith.constant 0 : i32
    %c0_i32_0 = arith.constant 0 : i32
    %c0_i32_1 = arith.constant 0 : i32
    return %c0_i32, %c0_i32_0 : i32, i32
  }
  func.func @transform_2(%arg0: i32) -> (i32, i32) {
    %c0_i32 = arith.constant 0 : i32
    %c0_i32_0 = arith.constant 0 : i32
    %c0_i32_1 = arith.constant 0 : i32
    return %c0_i32, %c0_i32_0 : i32, i32
  }
  func.func @transform_3(%arg0: i32) -> (i32, i32) {
    %c0_i32 = arith.constant 0 : i32
    %c0_i32_0 = arith.constant 0 : i32
    %c0_i32_1 = arith.constant 0 : i32
    return %c0_i32, %c0_i32_0 : i32, i32
  }
  func.func @transform_4(%arg0: i32) -> (i32, i32) {
    %c0_i32 = arith.constant 0 : i32
    %c0_i32_0 = arith.constant 0 : i32
    %c0_i32_1 = arith.constant 0 : i32
    return %c0_i32, %c0_i32_0 : i32, i32
  }
  func.func @transform_5(%arg0: i32) -> (i32, i32) {
    %c0_i32 = arith.constant 0 : i32
    %c0_i32_0 = arith.constant 0 : i32
    return %arg0, %c0_i32 : i32, i32
  }
}

module attributes {stable_mosaic.version = 11 : i64} {
  func.func @conv_gdn_kernel(%arg0: i32, %arg1: memref<16x1152xbf16, #tpu.memory_space<vmem>>, %arg2: memref<1152x128xbf16, #tpu.memory_space<vmem>>, %arg3: memref<1x128xf32, #tpu.memory_space<vmem>>, %arg4: memref<128x128xbf16, #tpu.memory_space<vmem>>, %arg5: memref<1x128xf32, #tpu.memory_space<vmem>>, %arg6: memref<16x128xbf16, #tpu.memory_space<vmem>>) attributes {dimension_semantics = [#tpu.dimension_semantics<parallel>], iteration_bounds = array<i64: 2>, scalar_prefetch = 0 : i64, scratch_operands = 0 : i64, tpu.core_type = #tpu.core_type<tc>, window_params = [{transform_indices = @transform_0, window_bounds = array<i64: 16, 1152>}, {pipeline_mode = #tpu.pipeline_mode<synchronous>, transform_indices = @transform_1, window_bounds = array<i64: 1152, 128>}, {pipeline_mode = #tpu.pipeline_mode<synchronous>, transform_indices = @transform_2, window_bounds = array<i64: 1, 128>}, {pipeline_mode = #tpu.pipeline_mode<synchronous>, transform_indices = @transform_3, window_bounds = array<i64: 128, 128>}, {pipeline_mode = #tpu.pipeline_mode<synchronous>, transform_indices = @transform_4, window_bounds = array<i64: 1, 128>}, {transform_indices = @transform_5, window_bounds = array<i64: 16, 128>}]} {
    %c0 = arith.constant 0 : index
    %c0_0 = arith.constant 0 : index
    %0 = vector.load %arg1[%c0, %c0_0] : memref<16x1152xbf16, #tpu.memory_space<vmem>>, vector<16x1152xbf16>
    %c0_1 = arith.constant 0 : index
    %c0_2 = arith.constant 0 : index
    %1 = vector.load %arg2[%c0_1, %c0_2] : memref<1152x128xbf16, #tpu.memory_space<vmem>>, vector<1152x128xbf16>
    %cst = arith.constant dense<0.000000e+00> : vector<16x128xf32>
    %2 = tpu.matmul %0, %1, %cst {dimension_numbers = #tpu.dot_dimension_numbers<[1], [0], [0], [1], [0, 0, 1, 1], [], []>} : vector<16x1152xbf16>, vector<1152x128xbf16>, vector<16x128xf32> -> vector<16x128xf32>
    %c0_3 = arith.constant 0 : index
    %c0_4 = arith.constant 0 : index
    %3 = vector.load %arg3[%c0_3, %c0_4] : memref<1x128xf32, #tpu.memory_space<vmem>>, vector<1x128xf32>
    %4 = vector.broadcast %3 : vector<1x128xf32> to vector<16x128xf32>
    %5 = arith.addf %2, %4 : vector<16x128xf32>
    %6 = arith.mulf %5, %5 : vector<16x128xf32>
    %7 = arith.truncf %6 : vector<16x128xf32> to vector<16x128xbf16>
    %c0_5 = arith.constant 0 : index
    %c0_6 = arith.constant 0 : index
    %8 = vector.load %arg4[%c0_5, %c0_6] : memref<128x128xbf16, #tpu.memory_space<vmem>>, vector<128x128xbf16>
    %cst_7 = arith.constant dense<0.000000e+00> : vector<16x128xf32>
    %9 = tpu.matmul %7, %8, %cst_7 {dimension_numbers = #tpu.dot_dimension_numbers<[1], [0], [0], [1], [0, 0, 1, 1], [], []>} : vector<16x128xbf16>, vector<128x128xbf16>, vector<16x128xf32> -> vector<16x128xf32>
    %c0_8 = arith.constant 0 : index
    %c0_9 = arith.constant 0 : index
    %10 = vector.load %arg5[%c0_8, %c0_9] : memref<1x128xf32, #tpu.memory_space<vmem>>, vector<1x128xf32>
    %11 = vector.broadcast %10 : vector<1x128xf32> to vector<16x128xf32>
    %12 = arith.addf %9, %11 : vector<16x128xf32>
    %13 = math.rsqrt %12 : vector<16x128xf32>
    %14 = arith.mulf %5, %13 : vector<16x128xf32>
    %15 = arith.truncf %14 : vector<16x128xf32> to vector<16x128xbf16>
    %c0_10 = arith.constant 0 : index
    %c0_11 = arith.constant 0 : index
    %16 = vector.load %arg6[%c0_10, %c0_11] : memref<16x128xbf16, #tpu.memory_space<vmem>>, vector<16x128xbf16>
    tpu.vector_store %arg6[%c0_10, %c0_11], %15 {strides = array<i32>} : memref<16x128xbf16, #tpu.memory_space<vmem>>, vector<16x128xbf16>,
    return
  }
  func.func @transform_0(%arg0: i32) -> (i32, i32) {
    %c0_i32 = arith.constant 0 : i32
    %c0_i32_0 = arith.constant 0 : i32
    return %arg0, %c0_i32 : i32, i32
  }
  func.func @transform_1(%arg0: i32) -> (i32, i32) {
    %c0_i32 = arith.constant 0 : i32
    %c0_i32_0 = arith.constant 0 : i32
    %c0_i32_1 = arith.constant 0 : i32
    return %c0_i32, %c0_i32_0 : i32, i32
  }
  func.func @transform_2(%arg0: i32) -> (i32, i32) {
    %c0_i32 = arith.constant 0 : i32
    %c0_i32_0 = arith.constant 0 : i32
    %c0_i32_1 = arith.constant 0 : i32
    return %c0_i32, %c0_i32_0 : i32, i32
  }
  func.func @transform_3(%arg0: i32) -> (i32, i32) {
    %c0_i32 = arith.constant 0 : i32
    %c0_i32_0 = arith.constant 0 : i32
    %c0_i32_1 = arith.constant 0 : i32
    return %c0_i32, %c0_i32_0 : i32, i32
  }
  func.func @transform_4(%arg0: i32) -> (i32, i32) {
    %c0_i32 = arith.constant 0 : i32
    %c0_i32_0 = arith.constant 0 : i32
    %c0_i32_1 = arith.constant 0 : i32
    return %c0_i32, %c0_i32_0 : i32, i32
  }
  func.func @transform_5(%arg0: i32) -> (i32, i32) {
    %c0_i32 = arith.constant 0 : i32
    %c0_i32_0 = arith.constant 0 : i32
    return %arg0, %c0_i32 : i32, i32
  }
}

module attributes {stable_mosaic.version = 11 : i64} {
  func.func @conv_only_kernel(%arg0: i32, %arg1: memref<8x3200xbf16, #tpu.memory_space<vmem>>, %arg2: memref<3200x128xbf16, #tpu.memory_space<vmem>>, %arg3: memref<8x128xf32, #tpu.memory_space<vmem>>) attributes {dimension_semantics = [#tpu.dimension_semantics<parallel>], iteration_bounds = array<i64: 1>, scalar_prefetch = 0 : i64, scratch_operands = 0 : i64, tpu.core_type = #tpu.core_type<tc>, window_params = [{transform_indices = @transform_0, window_bounds = array<i64: 8, 3200>}, {pipeline_mode = #tpu.pipeline_mode<synchronous>, transform_indices = @transform_1, window_bounds = array<i64: 3200, 128>}, {transform_indices = @transform_2, window_bounds = array<i64: 8, 128>}]} {
    %c0 = arith.constant 0 : index
    %c0_0 = arith.constant 0 : index
    %0 = vector.load %arg1[%c0, %c0_0] : memref<8x3200xbf16, #tpu.memory_space<vmem>>, vector<8x3200xbf16>
    %c0_1 = arith.constant 0 : index
    %c0_2 = arith.constant 0 : index
    %1 = vector.load %arg2[%c0_1, %c0_2] : memref<3200x128xbf16, #tpu.memory_space<vmem>>, vector<3200x128xbf16>
    %cst = arith.constant dense<0.000000e+00> : vector<8x128xf32>
    %2 = tpu.matmul %0, %1, %cst {dimension_numbers = #tpu.dot_dimension_numbers<[1], [0], [0], [1], [0, 0, 1, 1], [], []>} : vector<8x3200xbf16>, vector<3200x128xbf16>, vector<8x128xf32> -> vector<8x128xf32>
    %c0_3 = arith.constant 0 : index
    %c0_4 = arith.constant 0 : index
    %3 = vector.load %arg3[%c0_3, %c0_4] : memref<8x128xf32, #tpu.memory_space<vmem>>, vector<8x128xf32>
    tpu.vector_store %arg3[%c0_3, %c0_4], %2 {strides = array<i32>} : memref<8x128xf32, #tpu.memory_space<vmem>>, vector<8x128xf32>,
    return
  }
  func.func @transform_0(%arg0: i32) -> (i32, i32) {
    %c0_i32 = arith.constant 0 : i32
    %c0_i32_0 = arith.constant 0 : i32
    return %arg0, %c0_i32 : i32, i32
  }
  func.func @transform_1(%arg0: i32) -> (i32, i32) {
    %c0_i32 = arith.constant 0 : i32
    %c0_i32_0 = arith.constant 0 : i32
    %c0_i32_1 = arith.constant 0 : i32
    return %c0_i32, %c0_i32_0 : i32, i32
  }
  func.func @transform_2(%arg0: i32) -> (i32, i32) {
    %c0_i32 = arith.constant 0 : i32
    %c0_i32_0 = arith.constant 0 : i32
    return %arg0, %c0_i32 : i32, i32
  }
}

</mosaic_0001>

<llo_original>
// kernel: expand_encoder.4
$region0: #{expand_encoder.4}
  #allocation0 [shape = 'u32[]', space=smem, size = 0x4, offset = 0x4, fixed_abs, tag = 'smem constant byte address 0x4 - core index']
  #allocation1 [shape = 'u32[72,128]{1,0:T(1,128)}', space=vmem, size = 0x9000, scoped, tag = 'internal scratch']
  %s0 = inlined_call_operand.vmem [shape: bf16[128,243], index: 0, kind: input, shape index: {}]
  %s1 = inlined_call_operand.vmem [shape: bf16[243,128], index: 1, kind: input, shape index: {}]
  %s2 = inlined_call_operand.vmem [shape: f32[1,128], index: 2, kind: input, shape index: {}]
  %s3 = inlined_call_operand.vmem [shape: bf16[128,128], index: 3, kind: input, shape index: {}]
  %s4 = inlined_call_operand.vmem [shape: f32[1,128], index: 4, kind: input, shape index: {}]
  %s5 = inlined_call_operand.vmem [shape: bf16[128,128], index: 5, kind: output, shape index: {}]
  %s6 = sld [smem:[#allocation0]]
  $region53: #{expand_encoder.4} parent=0
    _
  %s8 = ssub.s32 1, %s6
  %s9 = scalar_select 0, %s8, %s6
  loop: start=0, step=1, limit=4
  $region2: #{expand_encoder.4} parent=0 // loop_pre_header
    _
  $region3: #{expand_encoder.4} parent=0 // loop_header
    %s11 = sphi 0, %s15
    %p12 = scmp.ge.s32.totalorder %s11, 4
    %s21 = sphi 0, %s23
    %s24 = sphi 0, %s21
    %s25 = sphi 0, %s24
    %s41 = sphi 0, %s25
    %s45 = sphi 0, %s45
    %s47 = sphi 0, %s45
    %s48 = sphi 0, %s47
    %s62 = sphi 0, %s48
    %s66 = sphi 0, %s66
    %s68 = sphi 0, %s66
    %s69 = sphi 0, %s68
    %s83 = sphi 0, %s69
    %s87 = sphi 0, %s87
    %s89 = sphi 0, %s87
    %s90 = sphi 0, %s89
    %s104 = sphi 0, %s90
    %s108 = sphi 0, %s108
    %s110 = sphi 0, %s108
    %s111 = sphi 0, %s110
    %s125 = sphi 0, %s111
    %s131 = sphi 0, %s133
    %s134 = sphi 0, %s131
    %s135 = sphi 0, %s134
    %s151 = sphi 0, %s135
  $region4: #{expand_encoder.4} parent=0 // loop_header_branch
    %14 = sbr.rel (%p12) target = $region8
  $region5: #{expand_encoder.4} parent=0 // loop_body
    %s16 = ssub.s32 %s11, 1
    %s17 = ssub.s32 %s11, 2
    %s18 = sadd.s32 %s11, 1
    %s19 = ssub.s32 %s11, %s18
    %p20 = scmp.eq.s32.totalorder %s19, 0
    %s22 = sadd.s32 %s21, 1
    %s23 = scalar_select %p20, %s21, %s22
    %p26 = pneg %p20
    %p27 = scmp.eq.s32.totalorder %s11, 1
    %p28 = por %p26, %p27
    %p29 = scmp.ne.s32.totalorder %s21, %s24
    %p30 = scmp.eq.s32.totalorder %s11, 0
    %p31 = por %p29, %p30
    %p32 = scmp.ne.s32.totalorder %s21, %s24
    %p33 = scmp.eq.s32.totalorder %s16, 1
    %p34 = por %p32, %p33
    %p35 = scmp.ne.s32.totalorder %s24, %s25
    %p36 = scmp.eq.s32.totalorder %s16, 0
    %p37 = por %p35, %p36
    %p38 = scmp.ne.s32.totalorder %s24, %s25
    %p39 = scmp.eq.s32.totalorder %s17, 1
    %p40 = por %p38, %p39
    %p42 = scmp.ne.s32.totalorder %s25, %s41
    %p43 = scmp.eq.s32.totalorder %s17, 0
    %p44 = por %p42, %p43
    %s46 = sadd.s32 %s45, 1
    %p49 = scmp.eq.s32.totalorder %s11, 1
    %p50 = scmp.ne.s32.totalorder %s45, %s47
    %p51 = scmp.eq.s32.totalorder %s11, 0
    %p52 = por %p50, %p51
    %p53 = scmp.ne.s32.totalorder %s45, %s47
    %p54 = scmp.eq.s32.totalorder %s16, 1
    %p55 = por %p53, %p54
    %p56 = scmp.ne.s32.totalorder %s47, %s48
    %p57 = scmp.eq.s32.totalorder %s16, 0
    %p58 = por %p56, %p57
    %p59 = scmp.ne.s32.totalorder %s47, %s48
    %p60 = scmp.eq.s32.totalorder %s17, 1
    %p61 = por %p59, %p60
    %p63 = scmp.ne.s32.totalorder %s48, %s62
    %p64 = scmp.eq.s32.totalorder %s17, 0
    %p65 = por %p63, %p64
    %s67 = sadd.s32 %s66, 1
    %p70 = scmp.eq.s32.totalorder %s11, 1
    %p71 = scmp.ne.s32.totalorder %s66, %s68
    %p72 = scmp.eq.s32.totalorder %s11, 0
    %p73 = por %p71, %p72
    %p74 = scmp.ne.s32.totalorder %s66, %s68
    %p75 = scmp.eq.s32.totalorder %s16, 1
    %p76 = por %p74, %p75
    %p77 = scmp.ne.s32.totalorder %s68, %s69
    %p78 = scmp.eq.s32.totalorder %s16, 0
    %p79 = por %p77, %p78
    %p80 = scmp.ne.s32.totalorder %s68, %s69
    %p81 = scmp.eq.s32.totalorder %s17, 1
    %p82 = por %p80, %p81
    %p84 = scmp.ne.s32.totalorder %s69, %s83
    %p85 = scmp.eq.s32.totalorder %s17, 0
    %p86 = por %p84, %p85
    %s88 = sadd.s32 %s87, 1
    %p91 = scmp.eq.s32.totalorder %s11, 1
    %p92 = scmp.ne.s32.totalorder %s87, %s89
    %p93 = scmp.eq.s32.totalorder %s11, 0
    %p94 = por %p92, %p93
    %p95 = scmp.ne.s32.totalorder %s87, %s89
    %p96 = scmp.eq.s32.totalorder %s16, 1
    %p97 = por %p95, %p96
    %p98 = scmp.ne.s32.totalorder %s89, %s90
    %p99 = scmp.eq.s32.totalorder %s16, 0
    %p100 = por %p98, %p99
    %p101 = scmp.ne.s32.totalorder %s89, %s90
    %p102 = scmp.eq.s32.totalorder %s17, 1
    %p103 = por %p101, %p102
    %p105 = scmp.ne.s32.totalorder %s90, %s104
    %p106 = scmp.eq.s32.totalorder %s17, 0
    %p107 = por %p105, %p106
    %s109 = sadd.s32 %s108, 1
    %p112 = scmp.eq.s32.totalorder %s11, 1
    %p113 = scmp.ne.s32.totalorder %s108, %s110
    %p114 = scmp.eq.s32.totalorder %s11, 0
    %p115 = por %p113, %p114
    %p116 = scmp.ne.s32.totalorder %s108, %s110
    %p117 = scmp.eq.s32.totalorder %s16, 1
    %p118 = por %p116, %p117
    %p119 = scmp.ne.s32.totalorder %s110, %s111
    %p120 = scmp.eq.s32.totalorder %s16, 0
    %p121 = por %p119, %p120
    %p122 = scmp.ne.s32.totalorder %s110, %s111
    %p123 = scmp.eq.s32.totalorder %s17, 1
    %p124 = por %p122, %p123
    %p126 = scmp.ne.s32.totalorder %s111, %s125
    %p127 = scmp.eq.s32.totalorder %s17, 0
    %p128 = por %p126, %p127
    %s129 = ssub.s32 %s11, %s18
    %p130 = scmp.eq.s32.totalorder %s129, 0
    %s132 = sadd.s32 %s131, 1
    %s133 = scalar_select %p130, %s131, %s132
    %p136 = pneg %p130
    %p137 = scmp.eq.s32.totalorder %s11, 1
    %p138 = por %p136, %p137
    %p139 = scmp.ne.s32.totalorder %s131, %s134
    %p140 = scmp.eq.s32.totalorder %s11, 0
    %p141 = por %p139, %p140
    %p142 = scmp.ne.s32.totalorder %s131, %s134
    %p143 = scmp.eq.s32.totalorder %s16, 1
    %p144 = por %p142, %p143
    %p145 = scmp.ne.s32.totalorder %s134, %s135
    %p146 = scmp.eq.s32.totalorder %s16, 0
    %p147 = por %p145, %p146
    %p148 = scmp.ne.s32.totalorder %s134, %s135
    %p149 = scmp.eq.s32.totalorder %s17, 1
    %p150 = por %p148, %p149
    %p152 = scmp.ne.s32.totalorder %s135, %s151
    %p153 = scmp.eq.s32.totalorder %s17, 0
    %p154 = por %p152, %p153
    %p155 = scmp.le.s32.totalorder 1, %s11
    %p156 = scmp.lt.s32.totalorder %s11, 3
    %p157 = pnand %p155, %p156
    %p158 = pneg %p157
    // Predicated region
    $region9: #{expand_encoder.4} parent=5 // pred_check
      _
    $region10: #{expand_encoder.4} parent=5 // pred_check_branch
      %160 = sbr.rel (%p157) target = $region12
    $region11: #{expand_encoder.4} parent=5 // pred_region
      %s161 = ssub.s32 %s11, 1
      // Predicated region
      $region13: #{expand_encoder.4} parent=11 // pred_check
        %p162 = pneg %p58
      $region14: #{expand_encoder.4} parent=11 // pred_check_branch
        %164 = sbr.rel (%p162) target = $region16
      $region15: #{expand_encoder.4} parent=11 // pred_region
        _
      $region16: #{expand_encoder.4} parent=11 // pred_fallthru
        _
      // Predicated region
      $region17: #{expand_encoder.4} parent=11 // pred_check
        %p165 = pneg %p79
      $region18: #{expand_encoder.4} parent=11 // pred_check_branch
        %167 = sbr.rel (%p165) target = $region20
      $region19: #{expand_encoder.4} parent=11 // pred_region
        _
      $region20: #{expand_encoder.4} parent=11 // pred_fallthru
        _
      // Predicated region
      $region21: #{expand_encoder.4} parent=11 // pred_check
        %p168 = pneg %p100
      $region22: #{expand_encoder.4} parent=11 // pred_check_branch
        %170 = sbr.rel (%p168) target = $region24
      $region23: #{expand_encoder.4} parent=11 // pred_region
        _
      $region24: #{expand_encoder.4} parent=11 // pred_fallthru
        _
      // Predicated region
      $region25: #{expand_encoder.4} parent=11 // pred_check
        %p171 = pneg %p121
      $region26: #{expand_encoder.4} parent=11 // pred_check_branch
        %173 = sbr.rel (%p171) target = $region28
      $region27: #{expand_encoder.4} parent=11 // pred_region
        _
      $region28: #{expand_encoder.4} parent=11 // pred_fallthru
        _
    $region12: #{expand_encoder.4} parent=5 // pred_fallthru
      _
    %p174 = scmp.lt.s32.totalorder %s11, 2
    // Predicated region
    $region29: #{expand_encoder.4} parent=5 // pred_check
      %p175 = pneg %p174
    $region30: #{expand_encoder.4} parent=5 // pred_check_branch
      %177 = sbr.rel (%p175) target = $region32
    $region31: #{expand_encoder.4} parent=5 // pred_region
      // Predicated region
      $region33: #{expand_encoder.4} parent=31 // pred_check
        %p178 = pneg %p31
      $region34: #{expand_encoder.4} parent=31 // pred_check_branch
        %180 = sbr.rel (%p178) target = $region36
      $region35: #{expand_encoder.4} parent=31 // pred_region
        %s181 = smul.u32 8, %s11
        %p182 = scmp.lt.s32.totalorder %s181, 15
        %s183 = scalar_select %p182, %s181, 15
        %s184 = smul.addr %s183, 2
        %s185 = smul.addr %s184, 4
        %s186 = scalar_lea.vmem %s0, %s185
        %s187 = smul.u32 8, %s11
      $region36: #{expand_encoder.4} parent=31 // pred_fallthru
        _
    $region32: #{expand_encoder.4} parent=5 // pred_fallthru
      _
    %p188 = scmp.le.s32.totalorder 1, %s11
    %p189 = scmp.lt.s32.totalorder %s11, 3
    %p190 = pnand %p188, %p189
    %p191 = pneg %p190
    // Predicated region
    $region37: #{expand_encoder.4} parent=5 // pred_check
      _
    $region38: #{expand_encoder.4} parent=5 // pred_check_branch
      %193 = sbr.rel (%p190) target = $region40
    $region39: #{expand_encoder.4} parent=5 // pred_region
      %s194 = ssub.s32 %s11, 1
      %s195 = smul.u32 8, %s16
      %p196 = scmp.lt.s32.totalorder %s195, 15
      %s197 = scalar_select %p196, %s195, 15
      %s198 = smul.addr %s197, 2
      %s199 = smul.addr %s198, 4
      %s200 = scalar_lea.vmem %s0, %s199
      %p201 = pneg %p37
      %p202 = pneg %p34
      %p203 = pneg %p58
      %p204 = pneg %p55
      %p205 = pneg %p79
      %p206 = pneg %p76
      %p207 = pneg %p100
      %p208 = pneg %p97
      %p209 = pneg %p121
      %p210 = pneg %p118
      %p211 = pneg %p147
      %p212 = pneg %p144
      %s213 = smul.u32 8, %s16
      %p214 = scmp.lt.s32.totalorder %s213, 15
      %s215 = scalar_select %p214, %s213, 15
      %s216 = smul.addr %s215, 4
      %s217 = scalar_lea.vmem %s5, %s216
      %s218 = smul.u32 8, %s16
      %p219 = scmp.lt.s32.totalorder %s218, 15
      %s220 = scalar_select %p219, %s218, 15
      %s221 = smul.addr %s220, 2
      %s222 = smul.addr %s221, 4
      %s223 = scalar_lea.vmem %s0, %s222
      %s224 = smul.u32 8, %s16
      %s225 = smul.u32 8, %s16
      %p226 = scmp.lt.s32.totalorder %s225, 15
      %s227 = scalar_select %p226, %s225, 15
      %s228 = smul.addr %s227, 4
      %s229 = scalar_lea.vmem %s5, %s228
      %s230 = smul.u32 8, %s16
      %v231 = vld [vmem:[%s223] sm:$0xff]
      %v232 = vld [vmem:[%s223 + $0x8] sm:$0xff]
      %v233 = vld [vmem:[%s223 + $0x10] sm:$0xff]
      %v234 = vld [vmem:[%s223 + $0x18] sm:$0xff]
      %v235 = vld [vmem:[%s223 + $0x20] sm:$0xff]
      %v236 = vld [vmem:[%s223 + $0x28] sm:$0xff]
      %v237 = vld [vmem:[%s223 + $0x30] sm:$0xff]
      %v238 = vld [vmem:[%s223 + $0x38] sm:$0xff]
      %v239 = vld [vmem:[%s1] sm:$0xf]
      %v240 = vld [vmem:[%s1 + $0x4] sm:$0xf]
      %v241 = vld [vmem:[%s1 + $0x8] sm:$0xf]
      %v242 = vld [vmem:[%s1 + $0xc] sm:$0xf]
      %v243 = vld [vmem:[%s1 + $0x10] sm:$0xf]
      %v244 = vld [vmem:[%s1 + $0x14] sm:$0xf]
      %v245 = vld [vmem:[%s1 + $0x18] sm:$0xf]
      %v246 = vld [vmem:[%s1 + $0x1c] sm:$0xf]
      %v247 = vld [vmem:[%s1 + $0x20] sm:$0xf]
      %v248 = vld [vmem:[%s1 + $0x24] sm:$0xf]
      %v249 = vld [vmem:[%s1 + $0x28] sm:$0xf]
      %v250 = vld [vmem:[%s1 + $0x2c] sm:$0xf]
      %v251 = vld [vmem:[%s1 + $0x30] sm:$0xf]
      %v252 = vld [vmem:[%s1 + $0x34] sm:$0xf]
      %v253 = vld [vmem:[%s1 + $0x38] sm:$0xf]
      %v254 = vld [vmem:[%s1 + $0x3c] sm:$0xf]
      %v255 = vld [vmem:[%s1 + $0x40] sm:$0xf]
      %v256 = vld [vmem:[%s1 + $0x44] sm:$0xf]
      %v257 = vld [vmem:[%s1 + $0x48] sm:$0xf]
      %v258 = vld [vmem:[%s1 + $0x4c] sm:$0xf]
      %v259 = vld [vmem:[%s1 + $0x50] sm:$0xf]
      %v260 = vld [vmem:[%s1 + $0x54] sm:$0xf]
      %v261 = vld [vmem:[%s1 + $0x58] sm:$0xf]
      %v262 = vld [vmem:[%s1 + $0x5c] sm:$0xf]
      %v263 = vld [vmem:[%s1 + $0x60] sm:$0xf]
      %v264 = vld [vmem:[%s1 + $0x64] sm:$0xf]
      %v265 = vld [vmem:[%s1 + $0x68] sm:$0xf]
      %v266 = vld [vmem:[%s1 + $0x6c] sm:$0xf]
      %v267 = vld [vmem:[%s1 + $0x70] sm:$0xf]
      %v268 = vld [vmem:[%s1 + $0x74] sm:$0xf]
      %v269 = vld [vmem:[%s1 + $0x78] sm:$0x3]
      %v270 = vld [vmem:[%s2] sm:$0x1]
      %v272 = vperm.slane %v270, 0
      %v282 = vunpack.c.l.b16 %v231
      %v283 = vunpack.c.h.b16 %v231
      %v284 = vunpack.c.l.b16 %v232
      %v285 = vunpack.c.h.b16 %v232
      %v286 = vunpack.c.l.b16 %v233
      %v287 = vunpack.c.h.b16 %v233
      %v288 = vunpack.c.l.b16 %v234
      %v289 = vunpack.c.h.b16 %v234
      %v290 = vunpack.c.l.b16 %v235
      %v291 = vunpack.c.h.b16 %v235
      %v292 = vunpack.c.l.b16 %v236
      %v293 = vunpack.c.h.b16 %v236
      %v294 = vunpack.c.l.b16 %v237
      %v295 = vunpack.c.h.b16 %v237
      %v296 = vunpack.c.l.b16 %v238
      %v297 = vunpack.c.h.b16 %v238
      %v298 = vpack.c.b16 %v284, %v282
      %v299 = vpack.c.b16 %v285, %v283
      %v300 = vpack.c.b16 %v288, %v286
      %v301 = vpack.c.b16 %v289, %v287
      %v302 = vpack.c.b16 %v292, %v290
      %v303 = vpack.c.b16 %v293, %v291
      %v304 = vpack.c.b16 %v296, %v294
      %v305 = vpack.c.b16 %v297, %v295
      %v341 = vunpack.c.l.b16 %v239
      %v342 = vunpack.c.l.b16 %v240
      %v343 = vunpack.c.l.b16 %v241
      %v344 = vunpack.c.l.b16 %v242
      %v345 = vunpack.c.l.b16 %v243
      %v346 = vunpack.c.l.b16 %v244
      %v347 = vunpack.c.l.b16 %v245
      %v348 = vunpack.c.l.b16 %v246
      %v349 = vunpack.c.l.b16 %v247
      %v350 = vunpack.c.l.b16 %v248
      %v351 = vunpack.c.l.b16 %v249
      %v352 = vunpack.c.l.b16 %v250
      %v353 = vunpack.c.l.b16 %v251
      %v354 = vunpack.c.l.b16 %v252
      %v355 = vunpack.c.l.b16 %v253
      %v356 = vunpack.c.l.b16 %v254
      %v357 = vunpack.c.l.b16 %v255
      %v358 = vunpack.c.l.b16 %v256
      %v359 = vunpack.c.l.b16 %v257
      %v360 = vunpack.c.l.b16 %v258
      %v361 = vunpack.c.l.b16 %v259
      %v362 = vunpack.c.l.b16 %v260
      %v363 = vunpack.c.l.b16 %v261
      %v364 = vunpack.c.l.b16 %v262
      %v365 = vunpack.c.l.b16 %v263
      %v366 = vunpack.c.l.b16 %v264
      %v367 = vunpack.c.l.b16 %v265
      %v368 = vunpack.c.l.b16 %v266
      %v369 = vunpack.c.l.b16 %v267
      %v370 = vunpack.c.l.b16 %v268
      %v371 = vunpack.c.l.b16 %v269
      %v372 = vpack.c.b16 %v342, %v341
      %v373 = vpack.c.b16 %v344, %v343
      %v374 = vpack.c.b16 %v346, %v345
      %v375 = vpack.c.b16 %v348, %v347
      %v376 = vpack.c.b16 %v350, %v349
      %v377 = vpack.c.b16 %v352, %v351
      %v378 = vpack.c.b16 %v354, %v353
      %v379 = vpack.c.b16 %v356, %v355
      %v380 = vpack.c.b16 %v358, %v357
      %v381 = vpack.c.b16 %v360, %v359
      %v382 = vpack.c.b16 %v362, %v361
      %v383 = vpack.c.b16 %v364, %v363
      %v384 = vpack.c.b16 %v366, %v365
      %v385 = vpack.c.b16 %v368, %v367
      %v386 = vpack.c.b16 %v370, %v369
      %v387 = vpack.c.b16 %v371, %v371
      %vm403 = vcmask 941056
      %v405 = vsel %vm403, %v299, 0
      %v408 = vsel %vm403, %v301, 0
      %v411 = vsel %vm403, %v303, 0
      %v414 = vsel %vm403, %v305, 0
      %vm416 = vcmask 1040384
      %vm417 = vcmask 1041408
      %v418 = vsel %vm416, 4294967295, 65535
      %v419 = vsel %vm417, %v418, 0
      %v421 = vand.u32 %v387, %v419
      %423 = vmatpush.bf16.msra.mxu0 %v379
      %424 = vmatpush.bf16.msra.mxu0 %v378
      %425 = vmatpush.bf16.msra.mxu0 %v377
      %426 = vmatpush.bf16.msra.mxu0 %v376
      %427 = vmatpush.bf16.msra.mxu0 %v375
      %428 = vmatpush.bf16.msra.mxu0 %v374
      %429 = vmatpush.bf16.msra.mxu0 %v373
      %430 = vmatpush.bf16.msra.mxu0 %v372
      %431 = vmatmul.bf16.gmra.mxu0 %v298
      %v432 = vpop.f32.mrf.mxu0
      %v433 = vadd.f32 %v272, %v432
      %v434 = vpop.f32.mrf.mxu0
      %v435 = vadd.f32 %v272, %v434
      %436 = vmatmul.bf16.gmra.mxu0 %v300
      %v437 = vpop.f32.mrf.mxu0
      %v438 = vadd.f32 %v272, %v437
      %v439 = vpop.f32.mrf.mxu0
      %v440 = vadd.f32 %v272, %v439
      %441 = vmatmul.bf16.gmra.mxu0 %v302
      %v442 = vpop.f32.mrf.mxu0
      %v443 = vadd.f32 %v272, %v442
      %v444 = vpop.f32.mrf.mxu0
      %v445 = vadd.f32 %v272, %v444
      %446 = vmatmul.bf16.gmra.mxu0 %v304
      %v447 = vpop.f32.mrf.mxu0
      %v448 = vadd.f32 %v272, %v447
      %v449 = vpop.f32.mrf.mxu0
      %v450 = vadd.f32 %v272, %v449
      %451 = vdwg.mxu0
      %452 = vmatpush.bf16.msra.mxu0 %v421
      %453 = vmatpush.bf16.msra.mxu0 %v386
      %454 = vmatpush.bf16.msra.mxu0 %v385
      %455 = vmatpush.bf16.msra.mxu0 %v384
      %456 = vmatpush.bf16.msra.mxu0 %v383
      %457 = vmatpush.bf16.msra.mxu0 %v382
      %458 = vmatpush.bf16.msra.mxu0 %v381
      %459 = vmatpush.bf16.msra.mxu0 %v380
      %460 = vmatmul.bf16.gmra.mxu0 %v405
      %v461 = vpop.f32.mrf.mxu0
      %v462 = vadd.f32 %v433, %v461
      %v463 = vpop.f32.mrf.mxu0
      %v464 = vadd.f32 %v435, %v463
      %465 = vmatmul.bf16.gmra.mxu0 %v408
      %v466 = vpop.f32.mrf.mxu0
      %v467 = vadd.f32 %v438, %v466
      %v468 = vpop.f32.mrf.mxu0
      %v469 = vadd.f32 %v440, %v468
      %470 = vmatmul.bf16.gmra.mxu0 %v411
      %v471 = vpop.f32.mrf.mxu0
      %v472 = vadd.f32 %v443, %v471
      %v473 = vpop.f32.mrf.mxu0
      %v474 = vadd.f32 %v445, %v473
      %475 = vmatmul.bf16.gmra.mxu0 %v414
      %v476 = vpop.f32.mrf.mxu0
      %v477 = vadd.f32 %v448, %v476
      %v478 = vpop.f32.mrf.mxu0
      %v479 = vadd.f32 %v450, %v478
      %480 = vdwg.mxu0
      %v481 = vmul.f32 %v462, %v462
      %v482 = vmul.f32 %v464, %v464
      %v483 = vmul.f32 %v467, %v467
      %v484 = vmul.f32 %v469, %v469
      %v485 = vmul.f32 %v472, %v472
      %v486 = vmul.f32 %v474, %v474
      %v487 = vmul.f32 %v477, %v477
      %v488 = vmul.f32 %v479, %v479
      %v489 = vpack.c.bf16 %v482, %v481
      %v490 = vpack.c.bf16 %v484, %v483
      %v491 = vpack.c.bf16 %v486, %v485
      %v492 = vpack.c.bf16 %v488, %v487
      %v493 = vld [vmem:[%s3] sm:$0xf]
      %v494 = vld [vmem:[%s3 + $0x4] sm:$0xf]
      %v495 = vld [vmem:[%s3 + $0x8] sm:$0xf]
      %v496 = vld [vmem:[%s3 + $0xc] sm:$0xf]
      %v497 = vld [vmem:[%s3 + $0x10] sm:$0xf]
      %v498 = vld [vmem:[%s3 + $0x14] sm:$0xf]
      %v499 = vld [vmem:[%s3 + $0x18] sm:$0xf]
      %v500 = vld [vmem:[%s3 + $0x1c] sm:$0xf]
      %v501 = vld [vmem:[%s3 + $0x20] sm:$0xf]
      %v502 = vld [vmem:[%s3 + $0x24] sm:$0xf]
      %v503 = vld [vmem:[%s3 + $0x28] sm:$0xf]
      %v504 = vld [vmem:[%s3 + $0x2c] sm:$0xf]
      %v505 = vld [vmem:[%s3 + $0x30] sm:$0xf]
      %v506 = vld [vmem:[%s3 + $0x34] sm:$0xf]
      %v507 = vld [vmem:[%s3 + $0x38] sm:$0xf]
      %v508 = vld [vmem:[%s3 + $0x3c] sm:$0xf]
      %v509 = vld [vmem:[%s4] sm:$0x1]
      %v511 = vperm.slane %v509, 0
      %v529 = vunpack.c.l.b16 %v493
      %v530 = vunpack.c.l.b16 %v494
      %v531 = vunpack.c.l.b16 %v495
      %v532 = vunpack.c.l.b16 %v496
      %v533 = vunpack.c.l.b16 %v497
      %v534 = vunpack.c.l.b16 %v498
      %v535 = vunpack.c.l.b16 %v499
      %v536 = vunpack.c.l.b16 %v500
      %v537 = vunpack.c.l.b16 %v501
      %v538 = vunpack.c.l.b16 %v502
      %v539 = vunpack.c.l.b16 %v503
      %v540 = vunpack.c.l.b16 %v504
      %v541 = vunpack.c.l.b16 %v505
      %v542 = vunpack.c.l.b16 %v506
      %v543 = vunpack.c.l.b16 %v507
      %v544 = vunpack.c.l.b16 %v508
      %v545 = vpack.c.b16 %v530, %v529
      %v546 = vpack.c.b16 %v532, %v531
      %v547 = vpack.c.b16 %v534, %v533
      %v548 = vpack.c.b16 %v536, %v535
      %v549 = vpack.c.b16 %v538, %v537
      %v550 = vpack.c.b16 %v540, %v539
      %v551 = vpack.c.b16 %v542, %v541
      %v552 = vpack.c.b16 %v544, %v543
      %561 = vmatpush.bf16.msra.mxu0 %v552
      %562 = vmatpush.bf16.msra.mxu0 %v551
      %563 = vmatpush.bf16.msra.mxu0 %v550
      %564 = vmatpush.bf16.msra.mxu0 %v549
      %565 = vmatpush.bf16.msra.mxu0 %v548
      %566 = vmatpush.bf16.msra.mxu0 %v547
      %567 = vmatpush.bf16.msra.mxu0 %v546
      %568 = vmatpush.bf16.msra.mxu0 %v545
      %569 = vmatmul.bf16.gmra.mxu0 %v489
      %v570 = vpop.f32.mrf.mxu0
      %v571 = vadd.f32 %v511, %v570
      %v572 = vpop.f32.mrf.mxu0
      %v573 = vadd.f32 %v511, %v572
      %574 = vmatmul.bf16.gmra.mxu0 %v490
      %v575 = vpop.f32.mrf.mxu0
      %v576 = vadd.f32 %v511, %v575
      %v577 = vpop.f32.mrf.mxu0
      %v578 = vadd.f32 %v511, %v577
      %579 = vmatmul.bf16.gmra.mxu0 %v491
      %v580 = vpop.f32.mrf.mxu0
      %v581 = vadd.f32 %v511, %v580
      %v582 = vpop.f32.mrf.mxu0
      %v583 = vadd.f32 %v511, %v582
      %584 = vmatmul.bf16.gmra.mxu0 %v492
      %v585 = vpop.f32.mrf.mxu0
      %v586 = vadd.f32 %v511, %v585
      %v587 = vpop.f32.mrf.mxu0
      %v588 = vadd.f32 %v511, %v587
      %589 = vdwg.mxu0
      %v590 = vrsqrt.pop %v571
      %v591 = vmul.f32 %v590, %v571
      %v592 = vmul.f32 %v591, %v590
      %v593 = vmul.f32 0.5, %v592
      %v594 = vsub.f32 1.5, %v593
      %v595 = vmul.f32 %v590, %v594
      %vm596 = vweird.f32 %v571
      %vm597 = vweird.f32 %v590
      %vm598 = vmor %vm596, %vm597
      %v599 = vsel %vm598, %v590, %v595
      %v600 = vrsqrt.pop %v573
      %v601 = vmul.f32 %v600, %v573
      %v602 = vmul.f32 %v601, %v600
      %v603 = vmul.f32 0.5, %v602
      %v604 = vsub.f32 1.5, %v603
      %v605 = vmul.f32 %v600, %v604
      %vm606 = vweird.f32 %v573
      %vm607 = vweird.f32 %v600
      %vm608 = vmor %vm606, %vm607
      %v609 = vsel %vm608, %v600, %v605
      %v610 = vrsqrt.pop %v576
      %v611 = vmul.f32 %v610, %v576
      %v612 = vmul.f32 %v611, %v610
      %v613 = vmul.f32 0.5, %v612
      %v614 = vsub.f32 1.5, %v613
      %v615 = vmul.f32 %v610, %v614
      %vm616 = vweird.f32 %v576
      %vm617 = vweird.f32 %v610
      %vm618 = vmor %vm616, %vm617
      %v619 = vsel %vm618, %v610, %v615
      %v620 = vrsqrt.pop %v578
      %v621 = vmul.f32 %v620, %v578
      %v622 = vmul.f32 %v621, %v620
      %v623 = vmul.f32 0.5, %v622
      %v624 = vsub.f32 1.5, %v623
      %v625 = vmul.f32 %v620, %v624
      %vm626 = vweird.f32 %v578
      %vm627 = vweird.f32 %v620
      %vm628 = vmor %vm626, %vm627
      %v629 = vsel %vm628, %v620, %v625
      %v630 = vrsqrt.pop %v581
      %v631 = vmul.f32 %v630, %v581
      %v632 = vmul.f32 %v631, %v630
      %v633 = vmul.f32 0.5, %v632
      %v634 = vsub.f32 1.5, %v633
      %v635 = vmul.f32 %v630, %v634
      %vm636 = vweird.f32 %v581
      %vm637 = vweird.f32 %v630
      %vm638 = vmor %vm636, %vm637
      %v639 = vsel %vm638, %v630, %v635
      %v640 = vrsqrt.pop %v583
      %v641 = vmul.f32 %v640, %v583
      %v642 = vmul.f32 %v641, %v640
      %v643 = vmul.f32 0.5, %v642
      %v644 = vsub.f32 1.5, %v643
      %v645 = vmul.f32 %v640, %v644
      %vm646 = vweird.f32 %v583
      %vm647 = vweird.f32 %v640
      %vm648 = vmor %vm646, %vm647
      %v649 = vsel %vm648, %v640, %v645
      %v650 = vrsqrt.pop %v586
      %v651 = vmul.f32 %v650, %v586
      %v652 = vmul.f32 %v651, %v650
      %v653 = vmul.f32 0.5, %v652
      %v654 = vsub.f32 1.5, %v653
      %v655 = vmul.f32 %v650, %v654
      %vm656 = vweird.f32 %v586
      %vm657 = vweird.f32 %v650
      %vm658 = vmor %vm656, %vm657
      %v659 = vsel %vm658, %v650, %v655
      %v660 = vrsqrt.pop %v588
      %v661 = vmul.f32 %v660, %v588
      %v662 = vmul.f32 %v661, %v660
      %v663 = vmul.f32 0.5, %v662
      %v664 = vsub.f32 1.5, %v663
      %v665 = vmul.f32 %v660, %v664
      %vm666 = vweird.f32 %v588
      %vm667 = vweird.f32 %v660
      %vm668 = vmor %vm666, %vm667
      %v669 = vsel %vm668, %v660, %v665
      %v670 = vmul.f32 %v462, %v599
      %v671 = vmul.f32 %v464, %v609
      %v672 = vmul.f32 %v467, %v619
      %v673 = vmul.f32 %v469, %v629
      %v674 = vmul.f32 %v472, %v639
      %v675 = vmul.f32 %v474, %v649
      %v676 = vmul.f32 %v477, %v659
      %v677 = vmul.f32 %v479, %v669
      %v678 = vpack.c.bf16 %v670, %v670
      %v679 = vpack.c.bf16 %v671, %v671
      %v680 = vpack.c.bf16 %v672, %v672
      %v681 = vpack.c.bf16 %v673, %v673
      %v682 = vpack.c.bf16 %v674, %v674
      %v683 = vpack.c.bf16 %v675, %v675
      %v684 = vpack.c.bf16 %v676, %v676
      %v685 = vpack.c.bf16 %v677, %v677
      %686 = vst [vmem:[%s229] sm:$0xf] %v678
      %687 = vst [vmem:[%s229 + $0x4] sm:$0xf] %v679
      %688 = vst [vmem:[%s229 + $0x8] sm:$0xf] %v680
      %689 = vst [vmem:[%s229 + $0xc] sm:$0xf] %v681
      %690 = vst [vmem:[%s229 + $0x10] sm:$0xf] %v682
      %691 = vst [vmem:[%s229 + $0x14] sm:$0xf] %v683
      %692 = vst [vmem:[%s229 + $0x18] sm:$0xf] %v684
      %693 = vst [vmem:[%s229 + $0x1c] sm:$0xf] %v685
      %s694 = smul.u32 8, %s16
      %p695 = scmp.lt.s32.totalorder %s694, 15
      %s696 = scalar_select %p695, %s694, 15
      %s697 = smul.addr %s696, 4
      %s698 = scalar_lea.vmem %s5, %s697
      // Predicated region
      $region41: #{expand_encoder.4} parent=39 // pred_check
        %p699 = pneg %p144
      $region42: #{expand_encoder.4} parent=39 // pred_check_branch
        %701 = sbr.rel (%p699) target = $region44
      $region43: #{expand_encoder.4} parent=39 // pred_region
        %s702 = smul.u32 8, %s16
      $region44: #{expand_encoder.4} parent=39 // pred_fallthru
        _
    $region40: #{expand_encoder.4} parent=5 // pred_fallthru
      _
    %p703 = scmp.le.s32.totalorder 2, %s11
    // Predicated region
    $region45: #{expand_encoder.4} parent=5 // pred_check
      %p704 = pneg %p703
    $region46: #{expand_encoder.4} parent=5 // pred_check_branch
      %706 = sbr.rel (%p704) target = $region48
    $region47: #{expand_encoder.4} parent=5 // pred_region
      %s707 = ssub.s32 %s11, 2
      // Predicated region
      $region49: #{expand_encoder.4} parent=47 // pred_check
        %p708 = pneg %p150
      $region50: #{expand_encoder.4} parent=47 // pred_check_branch
        %710 = sbr.rel (%p708) target = $region52
      $region51: #{expand_encoder.4} parent=47 // pred_region
        %s711 = smul.u32 8, %s17
        %p712 = scmp.lt.s32.totalorder %s711, 15
        %s713 = scalar_select %p712, %s711, 15
        %s714 = smul.addr %s713, 4
        %s715 = scalar_lea.vmem %s5, %s714
      $region52: #{expand_encoder.4} parent=47 // pred_fallthru
        _
    $region48: #{expand_encoder.4} parent=5 // pred_fallthru
      _
  $region6: #{expand_encoder.4} parent=0 // loop_footer
    %s15 = sadd.s32 1, %s11
  $region7: #{expand_encoder.4} parent=0 // loop_footer_branch
    %10 = sbr.rel target = $region3
  $region8: #{expand_encoder.4} parent=0 // loop_exit
    _

// kernel: expand_encoder.5
$region0: #{expand_encoder.5}
  #allocation0 [shape = 'u32[]', space=smem, size = 0x4, offset = 0x4, fixed_abs, tag = 'smem constant byte address 0x4 - core index']
  #allocation1 [shape = 'u32[72,128]{1,0:T(1,128)}', space=vmem, size = 0x9000, scoped, tag = 'internal scratch']
  %s0 = inlined_call_operand.vmem [shape: bf16[32,3200], index: 0, kind: input, shape index: {}]
  %s1 = inlined_call_operand.vmem [shape: bf16[3200,128], index: 1, kind: input, shape index: {}]
  %s2 = inlined_call_operand.vmem [shape: f32[1,128], index: 2, kind: input, shape index: {}]
  %s3 = inlined_call_operand.vmem [shape: bf16[128,128], index: 3, kind: input, shape index: {}]
  %s4 = inlined_call_operand.vmem [shape: f32[1,128], index: 4, kind: input, shape index: {}]
  %s5 = inlined_call_operand.vmem [shape: bf16[32,128], index: 5, kind: output, shape index: {}]
  %s6 = sld [smem:[#allocation0]]
  $region53: #{expand_encoder.5} parent=0
    _
  %s8 = ssub.s32 1, %s6
  %s9 = scalar_select 0, %s8, %s6
  loop: start=0, step=1, limit=4
  $region2: #{expand_encoder.5} parent=0 // loop_pre_header
    _
  $region3: #{expand_encoder.5} parent=0 // loop_header
    %s11 = sphi 0, %s15
    %p12 = scmp.ge.s32.totalorder %s11, 4
    %s21 = sphi 0, %s23
    %s24 = sphi 0, %s21
    %s25 = sphi 0, %s24
    %s41 = sphi 0, %s25
    %s45 = sphi 0, %s45
    %s47 = sphi 0, %s45
    %s48 = sphi 0, %s47
    %s62 = sphi 0, %s48
    %s66 = sphi 0, %s66
    %s68 = sphi 0, %s66
    %s69 = sphi 0, %s68
    %s83 = sphi 0, %s69
    %s87 = sphi 0, %s87
    %s89 = sphi 0, %s87
    %s90 = sphi 0, %s89
    %s104 = sphi 0, %s90
    %s108 = sphi 0, %s108
    %s110 = sphi 0, %s108
    %s111 = sphi 0, %s110
    %s125 = sphi 0, %s111
    %s131 = sphi 0, %s133
    %s134 = sphi 0, %s131
    %s135 = sphi 0, %s134
    %s151 = sphi 0, %s135
  $region4: #{expand_encoder.5} parent=0 // loop_header_branch
    %14 = sbr.rel (%p12) target = $region8
  $region5: #{expand_encoder.5} parent=0 // loop_body
    %s16 = ssub.s32 %s11, 1
    %s17 = ssub.s32 %s11, 2
    %s18 = sadd.s32 %s11, 1
    %s19 = ssub.s32 %s11, %s18
    %p20 = scmp.eq.s32.totalorder %s19, 0
    %s22 = sadd.s32 %s21, 1
    %s23 = scalar_select %p20, %s21, %s22
    %p26 = pneg %p20
    %p27 = scmp.eq.s32.totalorder %s11, 1
    %p28 = por %p26, %p27
    %p29 = scmp.ne.s32.totalorder %s21, %s24
    %p30 = scmp.eq.s32.totalorder %s11, 0
    %p31 = por %p29, %p30
    %p32 = scmp.ne.s32.totalorder %s21, %s24
    %p33 = scmp.eq.s32.totalorder %s16, 1
    %p34 = por %p32, %p33
    %p35 = scmp.ne.s32.totalorder %s24, %s25
    %p36 = scmp.eq.s32.totalorder %s16, 0
    %p37 = por %p35, %p36
    %p38 = scmp.ne.s32.totalorder %s24, %s25
    %p39 = scmp.eq.s32.totalorder %s17, 1
    %p40 = por %p38, %p39
    %p42 = scmp.ne.s32.totalorder %s25, %s41
    %p43 = scmp.eq.s32.totalorder %s17, 0
    %p44 = por %p42, %p43
    %s46 = sadd.s32 %s45, 1
    %p49 = scmp.eq.s32.totalorder %s11, 1
    %p50 = scmp.ne.s32.totalorder %s45, %s47
    %p51 = scmp.eq.s32.totalorder %s11, 0
    %p52 = por %p50, %p51
    %p53 = scmp.ne.s32.totalorder %s45, %s47
    %p54 = scmp.eq.s32.totalorder %s16, 1
    %p55 = por %p53, %p54
    %p56 = scmp.ne.s32.totalorder %s47, %s48
    %p57 = scmp.eq.s32.totalorder %s16, 0
    %p58 = por %p56, %p57
    %p59 = scmp.ne.s32.totalorder %s47, %s48
    %p60 = scmp.eq.s32.totalorder %s17, 1
    %p61 = por %p59, %p60
    %p63 = scmp.ne.s32.totalorder %s48, %s62
    %p64 = scmp.eq.s32.totalorder %s17, 0
    %p65 = por %p63, %p64
    %s67 = sadd.s32 %s66, 1
    %p70 = scmp.eq.s32.totalorder %s11, 1
    %p71 = scmp.ne.s32.totalorder %s66, %s68
    %p72 = scmp.eq.s32.totalorder %s11, 0
    %p73 = por %p71, %p72
    %p74 = scmp.ne.s32.totalorder %s66, %s68
    %p75 = scmp.eq.s32.totalorder %s16, 1
    %p76 = por %p74, %p75
    %p77 = scmp.ne.s32.totalorder %s68, %s69
    %p78 = scmp.eq.s32.totalorder %s16, 0
    %p79 = por %p77, %p78
    %p80 = scmp.ne.s32.totalorder %s68, %s69
    %p81 = scmp.eq.s32.totalorder %s17, 1
    %p82 = por %p80, %p81
    %p84 = scmp.ne.s32.totalorder %s69, %s83
    %p85 = scmp.eq.s32.totalorder %s17, 0
    %p86 = por %p84, %p85
    %s88 = sadd.s32 %s87, 1
    %p91 = scmp.eq.s32.totalorder %s11, 1
    %p92 = scmp.ne.s32.totalorder %s87, %s89
    %p93 = scmp.eq.s32.totalorder %s11, 0
    %p94 = por %p92, %p93
    %p95 = scmp.ne.s32.totalorder %s87, %s89
    %p96 = scmp.eq.s32.totalorder %s16, 1
    %p97 = por %p95, %p96
    %p98 = scmp.ne.s32.totalorder %s89, %s90
    %p99 = scmp.eq.s32.totalorder %s16, 0
    %p100 = por %p98, %p99
    %p101 = scmp.ne.s32.totalorder %s89, %s90
    %p102 = scmp.eq.s32.totalorder %s17, 1
    %p103 = por %p101, %p102
    %p105 = scmp.ne.s32.totalorder %s90, %s104
    %p106 = scmp.eq.s32.totalorder %s17, 0
    %p107 = por %p105, %p106
    %s109 = sadd.s32 %s108, 1
    %p112 = scmp.eq.s32.totalorder %s11, 1
    %p113 = scmp.ne.s32.totalorder %s108, %s110
    %p114 = scmp.eq.s32.totalorder %s11, 0
    %p115 = por %p113, %p114
    %p116 = scmp.ne.s32.totalorder %s108, %s110
    %p117 = scmp.eq.s32.totalorder %s16, 1
    %p118 = por %p116, %p117
    %p119 = scmp.ne.s32.totalorder %s110, %s111
    %p120 = scmp.eq.s32.totalorder %s16, 0
    %p121 = por %p119, %p120
    %p122 = scmp.ne.s32.totalorder %s110, %s111
    %p123 = scmp.eq.s32.totalorder %s17, 1
    %p124 = por %p122, %p123
    %p126 = scmp.ne.s32.totalorder %s111, %s125
    %p127 = scmp.eq.s32.totalorder %s17, 0
    %p128 = por %p126, %p127
    %s129 = ssub.s32 %s11, %s18
    %p130 = scmp.eq.s32.totalorder %s129, 0
    %s132 = sadd.s32 %s131, 1
    %s133 = scalar_select %p130, %s131, %s132
    %p136 = pneg %p130
    %p137 = scmp.eq.s32.totalorder %s11, 1
    %p138 = por %p136, %p137
    %p139 = scmp.ne.s32.totalorder %s131, %s134
    %p140 = scmp.eq.s32.totalorder %s11, 0
    %p141 = por %p139, %p140
    %p142 = scmp.ne.s32.totalorder %s131, %s134
    %p143 = scmp.eq.s32.totalorder %s16, 1
    %p144 = por %p142, %p143
    %p145 = scmp.ne.s32.totalorder %s134, %s135
    %p146 = scmp.eq.s32.totalorder %s16, 0
    %p147 = por %p145, %p146
    %p148 = scmp.ne.s32.totalorder %s134, %s135
    %p149 = scmp.eq.s32.totalorder %s17, 1
    %p150 = por %p148, %p149
    %p152 = scmp.ne.s32.totalorder %s135, %s151
    %p153 = scmp.eq.s32.totalorder %s17, 0
    %p154 = por %p152, %p153
    %p155 = scmp.le.s32.totalorder 1, %s11
    %p156 = scmp.lt.s32.totalorder %s11, 3
    %p157 = pnand %p155, %p156
    %p158 = pneg %p157
    // Predicated region
    $region9: #{expand_encoder.5} parent=5 // pred_check
      _
    $region10: #{expand_encoder.5} parent=5 // pred_check_branch
      %160 = sbr.rel (%p157) target = $region12
    $region11: #{expand_encoder.5} parent=5 // pred_region
      %s161 = ssub.s32 %s11, 1
      // Predicated region
      $region13: #{expand_encoder.5} parent=11 // pred_check
        %p162 = pneg %p58
      $region14: #{expand_encoder.5} parent=11 // pred_check_branch
        %164 = sbr.rel (%p162) target = $region16
      $region15: #{expand_encoder.5} parent=11 // pred_region
        _
      $region16: #{expand_encoder.5} parent=11 // pred_fallthru
        _
      // Predicated region
      $region17: #{expand_encoder.5} parent=11 // pred_check
        %p165 = pneg %p79
      $region18: #{expand_encoder.5} parent=11 // pred_check_branch
        %167 = sbr.rel (%p165) target = $region20
      $region19: #{expand_encoder.5} parent=11 // pred_region
        _
      $region20: #{expand_encoder.5} parent=11 // pred_fallthru
        _
      // Predicated region
      $region21: #{expand_encoder.5} parent=11 // pred_check
        %p168 = pneg %p100
      $region22: #{expand_encoder.5} parent=11 // pred_check_branch
        %170 = sbr.rel (%p168) target = $region24
      $region23: #{expand_encoder.5} parent=11 // pred_region
        _
      $region24: #{expand_encoder.5} parent=11 // pred_fallthru
        _
      // Predicated region
      $region25: #{expand_encoder.5} parent=11 // pred_check
        %p171 = pneg %p121
      $region26: #{expand_encoder.5} parent=11 // pred_check_branch
        %173 = sbr.rel (%p171) target = $region28
      $region27: #{expand_encoder.5} parent=11 // pred_region
        _
      $region28: #{expand_encoder.5} parent=11 // pred_fallthru
        _
    $region12: #{expand_encoder.5} parent=5 // pred_fallthru
      _
    %p174 = scmp.lt.s32.totalorder %s11, 2
    // Predicated region
    $region29: #{expand_encoder.5} parent=5 // pred_check
      %p175 = pneg %p174
    $region30: #{expand_encoder.5} parent=5 // pred_check_branch
      %177 = sbr.rel (%p175) target = $region32
    $region31: #{expand_encoder.5} parent=5 // pred_region
      // Predicated region
      $region33: #{expand_encoder.5} parent=31 // pred_check
        %p178 = pneg %p31
      $region34: #{expand_encoder.5} parent=31 // pred_check_branch
        %180 = sbr.rel (%p178) target = $region36
      $region35: #{expand_encoder.5} parent=31 // pred_region
        %s181 = smul.u32 2, %s11
        %p182 = scmp.lt.s32.totalorder %s181, 3
        %s183 = scalar_select %p182, %s181, 3
        %s184 = smul.addr %s183, 25
        %s185 = smul.addr %s184, 4
        %s186 = scalar_lea.vmem %s0, %s185
        %s187 = smul.u32 2, %s11
      $region36: #{expand_encoder.5} parent=31 // pred_fallthru
        _
    $region32: #{expand_encoder.5} parent=5 // pred_fallthru
      _
    %p188 = scmp.le.s32.totalorder 1, %s11
    %p189 = scmp.lt.s32.totalorder %s11, 3
    %p190 = pnand %p188, %p189
    %p191 = pneg %p190
    // Predicated region
    $region37: #{expand_encoder.5} parent=5 // pred_check
      _
    $region38: #{expand_encoder.5} parent=5 // pred_check_branch
      %193 = sbr.rel (%p190) target = $region40
    $region39: #{expand_encoder.5} parent=5 // pred_region
      %s194 = ssub.s32 %s11, 1
      %s195 = smul.u32 2, %s16
      %p196 = scmp.lt.s32.totalorder %s195, 3
      %s197 = scalar_select %p196, %s195, 3
      %s198 = smul.addr %s197, 25
      %s199 = smul.addr %s198, 4
      %s200 = scalar_lea.vmem %s0, %s199
      %p201 = pneg %p37
      %p202 = pneg %p34
      %p203 = pneg %p58
      %p204 = pneg %p55
      %p205 = pneg %p79
      %p206 = pneg %p76
      %p207 = pneg %p100
      %p208 = pneg %p97
      %p209 = pneg %p121
      %p210 = pneg %p118
      %p211 = pneg %p147
      %p212 = pneg %p144
      %s213 = smul.u32 2, %s16
      %p214 = scmp.lt.s32.totalorder %s213, 3
      %s215 = scalar_select %p214, %s213, 3
      %s216 = smul.addr %s215, 4
      %s217 = scalar_lea.vmem %s5, %s216
      %s218 = smul.u32 2, %s16
      %p219 = scmp.lt.s32.totalorder %s218, 3
      %s220 = scalar_select %p219, %s218, 3
      %s221 = smul.addr %s220, 25
      %s222 = smul.addr %s221, 4
      %s223 = scalar_lea.vmem %s0, %s222
      %s224 = smul.u32 2, %s16
      %s225 = smul.u32 2, %s16
      %p226 = scmp.lt.s32.totalorder %s225, 3
      %s227 = scalar_select %p226, %s225, 3
      %s228 = smul.addr %s227, 4
      %s229 = scalar_lea.vmem %s5, %s228
      %s230 = smul.u32 2, %s16
      %v231 = vld [vmem:[%s223] sm:$0xff]
      %v232 = vld [vmem:[%s223 + $0x8] sm:$0xff]
      %v233 = vld [vmem:[%s223 + $0x10] sm:$0xff]
      %v234 = vld [vmem:[%s223 + $0x18] sm:$0xff]
      %v235 = vld [vmem:[%s223 + $0x20] sm:$0xff]
      %v236 = vld [vmem:[%s223 + $0x28] sm:$0xff]
      %v237 = vld [vmem:[%s223 + $0x30] sm:$0xff]
      %v238 = vld [vmem:[%s223 + $0x38] sm:$0xff]
      %v239 = vld [vmem:[%s223 + $0x40] sm:$0xff]
      %v240 = vld [vmem:[%s223 + $0x48] sm:$0xff]
      %v241 = vld [vmem:[%s223 + $0x50] sm:$0xff]
      %v242 = vld [vmem:[%s223 + $0x58] sm:$0xff]
      %v243 = vld [vmem:[%s223 + $0x60] sm:$0xf]
      %v244 = vld [vmem:[%s223 + $0x64] sm:$0xff]
      %v245 = vld [vmem:[%s223 + $0x6c] sm:$0xff]
      %v246 = vld [vmem:[%s223 + $0x74] sm:$0xff]
      %v247 = vld [vmem:[%s223 + $0x7c] sm:$0xff]
      %v248 = vld [vmem:[%s223 + $0x84] sm:$0xff]
      %v249 = vld [vmem:[%s223 + $0x8c] sm:$0xff]
      %v250 = vld [vmem:[%s223 + $0x94] sm:$0xff]
      %v251 = vld [vmem:[%s223 + $0x9c] sm:$0xff]
      %v252 = vld [vmem:[%s223 + $0xa4] sm:$0xff]
      %v253 = vld [vmem:[%s223 + $0xac] sm:$0xff]
      %v254 = vld [vmem:[%s223 + $0xb4] sm:$0xff]
      %v255 = vld [vmem:[%s223 + $0xbc] sm:$0xff]
      %v256 = vld [vmem:[%s223 + $0xc4] sm:$0xf]
      %v257 = vld [vmem:[%s1] sm:$0xf]
      %v258 = vld [vmem:[%s1 + $0x4] sm:$0xf]
      %v259 = vld [vmem:[%s1 + $0x8] sm:$0xf]
      %v260 = vld [vmem:[%s1 + $0xc] sm:$0xf]
      %v261 = vld [vmem:[%s1 + $0x10] sm:$0xf]
      %v262 = vld [vmem:[%s1 + $0x14] sm:$0xf]
      %v263 = vld [vmem:[%s1 + $0x18] sm:$0xf]
      %v264 = vld [vmem:[%s1 + $0x1c] sm:$0xf]
      %v265 = vld [vmem:[%s1 + $0x20] sm:$0xf]
      %v266 = vld [vmem:[%s1 + $0x24] sm:$0xf]
      %v267 = vld [vmem:[%s1 + $0x28] sm:$0xf]
      %v268 = vld [vmem:[%s1 + $0x2c] sm:$0xf]
      %v269 = vld [vmem:[%s1 + $0x30] sm:$0xf]
      %v270 = vld [vmem:[%s1 + $0x34] sm:$0xf]
      %v271 = vld [vmem:[%s1 + $0x38] sm:$0xf]
      %v272 = vld [vmem:[%s1 + $0x3c] sm:$0xf]
      %v273 = vld [vmem:[%s1 + $0x40] sm:$0xf]
      %v274 = vld [vmem:[%s1 + $0x44] sm:$0xf]
      %v275 = vld [vmem:[%s1 + $0x48] sm:$0xf]
      %v276 = vld [vmem:[%s1 + $0x4c] sm:$0xf]
      %v277 = vld [vmem:[%s1 + $0x50] sm:$0xf]
      %v278 = vld [vmem:[%s1 + $0x54] sm:$0xf]
      %v279 = vld [vmem:[%s1 + $0x58] sm:$0xf]
      %v280 = vld [vmem:[%s1 + $0x5c] sm:$0xf]
      %v281 = vld [vmem:[%s1 + $0x60] sm:$0xf]
      %v282 = vld [vmem:[%s1 + $0x64] sm:$0xf]
      %v283 = vld [vmem:[%s1 + $0x68] sm:$0xf]
      %v284 = vld [vmem:[%s1 + $0x6c] sm:$0xf]
      %v285 = vld [vmem:[%s1 + $0x70] sm:$0xf]
      %v286 = vld [vmem:[%s1 + $0x74] sm:$0xf]
      %v287 = vld [vmem:[%s1 + $0x78] sm:$0xf]
      %v288 = vld [vmem:[%s1 + $0x7c] sm:$0xf]
      %v289 = vld [vmem:[%s1 + $0x80] sm:$0xf]
      %v290 = vld [vmem:[%s1 + $0x84] sm:$0xf]
      %v291 = vld [vmem:[%s1 + $0x88] sm:$0xf]
      %v292 = vld [vmem:[%s1 + $0x8c] sm:$0xf]
      %v293 = vld [vmem:[%s1 + $0x90] sm:$0xf]
      %v294 = vld [vmem:[%s1 + $0x94] sm:$0xf]
      %v295 = vld [vmem:[%s1 + $0x98] sm:$0xf]
      %v296 = vld [vmem:[%s1 + $0x9c] sm:$0xf]
      %v297 = vld [vmem:[%s1 + $0xa0] sm:$0xf]
      %v298 = vld [vmem:[%s1 + $0xa4] sm:$0xf]
      %v299 = vld [vmem:[%s1 + $0xa8] sm:$0xf]
      %v300 = vld [vmem:[%s1 + $0xac] sm:$0xf]
      %v301 = vld [vmem:[%s1 + $0xb0] sm:$0xf]
      %v302 = vld [vmem:[%s1 + $0xb4] sm:$0xf]
      %v303 = vld [vmem:[%s1 + $0xb8] sm:$0xf]
      %v304 = vld [vmem:[%s1 + $0xbc] sm:$0xf]
      %v305 = vld [vmem:[%s1 + $0xc0] sm:$0xf]
      %v306 = vld [vmem:[%s1 + $0xc4] sm:$0xf]
      %v307 = vld [vmem:[%s1 + $0xc8] sm:$0xf]
      %v308 = vld [vmem:[%s1 + $0xcc] sm:$0xf]
      %v309 = vld [vmem:[%s1 + $0xd0] sm:$0xf]
      %v310 = vld [vmem:[%s1 + $0xd4] sm:$0xf]
      %v311 = vld [vmem:[%s1 + $0xd8] sm:$0xf]
      %v312 = vld [vmem:[%s1 + $0xdc] sm:$0xf]
      %v313 = vld [vmem:[%s1 + $0xe0] sm:$0xf]
      %v314 = vld [vmem:[%s1 + $0xe4] sm:$0xf]
      %v315 = vld [vmem:[%s1 + $0xe8] sm:$0xf]
      %v316 = vld [vmem:[%s1 + $0xec] sm:$0xf]
      %v317 = vld [vmem:[%s1 + $0xf0] sm:$0xf]
      %v318 = vld [vmem:[%s1 + $0xf4] sm:$0xf]
      %v319 = vld [vmem:[%s1 + $0xf8] sm:$0xf]
      %v320 = vld [vmem:[%s1 + $0xfc] sm:$0xf]
      %v321 = vld [vmem:[%s1 + $0x100] sm:$0xf]
      %v322 = vld [vmem:[%s1 + $0x104] sm:$0xf]
      %v323 = vld [vmem:[%s1 + $0x108] sm:$0xf]
      %v324 = vld [vmem:[%s1 + $0x10c] sm:$0xf]
      %v325 = vld [vmem:[%s1 + $0x110] sm:$0xf]
      %v326 = vld [vmem:[%s1 + $0x114] sm:$0xf]
      %v327 = vld [vmem:[%s1 + $0x118] sm:$0xf]
      %v328 = vld [vmem:[%s1 + $0x11c] sm:$0xf]
      %v329 = vld [vmem:[%s1 + $0x120] sm:$0xf]
      %v330 = vld [vmem:[%s1 + $0x124] sm:$0xf]
      %v331 = vld [vmem:[%s1 + $0x128] sm:$0xf]
      %v332 = vld [vmem:[%s1 + $0x12c] sm:$0xf]
      %v333 = vld [vmem:[%s1 + $0x130] sm:$0xf]
      %v334 = vld [vmem:[%s1 + $0x134] sm:$0xf]
      %v335 = vld [vmem:[%s1 + $0x138] sm:$0xf]
      %v336 = vld [vmem:[%s1 + $0x13c] sm:$0xf]
      %v337 = vld [vmem:[%s1 + $0x140] sm:$0xf]
      %v338 = vld [vmem:[%s1 + $0x144] sm:$0xf]
      %v339 = vld [vmem:[%s1 + $0x148] sm:$0xf]
      %v340 = vld [vmem:[%s1 + $0x14c] sm:$0xf]
      %v341 = vld [vmem:[%s1 + $0x150] sm:$0xf]
      %v342 = vld [vmem:[%s1 + $0x154] sm:$0xf]
      %v343 = vld [vmem:[%s1 + $0x158] sm:$0xf]
      %v344 = vld [vmem:[%s1 + $0x15c] sm:$0xf]
      %v345 = vld [vmem:[%s1 + $0x160] sm:$0xf]
      %v346 = vld [vmem:[%s1 + $0x164] sm:$0xf]
      %v347 = vld [vmem:[%s1 + $0x168] sm:$0xf]
      %v348 = vld [vmem:[%s1 + $0x16c] sm:$0xf]
      %v349 = vld [vmem:[%s1 + $0x170] sm:$0xf]
      %v350 = vld [vmem:[%s1 + $0x174] sm:$0xf]
      %v351 = vld [vmem:[%s1 + $0x178] sm:$0xf]
      %v352 = vld [vmem:[%s1 + $0x17c] sm:$0xf]
      %v353 = vld [vmem:[%s1 + $0x180] sm:$0xf]
      %v354 = vld [vmem:[%s1 + $0x184] sm:$0xf]
      %v355 = vld [vmem:[%s1 + $0x188] sm:$0xf]
      %v356 = vld [vmem:[%s1 + $0x18c] sm:$0xf]
      %v357 = vld [vmem:[%s1 + $0x190] sm:$0xf]
      %v358 = vld [vmem:[%s1 + $0x194] sm:$0xf]
      %v359 = vld [vmem:[%s1 + $0x198] sm:$0xf]
      %v360 = vld [vmem:[%s1 + $0x19c] sm:$0xf]
      %v361 = vld [vmem:[%s1 + $0x1a0] sm:$0xf]
      %v362 = vld [vmem:[%s1 + $0x1a4] sm:$0xf]
      %v363 = vld [vmem:[%s1 + $0x1a8] sm:$0xf]
      %v364 = vld [vmem:[%s1 + $0x1ac] sm:$0xf]
      %v365 = vld [vmem:[%s1 + $0x1b0] sm:$0xf]
      %v366 = vld [vmem:[%s1 + $0x1b4] sm:$0xf]
      %v367 = vld [vmem:[%s1 + $0x1b8] sm:$0xf]
      %v368 = vld [vmem:[%s1 + $0x1bc] sm:$0xf]
      %v369 = vld [vmem:[%s1 + $0x1c0] sm:$0xf]
      %v370 = vld [vmem:[%s1 + $0x1c4] sm:$0xf]
      %v371 = vld [vmem:[%s1 + $0x1c8] sm:$0xf]
      %v372 = vld [vmem:[%s1 + $0x1cc] sm:$0xf]
      %v373 = vld [vmem:[%s1 + $0x1d0] sm:$0xf]
      %v374 = vld [vmem:[%s1 + $0x1d4] sm:$0xf]
      %v375 = vld [vmem:[%s1 + $0x1d8] sm:$0xf]
      %v376 = vld [vmem:[%s1 + $0x1dc] sm:$0xf]
      %v377 = vld [vmem:[%s1 + $0x1e0] sm:$0xf]
      %v378 = vld [vmem:[%s1 + $0x1e4] sm:$0xf]
      %v379 = vld [vmem:[%s1 + $0x1e8] sm:$0xf]
      %v380 = vld [vmem:[%s1 + $0x1ec] sm:$0xf]
      %v381 = vld [vmem:[%s1 + $0x1f0] sm:$0xf]
      %v382 = vld [vmem:[%s1 + $0x1f4] sm:$0xf]
      %v383 = vld [vmem:[%s1 + $0x1f8] sm:$0xf]
      %v384 = vld [vmem:[%s1 + $0x1fc] sm:$0xf]
      %v385 = vld [vmem:[%s1 + $0x200] sm:$0xf]
      %v386 = vld [vmem:[%s1 + $0x204] sm:$0xf]
      %v387 = vld [vmem:[%s1 + $0x208] sm:$0xf]
      %v388 = vld [vmem:[%s1 + $0x20c] sm:$0xf]
      %v389 = vld [vmem:[%s1 + $0x210] sm:$0xf]
      %v390 = vld [vmem:[%s1 + $0x214] sm:$0xf]
      %v391 = vld [vmem:[%s1 + $0x218] sm:$0xf]
      %v392 = vld [vmem:[%s1 + $0x21c] sm:$0xf]
      %v393 = vld [vmem:[%s1 + $0x220] sm:$0xf]
      %v394 = vld [vmem:[%s1 + $0x224] sm:$0xf]
      %v395 = vld [vmem:[%s1 + $0x228] sm:$0xf]
      %v396 = vld [vmem:[%s1 + $0x22c] sm:$0xf]
      %v397 = vld [vmem:[%s1 + $0x230] sm:$0xf]
      %v398 = vld [vmem:[%s1 + $0x234] sm:$0xf]
      %v399 = vld [vmem:[%s1 + $0x238] sm:$0xf]
      %v400 = vld [vmem:[%s1 + $0x23c] sm:$0xf]
      %v401 = vld [vmem:[%s1 + $0x240] sm:$0xf]
      %v402 = vld [vmem:[%s1 + $0x244] sm:$0xf]
      %v403 = vld [vmem:[%s1 + $0x248] sm:$0xf]
      %v404 = vld [vmem:[%s1 + $0x24c] sm:$0xf]
      %v405 = vld [vmem:[%s1 + $0x250] sm:$0xf]
      %v406 = vld [vmem:[%s1 + $0x254] sm:$0xf]
      %v407 = vld [vmem:[%s1 + $0x258] sm:$0xf]
      %v408 = vld [vmem:[%s1 + $0x25c] sm:$0xf]
      %v409 = vld [vmem:[%s1 + $0x260] sm:$0xf]
      %v410 = vld [vmem:[%s1 + $0x264] sm:$0xf]
      %v411 = vld [vmem:[%s1 + $0x268] sm:$0xf]
      %v412 = vld [vmem:[%s1 + $0x26c] sm:$0xf]
      %v413 = vld [vmem:[%s1 + $0x270] sm:$0xf]
      %v414 = vld [vmem:[%s1 + $0x274] sm:$0xf]
      %v415 = vld [vmem:[%s1 + $0x278] sm:$0xf]
      %v416 = vld [vmem:[%s1 + $0x27c] sm:$0xf]
      %v417 = vld [vmem:[%s1 + $0x280] sm:$0xf]
      %v418 = vld [vmem:[%s1 + $0x284] sm:$0xf]
      %v419 = vld [vmem:[%s1 + $0x288] sm:$0xf]
      %v420 = vld [vmem:[%s1 + $0x28c] sm:$0xf]
      %v421 = vld [vmem:[%s1 + $0x290] sm:$0xf]
      %v422 = vld [vmem:[%s1 + $0x294] sm:$0xf]
      %v423 = vld [vmem:[%s1 + $0x298] sm:$0xf]
      %v424 = vld [vmem:[%s1 + $0x29c] sm:$0xf]
      %v425 = vld [vmem:[%s1 + $0x2a0] sm:$0xf]
      %v426 = vld [vmem:[%s1 + $0x2a4] sm:$0xf]
      %v427 = vld [vmem:[%s1 + $0x2a8] sm:$0xf]
      %v428 = vld [vmem:[%s1 + $0x2ac] sm:$0xf]
      %v429 = vld [vmem:[%s1 + $0x2b0] sm:$0xf]
      %v430 = vld [vmem:[%s1 + $0x2b4] sm:$0xf]
      %v431 = vld [vmem:[%s1 + $0x2b8] sm:$0xf]
      %v432 = vld [vmem:[%s1 + $0x2bc] sm:$0xf]
      %v433 = vld [vmem:[%s1 + $0x2c0] sm:$0xf]
      %v434 = vld [vmem:[%s1 + $0x2c4] sm:$0xf]
      %v435 = vld [vmem:[%s1 + $0x2c8] sm:$0xf]
      %v436 = vld [vmem:[%s1 + $0x2cc] sm:$0xf]
      %v437 = vld [vmem:[%s1 + $0x2d0] sm:$0xf]
      %v438 = vld [vmem:[%s1 + $0x2d4] sm:$0xf]
      %v439 = vld [vmem:[%s1 + $0x2d8] sm:$0xf]
      %v440 = vld [vmem:[%s1 + $0x2dc] sm:$0xf]
      %v441 = vld [vmem:[%s1 + $0x2e0] sm:$0xf]
      %v442 = vld [vmem:[%s1 + $0x2e4] sm:$0xf]
      %v443 = vld [vmem:[%s1 + $0x2e8] sm:$0xf]
      %v444 = vld [vmem:[%s1 + $0x2ec] sm:$0xf]
      %v445 = vld [vmem:[%s1 + $0x2f0] sm:$0xf]
      %v446 = vld [vmem:[%s1 + $0x2f4] sm:$0xf]
      %v447 = vld [vmem:[%s1 + $0x2f8] sm:$0xf]
      %v448 = vld [vmem:[%s1 + $0x2fc] sm:$0xf]
      %v449 = vld [vmem:[%s1 + $0x300] sm:$0xf]
      %v450 = vld [vmem:[%s1 + $0x304] sm:$0xf]
      %v451 = vld [vmem:[%s1 + $0x308] sm:$0xf]
      %v452 = vld [vmem:[%s1 + $0x30c] sm:$0xf]
      %v453 = vld [vmem:[%s1 + $0x310] sm:$0xf]
      %v454 = vld [vmem:[%s1 + $0x314] sm:$0xf]
      %v455 = vld [vmem:[%s1 + $0x318] sm:$0xf]
      %v456 = vld [vmem:[%s1 + $0x31c] sm:$0xf]
      %v457 = vld [vmem:[%s1 + $0x320] sm:$0xf]
      %v458 = vld [vmem:[%s1 + $0x324] sm:$0xf]
      %v459 = vld [vmem:[%s1 + $0x328] sm:$0xf]
      %v460 = vld [vmem:[%s1 + $0x32c] sm:$0xf]
      %v461 = vld [vmem:[%s1 + $0x330] sm:$0xf]
      %v462 = vld [vmem:[%s1 + $0x334] sm:$0xf]
      %v463 = vld [vmem:[%s1 + $0x338] sm:$0xf]
      %v464 = vld [vmem:[%s1 + $0x33c] sm:$0xf]
      %v465 = vld [vmem:[%s1 + $0x340] sm:$0xf]
      %v466 = vld [vmem:[%s1 + $0x344] sm:$0xf]
      %v467 = vld [vmem:[%s1 + $0x348] sm:$0xf]
      %v468 = vld [vmem:[%s1 + $0x34c] sm:$0xf]
      %v469 = vld [vmem:[%s1 + $0x350] sm:$0xf]
      %v470 = vld [vmem:[%s1 + $0x354] sm:$0xf]
      %v471 = vld [vmem:[%s1 + $0x358] sm:$0xf]
      %v472 = vld [vmem:[%s1 + $0x35c] sm:$0xf]
      %v473 = vld [vmem:[%s1 + $0x360] sm:$0xf]
      %v474 = vld [vmem:[%s1 + $0x364] sm:$0xf]
      %v475 = vld [vmem:[%s1 + $0x368] sm:$0xf]
      %v476 = vld [vmem:[%s1 + $0x36c] sm:$0xf]
      %v477 = vld [vmem:[%s1 + $0x370] sm:$0xf]
      %v478 = vld [vmem:[%s1 + $0x374] sm:$0xf]
      %v479 = vld [vmem:[%s1 + $0x378] sm:$0xf]
      %v480 = vld [vmem:[%s1 + $0x37c] sm:$0xf]
      %v481 = vld [vmem:[%s1 + $0x380] sm:$0xf]
      %v482 = vld [vmem:[%s1 + $0x384] sm:$0xf]
      %v483 = vld [vmem:[%s1 + $0x388] sm:$0xf]
      %v484 = vld [vmem:[%s1 + $0x38c] sm:$0xf]
      %v485 = vld [vmem:[%s1 + $0x390] sm:$0xf]
      %v486 = vld [vmem:[%s1 + $0x394] sm:$0xf]
      %v487 = vld [vmem:[%s1 + $0x398] sm:$0xf]
      %v488 = vld [vmem:[%s1 + $0x39c] sm:$0xf]
      %v489 = vld [vmem:[%s1 + $0x3a0] sm:$0xf]
      %v490 = vld [vmem:[%s1 + $0x3a4] sm:$0xf]
      %v491 = vld [vmem:[%s1 + $0x3a8] sm:$0xf]
      %v492 = vld [vmem:[%s1 + $0x3ac] sm:$0xf]
      %v493 = vld [vmem:[%s1 + $0x3b0] sm:$0xf]
      %v494 = vld [vmem:[%s1 + $0x3b4] sm:$0xf]
      %v495 = vld [vmem:[%s1 + $0x3b8] sm:$0xf]
      %v496 = vld [vmem:[%s1 + $0x3bc] sm:$0xf]
      %v497 = vld [vmem:[%s1 + $0x3c0] sm:$0xf]
      %v498 = vld [vmem:[%s1 + $0x3c4] sm:$0xf]
      %v499 = vld [vmem:[%s1 + $0x3c8] sm:$0xf]
      %v500 = vld [vmem:[%s1 + $0x3cc] sm:$0xf]
      %v501 = vld [vmem:[%s1 + $0x3d0] sm:$0xf]
      %v502 = vld [vmem:[%s1 + $0x3d4] sm:$0xf]
      %v503 = vld [vmem:[%s1 + $0x3d8] sm:$0xf]
      %v504 = vld [vmem:[%s1 + $0x3dc] sm:$0xf]
      %v505 = vld [vmem:[%s1 + $0x3e0] sm:$0xf]
      %v506 = vld [vmem:[%s1 + $0x3e4] sm:$0xf]
      %v507 = vld [vmem:[%s1 + $0x3e8] sm:$0xf]
      %v508 = vld [vmem:[%s1 + $0x3ec] sm:$0xf]
      %v509 = vld [vmem:[%s1 + $0x3f0] sm:$0xf]
      %v510 = vld [vmem:[%s1 + $0x3f4] sm:$0xf]
      %v511 = vld [vmem:[%s1 + $0x3f8] sm:$0xf]
      %v512 = vld [vmem:[%s1 + $0x3fc] sm:$0xf]
      %v513 = vld [vmem:[%s1 + $0x400] sm:$0xf]
      %v514 = vld [vmem:[%s1 + $0x404] sm:$0xf]
      %v515 = vld [vmem:[%s1 + $0x408] sm:$0xf]
      %v516 = vld [vmem:[%s1 + $0x40c] sm:$0xf]
      %v517 = vld [vmem:[%s1 + $0x410] sm:$0xf]
      %v518 = vld [vmem:[%s1 + $0x414] sm:$0xf]
      %v519 = vld [vmem:[%s1 + $0x418] sm:$0xf]
      %v520 = vld [vmem:[%s1 + $0x41c] sm:$0xf]
      %v521 = vld [vmem:[%s1 + $0x420] sm:$0xf]
      %v522 = vld [vmem:[%s1 + $0x424] sm:$0xf]
      %v523 = vld [vmem:[%s1 + $0x428] sm:$0xf]
      %v524 = vld [vmem:[%s1 + $0x42c] sm:$0xf]
      %v525 = vld [vmem:[%s1 + $0x430] sm:$0xf]
      %v526 = vld [vmem:[%s1 + $0x434] sm:$0xf]
      %v527 = vld [vmem:[%s1 + $0x438] sm:$0xf]
      %v528 = vld [vmem:[%s1 + $0x43c] sm:$0xf]
      %v529 = vld [vmem:[%s1 + $0x440] sm:$0xf]
      %v530 = vld [vmem:[%s1 + $0x444] sm:$0xf]
      %v531 = vld [vmem:[%s1 + $0x448] sm:$0xf]
      %v532 = vld [vmem:[%s1 + $0x44c] sm:$0xf]
      %v533 = vld [vmem:[%s1 + $0x450] sm:$0xf]
      %v534 = vld [vmem:[%s1 + $0x454] sm:$0xf]
      %v535 = vld [vmem:[%s1 + $0x458] sm:$0xf]
      %v536 = vld [vmem:[%s1 + $0x45c] sm:$0xf]
      %v537 = vld [vmem:[%s1 + $0x460] sm:$0xf]
      %v538 = vld [vmem:[%s1 + $0x464] sm:$0xf]
      %v539 = vld [vmem:[%s1 + $0x468] sm:$0xf]
      %v540 = vld [vmem:[%s1 + $0x46c] sm:$0xf]
      %v541 = vld [vmem:[%s1 + $0x470] sm:$0xf]
      %v542 = vld [vmem:[%s1 + $0x474] sm:$0xf]
      %v543 = vld [vmem:[%s1 + $0x478] sm:$0xf]
      %v544 = vld [vmem:[%s1 + $0x47c] sm:$0xf]
      %v545 = vld [vmem:[%s1 + $0x480] sm:$0xf]
      %v546 = vld [vmem:[%s1 + $0x484] sm:$0xf]
      %v547 = vld [vmem:[%s1 + $0x488] sm:$0xf]
      %v548 = vld [vmem:[%s1 + $0x48c] sm:$0xf]
      %v549 = vld [vmem:[%s1 + $0x490] sm:$0xf]
      %v550 = vld [vmem:[%s1 + $0x494] sm:$0xf]
      %v551 = vld [vmem:[%s1 + $0x498] sm:$0xf]
      %v552 = vld [vmem:[%s1 + $0x49c] sm:$0xf]
      %v553 = vld [vmem:[%s1 + $0x4a0] sm:$0xf]
      %v554 = vld [vmem:[%s1 + $0x4a4] sm:$0xf]
      %v555 = vld [vmem:[%s1 + $0x4a8] sm:$0xf]
      %v556 = vld [vmem:[%s1 + $0x4ac] sm:$0xf]
      %v557 = vld [vmem:[%s1 + $0x4b0] sm:$0xf]
      %v558 = vld [vmem:[%s1 + $0x4b4] sm:$0xf]
      %v559 = vld [vmem:[%s1 + $0x4b8] sm:$0xf]
      %v560 = vld [vmem:[%s1 + $0x4bc] sm:$0xf]
      %v561 = vld [vmem:[%s1 + $0x4c0] sm:$0xf]
      %v562 = vld [vmem:[%s1 + $0x4c4] sm:$0xf]
      %v563 = vld [vmem:[%s1 + $0x4c8] sm:$0xf]
      %v564 = vld [vmem:[%s1 + $0x4cc] sm:$0xf]
      %v565 = vld [vmem:[%s1 + $0x4d0] sm:$0xf]
      %v566 = vld [vmem:[%s1 + $0x4d4] sm:$0xf]
      %v567 = vld [vmem:[%s1 + $0x4d8] sm:$0xf]
      %v568 = vld [vmem:[%s1 + $0x4dc] sm:$0xf]
      %v569 = vld [vmem:[%s1 + $0x4e0] sm:$0xf]
      %v570 = vld [vmem:[%s1 + $0x4e4] sm:$0xf]
      %v571 = vld [vmem:[%s1 + $0x4e8] sm:$0xf]
      %v572 = vld [vmem:[%s1 + $0x4ec] sm:$0xf]
      %v573 = vld [vmem:[%s1 + $0x4f0] sm:$0xf]
      %v574 = vld [vmem:[%s1 + $0x4f4] sm:$0xf]
      %v575 = vld [vmem:[%s1 + $0x4f8] sm:$0xf]
      %v576 = vld [vmem:[%s1 + $0x4fc] sm:$0xf]
      %v577 = vld [vmem:[%s1 + $0x500] sm:$0xf]
      %v578 = vld [vmem:[%s1 + $0x504] sm:$0xf]
      %v579 = vld [vmem:[%s1 + $0x508] sm:$0xf]
      %v580 = vld [vmem:[%s1 + $0x50c] sm:$0xf]
      %v581 = vld [vmem:[%s1 + $0x510] sm:$0xf]
      %v582 = vld [vmem:[%s1 + $0x514] sm:$0xf]
      %v583 = vld [vmem:[%s1 + $0x518] sm:$0xf]
      %v584 = vld [vmem:[%s1 + $0x51c] sm:$0xf]
      %v585 = vld [vmem:[%s1 + $0x520] sm:$0xf]
      %v586 = vld [vmem:[%s1 + $0x524] sm:$0xf]
      %v587 = vld [vmem:[%s1 + $0x528] sm:$0xf]
      %v588 = vld [vmem:[%s1 + $0x52c] sm:$0xf]
      %v589 = vld [vmem:[%s1 + $0x530] sm:$0xf]
      %v590 = vld [vmem:[%s1 + $0x534] sm:$0xf]
      %v591 = vld [vmem:[%s1 + $0x538] sm:$0xf]
      %v592 = vld [vmem:[%s1 + $0x53c] sm:$0xf]
      %v593 = vld [vmem:[%s1 + $0x540] sm:$0xf]
      %v594 = vld [vmem:[%s1 + $0x544] sm:$0xf]
      %v595 = vld [vmem:[%s1 + $0x548] sm:$0xf]
      %v596 = vld [vmem:[%s1 + $0x54c] sm:$0xf]
      %v597 = vld [vmem:[%s1 + $0x550] sm:$0xf]
      %v598 = vld [vmem:[%s1 + $0x554] sm:$0xf]
      %v599 = vld [vmem:[%s1 + $0x558] sm:$0xf]
      %v600 = vld [vmem:[%s1 + $0x55c] sm:$0xf]
      %v601 = vld [vmem:[%s1 + $0x560] sm:$0xf]
      %v602 = vld [vmem:[%s1 + $0x564] sm:$0xf]
      %v603 = vld [vmem:[%s1 + $0x568] sm:$0xf]
      %v604 = vld [vmem:[%s1 + $0x56c] sm:$0xf]
      %v605 = vld [vmem:[%s1 + $0x570] sm:$0xf]
      %v606 = vld [vmem:[%s1 + $0x574] sm:$0xf]
      %v607 = vld [vmem:[%s1 + $0x578] sm:$0xf]
      %v608 = vld [vmem:[%s1 + $0x57c] sm:$0xf]
      %v609 = vld [vmem:[%s1 + $0x580] sm:$0xf]
      %v610 = vld [vmem:[%s1 + $0x584] sm:$0xf]
      %v611 = vld [vmem:[%s1 + $0x588] sm:$0xf]
      %v612 = vld [vmem:[%s1 + $0x58c] sm:$0xf]
      %v613 = vld [vmem:[%s1 + $0x590] sm:$0xf]
      %v614 = vld [vmem:[%s1 + $0x594] sm:$0xf]
      %v615 = vld [vmem:[%s1 + $0x598] sm:$0xf]
      %v616 = vld [vmem:[%s1 + $0x59c] sm:$0xf]
      %v617 = vld [vmem:[%s1 + $0x5a0] sm:$0xf]
      %v618 = vld [vmem:[%s1 + $0x5a4] sm:$0xf]
      %v619 = vld [vmem:[%s1 + $0x5a8] sm:$0xf]
      %v620 = vld [vmem:[%s1 + $0x5ac] sm:$0xf]
      %v621 = vld [vmem:[%s1 + $0x5b0] sm:$0xf]
      %v622 = vld [vmem:[%s1 + $0x5b4] sm:$0xf]
      %v623 = vld [vmem:[%s1 + $0x5b8] sm:$0xf]
      %v624 = vld [vmem:[%s1 + $0x5bc] sm:$0xf]
      %v625 = vld [vmem:[%s1 + $0x5c0] sm:$0xf]
      %v626 = vld [vmem:[%s1 + $0x5c4] sm:$0xf]
      %v627 = vld [vmem:[%s1 + $0x5c8] sm:$0xf]
      %v628 = vld [vmem:[%s1 + $0x5cc] sm:$0xf]
      %v629 = vld [vmem:[%s1 + $0x5d0] sm:$0xf]
      %v630 = vld [vmem:[%s1 + $0x5d4] sm:$0xf]
      %v631 = vld [vmem:[%s1 + $0x5d8] sm:$0xf]
      %v632 = vld [vmem:[%s1 + $0x5dc] sm:$0xf]
      %v633 = vld [vmem:[%s1 + $0x5e0] sm:$0xf]
      %v634 = vld [vmem:[%s1 + $0x5e4] sm:$0xf]
      %v635 = vld [vmem:[%s1 + $0x5e8] sm:$0xf]
      %v636 = vld [vmem:[%s1 + $0x5ec] sm:$0xf]
      %v637 = vld [vmem:[%s1 + $0x5f0] sm:$0xf]
      %v638 = vld [vmem:[%s1 + $0x5f4] sm:$0xf]
      %v639 = vld [vmem:[%s1 + $0x5f8] sm:$0xf]
      %v640 = vld [vmem:[%s1 + $0x5fc] sm:$0xf]
      %v641 = vld [vmem:[%s1 + $0x600] sm:$0xf]
      %v642 = vld [vmem:[%s1 + $0x604] sm:$0xf]
      %v643 = vld [vmem:[%s1 + $0x608] sm:$0xf]
      %v644 = vld [vmem:[%s1 + $0x60c] sm:$0xf]
      %v645 = vld [vmem:[%s1 + $0x610] sm:$0xf]
      %v646 = vld [vmem:[%s1 + $0x614] sm:$0xf]
      %v647 = vld [vmem:[%s1 + $0x618] sm:$0xf]
      %v648 = vld [vmem:[%s1 + $0x61c] sm:$0xf]
      %v649 = vld [vmem:[%s1 + $0x620] sm:$0xf]
      %v650 = vld [vmem:[%s1 + $0x624] sm:$0xf]
      %v651 = vld [vmem:[%s1 + $0x628] sm:$0xf]
      %v652 = vld [vmem:[%s1 + $0x62c] sm:$0xf]
      %v653 = vld [vmem:[%s1 + $0x630] sm:$0xf]
      %v654 = vld [vmem:[%s1 + $0x634] sm:$0xf]
      %v655 = vld [vmem:[%s1 + $0x638] sm:$0xf]
      %v656 = vld [vmem:[%s1 + $0x63c] sm:$0xf]
      %v657 = vld [vmem:[%s2] sm:$0x1]
      %v659 = vperm.slane %v657, 0
      %v687 = vunpack.c.l.b16 %v231
      %v688 = vunpack.c.h.b16 %v231
      %v689 = vunpack.c.l.b16 %v232
      %v690 = vunpack.c.h.b16 %v232
      %v691 = vunpack.c.l.b16 %v233
      %v692 = vunpack.c.h.b16 %v233
      %v693 = vunpack.c.l.b16 %v234
      %v694 = vunpack.c.h.b16 %v234
      %v695 = vunpack.c.l.b16 %v235
      %v696 = vunpack.c.h.b16 %v235
      %v697 = vunpack.c.l.b16 %v236
      %v698 = vunpack.c.h.b16 %v236
      %v699 = vunpack.c.l.b16 %v237
      %v700 = vunpack.c.h.b16 %v237
      %v701 = vunpack.c.l.b16 %v238
      %v702 = vunpack.c.h.b16 %v238
      %v703 = vunpack.c.l.b16 %v239
      %v704 = vunpack.c.h.b16 %v239
      %v705 = vunpack.c.l.b16 %v240
      %v706 = vunpack.c.h.b16 %v240
      %v707 = vunpack.c.l.b16 %v241
      %v708 = vunpack.c.h.b16 %v241
      %v709 = vunpack.c.l.b16 %v242
      %v710 = vunpack.c.h.b16 %v242
      %v711 = vunpack.c.l.b16 %v243
      %v712 = vunpack.c.l.b16 %v244
      %v713 = vunpack.c.h.b16 %v244
      %v714 = vunpack.c.l.b16 %v245
      %v715 = vunpack.c.h.b16 %v245
      %v716 = vunpack.c.l.b16 %v246
      %v717 = vunpack.c.h.b16 %v246
      %v718 = vunpack.c.l.b16 %v247
      %v719 = vunpack.c.h.b16 %v247
      %v720 = vunpack.c.l.b16 %v248
      %v721 = vunpack.c.h.b16 %v248
      %v722 = vunpack.c.l.b16 %v249
      %v723 = vunpack.c.h.b16 %v249
      %v724 = vunpack.c.l.b16 %v250
      %v725 = vunpack.c.h.b16 %v250
      %v726 = vunpack.c.l.b16 %v251
      %v727 = vunpack.c.h.b16 %v251
      %v728 = vunpack.c.l.b16 %v252
      %v729 = vunpack.c.h.b16 %v252
      %v730 = vunpack.c.l.b16 %v253
      %v731 = vunpack.c.h.b16 %v253
      %v732 = vunpack.c.l.b16 %v254
      %v733 = vunpack.c.h.b16 %v254
      %v734 = vunpack.c.l.b16 %v255
      %v735 = vunpack.c.h.b16 %v255
      %v736 = vunpack.c.l.b16 %v256
      %v737 = vpack.c.b16 %v712, %v687
      %v738 = vpack.c.b16 %v713, %v688
      %v739 = vpack.c.b16 %v714, %v689
      %v740 = vpack.c.b16 %v715, %v690
      %v741 = vpack.c.b16 %v716, %v691
      %v742 = vpack.c.b16 %v717, %v692
      %v743 = vpack.c.b16 %v718, %v693
      %v744 = vpack.c.b16 %v719, %v694
      %v745 = vpack.c.b16 %v720, %v695
      %v746 = vpack.c.b16 %v721, %v696
      %v747 = vpack.c.b16 %v722, %v697
      %v748 = vpack.c.b16 %v723, %v698
      %v749 = vpack.c.b16 %v724, %v699
      %v750 = vpack.c.b16 %v725, %v700
      %v751 = vpack.c.b16 %v726, %v701
      %v752 = vpack.c.b16 %v727, %v702
      %v753 = vpack.c.b16 %v728, %v703
      %v754 = vpack.c.b16 %v729, %v704
      %v755 = vpack.c.b16 %v730, %v705
      %v756 = vpack.c.b16 %v731, %v706
      %v757 = vpack.c.b16 %v732, %v707
      %v758 = vpack.c.b16 %v733, %v708
      %v759 = vpack.c.b16 %v734, %v709
      %v760 = vpack.c.b16 %v735, %v710
      %v761 = vpack.c.b16 %v736, %v711
      %v1187 = vunpack.c.l.b16 %v257
      %v1188 = vunpack.c.l.b16 %v258
      %v1189 = vunpack.c.l.b16 %v259
      %v1190 = vunpack.c.l.b16 %v260
      %v1191 = vunpack.c.l.b16 %v261
      %v1192 = vunpack.c.l.b16 %v262
      %v1193 = vunpack.c.l.b16 %v263
      %v1194 = vunpack.c.l.b16 %v264
      %v1195 = vunpack.c.l.b16 %v265
      %v1196 = vunpack.c.l.b16 %v266
      %v1197 = vunpack.c.l.b16 %v267
      %v1198 = vunpack.c.l.b16 %v268
      %v1199 = vunpack.c.l.b16 %v269
      %v1200 = vunpack.c.l.b16 %v270
      %v1201 = vunpack.c.l.b16 %v271
      %v1202 = vunpack.c.l.b16 %v272
      %v1203 = vunpack.c.l.b16 %v273
      %v1204 = vunpack.c.l.b16 %v274
      %v1205 = vunpack.c.l.b16 %v275
      %v1206 = vunpack.c.l.b16 %v276
      %v1207 = vunpack.c.l.b16 %v277
      %v1208 = vunpack.c.l.b16 %v278
      %v1209 = vunpack.c.l.b16 %v279
      %v1210 = vunpack.c.l.b16 %v280
      %v1211 = vunpack.c.l.b16 %v281
      %v1212 = vunpack.c.l.b16 %v282
      %v1213 = vunpack.c.l.b16 %v283
      %v1214 = vunpack.c.l.b16 %v284
      %v1215 = vunpack.c.l.b16 %v285
      %v1216 = vunpack.c.l.b16 %v286
      %v1217 = vunpack.c.l.b16 %v287
      %v1218 = vunpack.c.l.b16 %v288
      %v1219 = vunpack.c.l.b16 %v289
      %v1220 = vunpack.c.l.b16 %v290
      %v1221 = vunpack.c.l.b16 %v291
      %v1222 = vunpack.c.l.b16 %v292
      %v1223 = vunpack.c.l.b16 %v293
      %v1224 = vunpack.c.l.b16 %v294
      %v1225 = vunpack.c.l.b16 %v295
      %v1226 = vunpack.c.l.b16 %v296
      %v1227 = vunpack.c.l.b16 %v297
      %v1228 = vunpack.c.l.b16 %v298
      %v1229 = vunpack.c.l.b16 %v299
      %v1230 = vunpack.c.l.b16 %v300
      %v1231 = vunpack.c.l.b16 %v301
      %v1232 = vunpack.c.l.b16 %v302
      %v1233 = vunpack.c.l.b16 %v303
      %v1234 = vunpack.c.l.b16 %v304
      %v1235 = vunpack.c.l.b16 %v305
      %v1236 = vunpack.c.l.b16 %v306
      %v1237 = vunpack.c.l.b16 %v307
      %v1238 = vunpack.c.l.b16 %v308
      %v1239 = vunpack.c.l.b16 %v309
      %v1240 = vunpack.c.l.b16 %v310
      %v1241 = vunpack.c.l.b16 %v311
      %v1242 = vunpack.c.l.b16 %v312
      %v1243 = vunpack.c.l.b16 %v313
      %v1244 = vunpack.c.l.b16 %v314
      %v1245 = vunpack.c.l.b16 %v315
      %v1246 = vunpack.c.l.b16 %v316
      %v1247 = vunpack.c.l.b16 %v317
      %v1248 = vunpack.c.l.b16 %v318
      %v1249 = vunpack.c.l.b16 %v319
      %v1250 = vunpack.c.l.b16 %v320
      %v1251 = vunpack.c.l.b16 %v321
      %v1252 = vunpack.c.l.b16 %v322
      %v1253 = vunpack.c.l.b16 %v323
      %v1254 = vunpack.c.l.b16 %v324
      %v1255 = vunpack.c.l.b16 %v325
      %v1256 = vunpack.c.l.b16 %v326
      %v1257 = vunpack.c.l.b16 %v327
      %v1258 = vunpack.c.l.b16 %v328
      %v1259 = vunpack.c.l.b16 %v329
      %v1260 = vunpack.c.l.b16 %v330
      %v1261 = vunpack.c.l.b16 %v331
      %v1262 = vunpack.c.l.b16 %v332
      %v1263 = vunpack.c.l.b16 %v333
      %v1264 = vunpack.c.l.b16 %v334
      %v1265 = vunpack.c.l.b16 %v335
      %v1266 = vunpack.c.l.b16 %v336
      %v1267 = vunpack.c.l.b16 %v337
      %v1268 = vunpack.c.l.b16 %v338
      %v1269 = vunpack.c.l.b16 %v339
      %v1270 = vunpack.c.l.b16 %v340
      %v1271 = vunpack.c.l.b16 %v341
      %v1272 = vunpack.c.l.b16 %v342
      %v1273 = vunpack.c.l.b16 %v343
      %v1274 = vunpack.c.l.b16 %v344
      %v1275 = vunpack.c.l.b16 %v345
      %v1276 = vunpack.c.l.b16 %v346
      %v1277 = vunpack.c.l.b16 %v347
      %v1278 = vunpack.c.l.b16 %v348
      %v1279 = vunpack.c.l.b16 %v349
      %v1280 = vunpack.c.l.b16 %v350
      %v1281 = vunpack.c.l.b16 %v351
      %v1282 = vunpack.c.l.b16 %v352
      %v1283 = vunpack.c.l.b16 %v353
      %v1284 = vunpack.c.l.b16 %v354
      %v1285 = vunpack.c.l.b16 %v355
      %v1286 = vunpack.c.l.b16 %v356
      %v1287 = vunpack.c.l.b16 %v357
      %v1288 = vunpack.c.l.b16 %v358
      %v1289 = vunpack.c.l.b16 %v359
      %v1290 = vunpack.c.l.b16 %v360
      %v1291 = vunpack.c.l.b16 %v361
      %v1292 = vunpack.c.l.b16 %v362
      %v1293 = vunpack.c.l.b16 %v363
      %v1294 = vunpack.c.l.b16 %v364
      %v1295 = vunpack.c.l.b16 %v365
      %v1296 = vunpack.c.l.b16 %v366
      %v1297 = vunpack.c.l.b16 %v367
      %v1298 = vunpack.c.l.b16 %v368
      %v1299 = vunpack.c.l.b16 %v369
      %v1300 = vunpack.c.l.b16 %v370
      %v1301 = vunpack.c.l.b16 %v371
      %v1302 = vunpack.c.l.b16 %v372
      %v1303 = vunpack.c.l.b16 %v373
      %v1304 = vunpack.c.l.b16 %v374
      %v1305 = vunpack.c.l.b16 %v375
      %v1306 = vunpack.c.l.b16 %v376
      %v1307 = vunpack.c.l.b16 %v377
      %v1308 = vunpack.c.l.b16 %v378
      %v1309 = vunpack.c.l.b16 %v379
      %v1310 = vunpack.c.l.b16 %v380
      %v1311 = vunpack.c.l.b16 %v381
      %v1312 = vunpack.c.l.b16 %v382
      %v1313 = vunpack.c.l.b16 %v383
      %v1314 = vunpack.c.l.b16 %v384
      %v1315 = vunpack.c.l.b16 %v385
      %v1316 = vunpack.c.l.b16 %v386
      %v1317 = vunpack.c.l.b16 %v387
      %v1318 = vunpack.c.l.b16 %v388
      %v1319 = vunpack.c.l.b16 %v389
      %v1320 = vunpack.c.l.b16 %v390
      %v1321 = vunpack.c.l.b16 %v391
      %v1322 = vunpack.c.l.b16 %v392
      %v1323 = vunpack.c.l.b16 %v393
      %v1324 = vunpack.c.l.b16 %v394
      %v1325 = vunpack.c.l.b16 %v395
      %v1326 = vunpack.c.l.b16 %v396
      %v1327 = vunpack.c.l.b16 %v397
      %v1328 = vunpack.c.l.b16 %v398
      %v1329 = vunpack.c.l.b16 %v399
      %v1330 = vunpack.c.l.b16 %v400
      %v1331 = vunpack.c.l.b16 %v401
      %v1332 = vunpack.c.l.b16 %v402
      %v1333 = vunpack.c.l.b16 %v403
      %v1334 = vunpack.c.l.b16 %v404
      %v1335 = vunpack.c.l.b16 %v405
      %v1336 = vunpack.c.l.b16 %v406
      %v1337 = vunpack.c.l.b16 %v407
      %v1338 = vunpack.c.l.b16 %v408
      %v1339 = vunpack.c.l.b16 %v409
      %v1340 = vunpack.c.l.b16 %v410
      %v1341 = vunpack.c.l.b16 %v411
      %v1342 = vunpack.c.l.b16 %v412
      %v1343 = vunpack.c.l.b16 %v413
      %v1344 = vunpack.c.l.b16 %v414
      %v1345 = vunpack.c.l.b16 %v415
      %v1346 = vunpack.c.l.b16 %v416
      %v1347 = vunpack.c.l.b16 %v417
      %v1348 = vunpack.c.l.b16 %v418
      %v1349 = vunpack.c.l.b16 %v419
      %v1350 = vunpack.c.l.b16 %v420
      %v1351 = vunpack.c.l.b16 %v421
      %v1352 = vunpack.c.l.b16 %v422
      %v1353 = vunpack.c.l.b16 %v423
      %v1354 = vunpack.c.l.b16 %v424
      %v1355 = vunpack.c.l.b16 %v425
      %v1356 = vunpack.c.l.b16 %v426
      %v1357 = vunpack.c.l.b16 %v427
      %v1358 = vunpack.c.l.b16 %v428
      %v1359 = vunpack.c.l.b16 %v429
      %v1360 = vunpack.c.l.b16 %v430
      %v1361 = vunpack.c.l.b16 %v431
      %v1362 = vunpack.c.l.b16 %v432
      %v1363 = vunpack.c.l.b16 %v433
      %v1364 = vunpack.c.l.b16 %v434
      %v1365 = vunpack.c.l.b16 %v435
      %v1366 = vunpack.c.l.b16 %v436
      %v1367 = vunpack.c.l.b16 %v437
      %v1368 = vunpack.c.l.b16 %v438
      %v1369 = vunpack.c.l.b16 %v439
      %v1370 = vunpack.c.l.b16 %v440
      %v1371 = vunpack.c.l.b16 %v441
      %v1372 = vunpack.c.l.b16 %v442
      %v1373 = vunpack.c.l.b16 %v443
      %v1374 = vunpack.c.l.b16 %v444
      %v1375 = vunpack.c.l.b16 %v445
      %v1376 = vunpack.c.l.b16 %v446
      %v1377 = vunpack.c.l.b16 %v447
      %v1378 = vunpack.c.l.b16 %v448
      %v1379 = vunpack.c.l.b16 %v449
      %v1380 = vunpack.c.l.b16 %v450
      %v1381 = vunpack.c.l.b16 %v451
      %v1382 = vunpack.c.l.b16 %v452
      %v1383 = vunpack.c.l.b16 %v453
      %v1384 = vunpack.c.l.b16 %v454
      %v1385 = vunpack.c.l.b16 %v455
      %v1386 = vunpack.c.l.b16 %v456
      %v1387 = vunpack.c.l.b16 %v457
      %v1388 = vunpack.c.l.b16 %v458
      %v1389 = vunpack.c.l.b16 %v459
      %v1390 = vunpack.c.l.b16 %v460
      %v1391 = vunpack.c.l.b16 %v461
      %v1392 = vunpack.c.l.b16 %v462
      %v1393 = vunpack.c.l.b16 %v463
      %v1394 = vunpack.c.l.b16 %v464
      %v1395 = vunpack.c.l.b16 %v465
      %v1396 = vunpack.c.l.b16 %v466
      %v1397 = vunpack.c.l.b16 %v467
      %v1398 = vunpack.c.l.b16 %v468
      %v1399 = vunpack.c.l.b16 %v469
      %v1400 = vunpack.c.l.b16 %v470
      %v1401 = vunpack.c.l.b16 %v471
      %v1402 = vunpack.c.l.b16 %v472
      %v1403 = vunpack.c.l.b16 %v473
      %v1404 = vunpack.c.l.b16 %v474
      %v1405 = vunpack.c.l.b16 %v475
      %v1406 = vunpack.c.l.b16 %v476
      %v1407 = vunpack.c.l.b16 %v477
      %v1408 = vunpack.c.l.b16 %v478
      %v1409 = vunpack.c.l.b16 %v479
      %v1410 = vunpack.c.l.b16 %v480
      %v1411 = vunpack.c.l.b16 %v481
      %v1412 = vunpack.c.l.b16 %v482
      %v1413 = vunpack.c.l.b16 %v483
      %v1414 = vunpack.c.l.b16 %v484
      %v1415 = vunpack.c.l.b16 %v485
      %v1416 = vunpack.c.l.b16 %v486
      %v1417 = vunpack.c.l.b16 %v487
      %v1418 = vunpack.c.l.b16 %v488
      %v1419 = vunpack.c.l.b16 %v489
      %v1420 = vunpack.c.l.b16 %v490
      %v1421 = vunpack.c.l.b16 %v491
      %v1422 = vunpack.c.l.b16 %v492
      %v1423 = vunpack.c.l.b16 %v493
      %v1424 = vunpack.c.l.b16 %v494
      %v1425 = vunpack.c.l.b16 %v495
      %v1426 = vunpack.c.l.b16 %v496
      %v1427 = vunpack.c.l.b16 %v497
      %v1428 = vunpack.c.l.b16 %v498
      %v1429 = vunpack.c.l.b16 %v499
      %v1430 = vunpack.c.l.b16 %v500
      %v1431 = vunpack.c.l.b16 %v501
      %v1432 = vunpack.c.l.b16 %v502
      %v1433 = vunpack.c.l.b16 %v503
      %v1434 = vunpack.c.l.b16 %v504
      %v1435 = vunpack.c.l.b16 %v505
      %v1436 = vunpack.c.l.b16 %v506
      %v1437 = vunpack.c.l.b16 %v507
      %v1438 = vunpack.c.l.b16 %v508
      %v1439 = vunpack.c.l.b16 %v509
      %v1440 = vunpack.c.l.b16 %v510
      %v1441 = vunpack.c.l.b16 %v511
      %v1442 = vunpack.c.l.b16 %v512
      %v1443 = vunpack.c.l.b16 %v513
      %v1444 = vunpack.c.l.b16 %v514
      %v1445 = vunpack.c.l.b16 %v515
      %v1446 = vunpack.c.l.b16 %v516
      %v1447 = vunpack.c.l.b16 %v517
      %v1448 = vunpack.c.l.b16 %v518
      %v1449 = vunpack.c.l.b16 %v519
      %v1450 = vunpack.c.l.b16 %v520
      %v1451 = vunpack.c.l.b16 %v521
      %v1452 = vunpack.c.l.b16 %v522
      %v1453 = vunpack.c.l.b16 %v523
      %v1454 = vunpack.c.l.b16 %v524
      %v1455 = vunpack.c.l.b16 %v525
      %v1456 = vunpack.c.l.b16 %v526
      %v1457 = vunpack.c.l.b16 %v527
      %v1458 = vunpack.c.l.b16 %v528
      %v1459 = vunpack.c.l.b16 %v529
      %v1460 = vunpack.c.l.b16 %v530
      %v1461 = vunpack.c.l.b16 %v531
      %v1462 = vunpack.c.l.b16 %v532
      %v1463 = vunpack.c.l.b16 %v533
      %v1464 = vunpack.c.l.b16 %v534
      %v1465 = vunpack.c.l.b16 %v535
      %v1466 = vunpack.c.l.b16 %v536
      %v1467 = vunpack.c.l.b16 %v537
      %v1468 = vunpack.c.l.b16 %v538
      %v1469 = vunpack.c.l.b16 %v539
      %v1470 = vunpack.c.l.b16 %v540
      %v1471 = vunpack.c.l.b16 %v541
      %v1472 = vunpack.c.l.b16 %v542
      %v1473 = vunpack.c.l.b16 %v543
      %v1474 = vunpack.c.l.b16 %v544
      %v1475 = vunpack.c.l.b16 %v545
      %v1476 = vunpack.c.l.b16 %v546
      %v1477 = vunpack.c.l.b16 %v547
      %v1478 = vunpack.c.l.b16 %v548
      %v1479 = vunpack.c.l.b16 %v549
      %v1480 = vunpack.c.l.b16 %v550
      %v1481 = vunpack.c.l.b16 %v551
      %v1482 = vunpack.c.l.b16 %v552
      %v1483 = vunpack.c.l.b16 %v553
      %v1484 = vunpack.c.l.b16 %v554
      %v1485 = vunpack.c.l.b16 %v555
      %v1486 = vunpack.c.l.b16 %v556
      %v1487 = vunpack.c.l.b16 %v557
      %v1488 = vunpack.c.l.b16 %v558
      %v1489 = vunpack.c.l.b16 %v559
      %v1490 = vunpack.c.l.b16 %v560
      %v1491 = vunpack.c.l.b16 %v561
      %v1492 = vunpack.c.l.b16 %v562
      %v1493 = vunpack.c.l.b16 %v563
      %v1494 = vunpack.c.l.b16 %v564
      %v1495 = vunpack.c.l.b16 %v565
      %v1496 = vunpack.c.l.b16 %v566
      %v1497 = vunpack.c.l.b16 %v567
      %v1498 = vunpack.c.l.b16 %v568
      %v1499 = vunpack.c.l.b16 %v569
      %v1500 = vunpack.c.l.b16 %v570
      %v1501 = vunpack.c.l.b16 %v571
      %v1502 = vunpack.c.l.b16 %v572
      %v1503 = vunpack.c.l.b16 %v573
      %v1504 = vunpack.c.l.b16 %v574
      %v1505 = vunpack.c.l.b16 %v575
      %v1506 = vunpack.c.l.b16 %v576
      %v1507 = vunpack.c.l.b16 %v577
      %v1508 = vunpack.c.l.b16 %v578
      %v1509 = vunpack.c.l.b16 %v579
      %v1510 = vunpack.c.l.b16 %v580
      %v1511 = vunpack.c.l.b16 %v581
      %v1512 = vunpack.c.l.b16 %v582
      %v1513 = vunpack.c.l.b16 %v583
      %v1514 = vunpack.c.l.b16 %v584
      %v1515 = vunpack.c.l.b16 %v585
      %v1516 = vunpack.c.l.b16 %v586
      %v1517 = vunpack.c.l.b16 %v587
      %v1518 = vunpack.c.l.b16 %v588
      %v1519 = vunpack.c.l.b16 %v589
      %v1520 = vunpack.c.l.b16 %v590
      %v1521 = vunpack.c.l.b16 %v591
      %v1522 = vunpack.c.l.b16 %v592
      %v1523 = vunpack.c.l.b16 %v593
      %v1524 = vunpack.c.l.b16 %v594
      %v1525 = vunpack.c.l.b16 %v595
      %v1526 = vunpack.c.l.b16 %v596
      %v1527 = vunpack.c.l.b16 %v597
      %v1528 = vunpack.c.l.b16 %v598
      %v1529 = vunpack.c.l.b16 %v599
      %v1530 = vunpack.c.l.b16 %v600
      %v1531 = vunpack.c.l.b16 %v601
      %v1532 = vunpack.c.l.b16 %v602
      %v1533 = vunpack.c.l.b16 %v603
      %v1534 = vunpack.c.l.b16 %v604
      %v1535 = vunpack.c.l.b16 %v605
      %v1536 = vunpack.c.l.b16 %v606
      %v1537 = vunpack.c.l.b16 %v607
      %v1538 = vunpack.c.l.b16 %v608
      %v1539 = vunpack.c.l.b16 %v609
      %v1540 = vunpack.c.l.b16 %v610
      %v1541 = vunpack.c.l.b16 %v611
      %v1542 = vunpack.c.l.b16 %v612
      %v1543 = vunpack.c.l.b16 %v613
      %v1544 = vunpack.c.l.b16 %v614
      %v1545 = vunpack.c.l.b16 %v615
      %v1546 = vunpack.c.l.b16 %v616
      %v1547 = vunpack.c.l.b16 %v617
      %v1548 = vunpack.c.l.b16 %v618
      %v1549 = vunpack.c.l.b16 %v619
      %v1550 = vunpack.c.l.b16 %v620
      %v1551 = vunpack.c.l.b16 %v621
      %v1552 = vunpack.c.l.b16 %v622
      %v1553 = vunpack.c.l.b16 %v623
      %v1554 = vunpack.c.l.b16 %v624
      %v1555 = vunpack.c.l.b16 %v625
      %v1556 = vunpack.c.l.b16 %v626
      %v1557 = vunpack.c.l.b16 %v627
      %v1558 = vunpack.c.l.b16 %v628
      %v1559 = vunpack.c.l.b16 %v629
      %v1560 = vunpack.c.l.b16 %v630
      %v1561 = vunpack.c.l.b16 %v631
      %v1562 = vunpack.c.l.b16 %v632
      %v1563 = vunpack.c.l.b16 %v633
      %v1564 = vunpack.c.l.b16 %v634
      %v1565 = vunpack.c.l.b16 %v635
      %v1566 = vunpack.c.l.b16 %v636
      %v1567 = vunpack.c.l.b16 %v637
      %v1568 = vunpack.c.l.b16 %v638
      %v1569 = vunpack.c.l.b16 %v639
      %v1570 = vunpack.c.l.b16 %v640
      %v1571 = vunpack.c.l.b16 %v641
      %v1572 = vunpack.c.l.b16 %v642
      %v1573 = vunpack.c.l.b16 %v643
      %v1574 = vunpack.c.l.b16 %v644
      %v1575 = vunpack.c.l.b16 %v645
      %v1576 = vunpack.c.l.b16 %v646
      %v1577 = vunpack.c.l.b16 %v647
      %v1578 = vunpack.c.l.b16 %v648
      %v1579 = vunpack.c.l.b16 %v649
      %v1580 = vunpack.c.l.b16 %v650
      %v1581 = vunpack.c.l.b16 %v651
      %v1582 = vunpack.c.l.b16 %v652
      %v1583 = vunpack.c.l.b16 %v653
      %v1584 = vunpack.c.l.b16 %v654
      %v1585 = vunpack.c.l.b16 %v655
      %v1586 = vunpack.c.l.b16 %v656
      %v1587 = vpack.c.b16 %v1188, %v1187
      %v1588 = vpack.c.b16 %v1190, %v1189
      %v1589 = vpack.c.b16 %v1192, %v1191
      %v1590 = vpack.c.b16 %v1194, %v1193
      %v1591 = vpack.c.b16 %v1196, %v1195
      %v1592 = vpack.c.b16 %v1198, %v1197
      %v1593 = vpack.c.b16 %v1200, %v1199
      %v1594 = vpack.c.b16 %v1202, %v1201
      %v1595 = vpack.c.b16 %v1204, %v1203
      %v1596 = vpack.c.b16 %v1206, %v1205
      %v1597 = vpack.c.b16 %v1208, %v1207
      %v1598 = vpack.c.b16 %v1210, %v1209
      %v1599 = vpack.c.b16 %v1212, %v1211
      %v1600 = vpack.c.b16 %v1214, %v1213
      %v1601 = vpack.c.b16 %v1216, %v1215
      %v1602 = vpack.c.b16 %v1218, %v1217
      %v1603 = vpack.c.b16 %v1220, %v1219
      %v1604 = vpack.c.b16 %v1222, %v1221
      %v1605 = vpack.c.b16 %v1224, %v1223
      %v1606 = vpack.c.b16 %v1226, %v1225
      %v1607 = vpack.c.b16 %v1228, %v1227
      %v1608 = vpack.c.b16 %v1230, %v1229
      %v1609 = vpack.c.b16 %v1232, %v1231
      %v1610 = vpack.c.b16 %v1234, %v1233
      %v1611 = vpack.c.b16 %v1236, %v1235
      %v1612 = vpack.c.b16 %v1238, %v1237
      %v1613 = vpack.c.b16 %v1240, %v1239
      %v1614 = vpack.c.b16 %v1242, %v1241
      %v1615 = vpack.c.b16 %v1244, %v1243
      %v1616 = vpack.c.b16 %v1246, %v1245
      %v1617 = vpack.c.b16 %v1248, %v1247
      %v1618 = vpack.c.b16 %v1250, %v1249
      %v1619 = vpack.c.b16 %v1252, %v1251
      %v1620 = vpack.c.b16 %v1254, %v1253
      %v1621 = vpack.c.b16 %v1256, %v1255
      %v1622 = vpack.c.b16 %v1258, %v1257
      %v1623 = vpack.c.b16 %v1260, %v1259
      %v1624 = vpack.c.b16 %v1262, %v1261
      %v1625 = vpack.c.b16 %v1264, %v1263
      %v1626 = vpack.c.b16 %v1266, %v1265
      %v1627 = vpack.c.b16 %v1268, %v1267
      %v1628 = vpack.c.b16 %v1270, %v1269
      %v1629 = vpack.c.b16 %v1272, %v1271
      %v1630 = vpack.c.b16 %v1274, %v1273
      %v1631 = vpack.c.b16 %v1276, %v1275
      %v1632 = vpack.c.b16 %v1278, %v1277
      %v1633 = vpack.c.b16 %v1280, %v1279
      %v1634 = vpack.c.b16 %v1282, %v1281
      %v1635 = vpack.c.b16 %v1284, %v1283
      %v1636 = vpack.c.b16 %v1286, %v1285
      %v1637 = vpack.c.b16 %v1288, %v1287
      %v1638 = vpack.c.b16 %v1290, %v1289
      %v1639 = vpack.c.b16 %v1292, %v1291
      %v1640 = vpack.c.b16 %v1294, %v1293
      %v1641 = vpack.c.b16 %v1296, %v1295
      %v1642 = vpack.c.b16 %v1298, %v1297
      %v1643 = vpack.c.b16 %v1300, %v1299
      %v1644 = vpack.c.b16 %v1302, %v1301
      %v1645 = vpack.c.b16 %v1304, %v1303
      %v1646 = vpack.c.b16 %v1306, %v1305
      %v1647 = vpack.c.b16 %v1308, %v1307
      %v1648 = vpack.c.b16 %v1310, %v1309
      %v1649 = vpack.c.b16 %v1312, %v1311
      %v1650 = vpack.c.b16 %v1314, %v1313
      %v1651 = vpack.c.b16 %v1316, %v1315
      %v1652 = vpack.c.b16 %v1318, %v1317
      %v1653 = vpack.c.b16 %v1320, %v1319
      %v1654 = vpack.c.b16 %v1322, %v1321
      %v1655 = vpack.c.b16 %v1324, %v1323
      %v1656 = vpack.c.b16 %v1326, %v1325
      %v1657 = vpack.c.b16 %v1328, %v1327
      %v1658 = vpack.c.b16 %v1330, %v1329
      %v1659 = vpack.c.b16 %v1332, %v1331
      %v1660 = vpack.c.b16 %v1334, %v1333
      %v1661 = vpack.c.b16 %v1336, %v1335
      %v1662 = vpack.c.b16 %v1338, %v1337
      %v1663 = vpack.c.b16 %v1340, %v1339
      %v1664 = vpack.c.b16 %v1342, %v1341
      %v1665 = vpack.c.b16 %v1344, %v1343
      %v1666 = vpack.c.b16 %v1346, %v1345
      %v1667 = vpack.c.b16 %v1348, %v1347
      %v1668 = vpack.c.b16 %v1350, %v1349
      %v1669 = vpack.c.b16 %v1352, %v1351
      %v1670 = vpack.c.b16 %v1354, %v1353
      %v1671 = vpack.c.b16 %v1356, %v1355
      %v1672 = vpack.c.b16 %v1358, %v1357
      %v1673 = vpack.c.b16 %v1360, %v1359
      %v1674 = vpack.c.b16 %v1362, %v1361
      %v1675 = vpack.c.b16 %v1364, %v1363
      %v1676 = vpack.c.b16 %v1366, %v1365
      %v1677 = vpack.c.b16 %v1368, %v1367
      %v1678 = vpack.c.b16 %v1370, %v1369
      %v1679 = vpack.c.b16 %v1372, %v1371
      %v1680 = vpack.c.b16 %v1374, %v1373
      %v1681 = vpack.c.b16 %v1376, %v1375
      %v1682 = vpack.c.b16 %v1378, %v1377
      %v1683 = vpack.c.b16 %v1380, %v1379
      %v1684 = vpack.c.b16 %v1382, %v1381
      %v1685 = vpack.c.b16 %v1384, %v1383
      %v1686 = vpack.c.b16 %v1386, %v1385
      %v1687 = vpack.c.b16 %v1388, %v1387
      %v1688 = vpack.c.b16 %v1390, %v1389
      %v1689 = vpack.c.b16 %v1392, %v1391
      %v1690 = vpack.c.b16 %v1394, %v1393
      %v1691 = vpack.c.b16 %v1396, %v1395
      %v1692 = vpack.c.b16 %v1398, %v1397
      %v1693 = vpack.c.b16 %v1400, %v1399
      %v1694 = vpack.c.b16 %v1402, %v1401
      %v1695 = vpack.c.b16 %v1404, %v1403
      %v1696 = vpack.c.b16 %v1406, %v1405
      %v1697 = vpack.c.b16 %v1408, %v1407
      %v1698 = vpack.c.b16 %v1410, %v1409
      %v1699 = vpack.c.b16 %v1412, %v1411
      %v1700 = vpack.c.b16 %v1414, %v1413
      %v1701 = vpack.c.b16 %v1416, %v1415
      %v1702 = vpack.c.b16 %v1418, %v1417
      %v1703 = vpack.c.b16 %v1420, %v1419
      %v1704 = vpack.c.b16 %v1422, %v1421
      %v1705 = vpack.c.b16 %v1424, %v1423
      %v1706 = vpack.c.b16 %v1426, %v1425
      %v1707 = vpack.c.b16 %v1428, %v1427
      %v1708 = vpack.c.b16 %v1430, %v1429
      %v1709 = vpack.c.b16 %v1432, %v1431
      %v1710 = vpack.c.b16 %v1434, %v1433
      %v1711 = vpack.c.b16 %v1436, %v1435
      %v1712 = vpack.c.b16 %v1438, %v1437
      %v1713 = vpack.c.b16 %v1440, %v1439
      %v1714 = vpack.c.b16 %v1442, %v1441
      %v1715 = vpack.c.b16 %v1444, %v1443
      %v1716 = vpack.c.b16 %v1446, %v1445
      %v1717 = vpack.c.b16 %v1448, %v1447
      %v1718 = vpack.c.b16 %v1450, %v1449
      %v1719 = vpack.c.b16 %v1452, %v1451
      %v1720 = vpack.c.b16 %v1454, %v1453
      %v1721 = vpack.c.b16 %v1456, %v1455
      %v1722 = vpack.c.b16 %v1458, %v1457
      %v1723 = vpack.c.b16 %v1460, %v1459
      %v1724 = vpack.c.b16 %v1462, %v1461
      %v1725 = vpack.c.b16 %v1464, %v1463
      %v1726 = vpack.c.b16 %v1466, %v1465
      %v1727 = vpack.c.b16 %v1468, %v1467
      %v1728 = vpack.c.b16 %v1470, %v1469
      %v1729 = vpack.c.b16 %v1472, %v1471
      %v1730 = vpack.c.b16 %v1474, %v1473
      %v1731 = vpack.c.b16 %v1476, %v1475
      %v1732 = vpack.c.b16 %v1478, %v1477
      %v1733 = vpack.c.b16 %v1480, %v1479
      %v1734 = vpack.c.b16 %v1482, %v1481
      %v1735 = vpack.c.b16 %v1484, %v1483
      %v1736 = vpack.c.b16 %v1486, %v1485
      %v1737 = vpack.c.b16 %v1488, %v1487
      %v1738 = vpack.c.b16 %v1490, %v1489
      %v1739 = vpack.c.b16 %v1492, %v1491
      %v1740 = vpack.c.b16 %v1494, %v1493
      %v1741 = vpack.c.b16 %v1496, %v1495
      %v1742 = vpack.c.b16 %v1498, %v1497
      %v1743 = vpack.c.b16 %v1500, %v1499
      %v1744 = vpack.c.b16 %v1502, %v1501
      %v1745 = vpack.c.b16 %v1504, %v1503
      %v1746 = vpack.c.b16 %v1506, %v1505
      %v1747 = vpack.c.b16 %v1508, %v1507
      %v1748 = vpack.c.b16 %v1510, %v1509
      %v1749 = vpack.c.b16 %v1512, %v1511
      %v1750 = vpack.c.b16 %v1514, %v1513
      %v1751 = vpack.c.b16 %v1516, %v1515
      %v1752 = vpack.c.b16 %v1518, %v1517
      %v1753 = vpack.c.b16 %v1520, %v1519
      %v1754 = vpack.c.b16 %v1522, %v1521
      %v1755 = vpack.c.b16 %v1524, %v1523
      %v1756 = vpack.c.b16 %v1526, %v1525
      %v1757 = vpack.c.b16 %v1528, %v1527
      %v1758 = vpack.c.b16 %v1530, %v1529
      %v1759 = vpack.c.b16 %v1532, %v1531
      %v1760 = vpack.c.b16 %v1534, %v1533
      %v1761 = vpack.c.b16 %v1536, %v1535
      %v1762 = vpack.c.b16 %v1538, %v1537
      %v1763 = vpack.c.b16 %v1540, %v1539
      %v1764 = vpack.c.b16 %v1542, %v1541
      %v1765 = vpack.c.b16 %v1544, %v1543
      %v1766 = vpack.c.b16 %v1546, %v1545
      %v1767 = vpack.c.b16 %v1548, %v1547
      %v1768 = vpack.c.b16 %v1550, %v1549
      %v1769 = vpack.c.b16 %v1552, %v1551
      %v1770 = vpack.c.b16 %v1554, %v1553
      %v1771 = vpack.c.b16 %v1556, %v1555
      %v1772 = vpack.c.b16 %v1558, %v1557
      %v1773 = vpack.c.b16 %v1560, %v1559
      %v1774 = vpack.c.b16 %v1562, %v1561
      %v1775 = vpack.c.b16 %v1564, %v1563
      %v1776 = vpack.c.b16 %v1566, %v1565
      %v1777 = vpack.c.b16 %v1568, %v1567
      %v1778 = vpack.c.b16 %v1570, %v1569
      %v1779 = vpack.c.b16 %v1572, %v1571
      %v1780 = vpack.c.b16 %v1574, %v1573
      %v1781 = vpack.c.b16 %v1576, %v1575
      %v1782 = vpack.c.b16 %v1578, %v1577
      %v1783 = vpack.c.b16 %v1580, %v1579
      %v1784 = vpack.c.b16 %v1582, %v1581
      %v1785 = vpack.c.b16 %v1584, %v1583
      %v1786 = vpack.c.b16 %v1586, %v1585
      %1987 = vmatpush.bf16.msra.mxu0 %v1594
      %1988 = vmatpush.bf16.msra.mxu0 %v1593
      %1989 = vmatpush.bf16.msra.mxu0 %v1592
      %1990 = vmatpush.bf16.msra.mxu0 %v1591
      %1991 = vmatpush.bf16.msra.mxu0 %v1590
      %1992 = vmatpush.bf16.msra.mxu0 %v1589
      %1993 = vmatpush.bf16.msra.mxu0 %v1588
      %1994 = vmatpush.bf16.msra.mxu0 %v1587
      %1995 = vmatmul.bf16.gmra.mxu0 %v737
      %v1996 = vpop.f32.mrf.mxu0
      %v1997 = vadd.f32 %v659, %v1996
      %v1998 = vpop.f32.mrf.mxu0
      %v1999 = vadd.f32 %v659, %v1998
      %2000 = vdwg.mxu0
      %2001 = vmatpush.bf16.msra.mxu0 %v1602
      %2002 = vmatpush.bf16.msra.mxu0 %v1601
      %2003 = vmatpush.bf16.msra.mxu0 %v1600
      %2004 = vmatpush.bf16.msra.mxu0 %v1599
      %2005 = vmatpush.bf16.msra.mxu0 %v1598
      %2006 = vmatpush.bf16.msra.mxu0 %v1597
      %2007 = vmatpush.bf16.msra.mxu0 %v1596
      %2008 = vmatpush.bf16.msra.mxu0 %v1595
      %2009 = vmatmul.bf16.gmra.mxu0 %v738
      %v2010 = vpop.f32.mrf.mxu0
      %v2011 = vadd.f32 %v1997, %v2010
      %v2012 = vpop.f32.mrf.mxu0
      %v2013 = vadd.f32 %v1999, %v2012
      %2014 = vdwg.mxu0
      %2015 = vmatpush.bf16.msra.mxu0 %v1610
      %2016 = vmatpush.bf16.msra.mxu0 %v1609
      %2017 = vmatpush.bf16.msra.mxu0 %v1608
      %2018 = vmatpush.bf16.msra.mxu0 %v1607
      %2019 = vmatpush.bf16.msra.mxu0 %v1606
      %2020 = vmatpush.bf16.msra.mxu0 %v1605
      %2021 = vmatpush.bf16.msra.mxu0 %v1604
      %2022 = vmatpush.bf16.msra.mxu0 %v1603
      %2023 = vmatmul.bf16.gmra.mxu0 %v739
      %v2024 = vpop.f32.mrf.mxu0
      %v2025 = vadd.f32 %v2011, %v2024
      %v2026 = vpop.f32.mrf.mxu0
      %v2027 = vadd.f32 %v2013, %v2026
      %2028 = vdwg.mxu0
      %2029 = vmatpush.bf16.msra.mxu0 %v1618
      %2030 = vmatpush.bf16.msra.mxu0 %v1617
      %2031 = vmatpush.bf16.msra.mxu0 %v1616
      %2032 = vmatpush.bf16.msra.mxu0 %v1615
      %2033 = vmatpush.bf16.msra.mxu0 %v1614
      %2034 = vmatpush.bf16.msra.mxu0 %v1613
      %2035 = vmatpush.bf16.msra.mxu0 %v1612
      %2036 = vmatpush.bf16.msra.mxu0 %v1611
      %2037 = vmatmul.bf16.gmra.mxu0 %v740
      %v2038 = vpop.f32.mrf.mxu0
      %v2039 = vadd.f32 %v2025, %v2038
      %v2040 = vpop.f32.mrf.mxu0
      %v2041 = vadd.f32 %v2027, %v2040
      %2042 = vdwg.mxu0
      %2043 = vmatpush.bf16.msra.mxu0 %v1626
      %2044 = vmatpush.bf16.msra.mxu0 %v1625
      %2045 = vmatpush.bf16.msra.mxu0 %v1624
      %2046 = vmatpush.bf16.msra.mxu0 %v1623
      %2047 = vmatpush.bf16.msra.mxu0 %v1622
      %2048 = vmatpush.bf16.msra.mxu0 %v1621
      %2049 = vmatpush.bf16.msra.mxu0 %v1620
      %2050 = vmatpush.bf16.msra.mxu0 %v1619
      %2051 = vmatmul.bf16.gmra.mxu0 %v741
      %v2052 = vpop.f32.mrf.mxu0
      %v2053 = vadd.f32 %v2039, %v2052
      %v2054 = vpop.f32.mrf.mxu0
      %v2055 = vadd.f32 %v2041, %v2054
      %2056 = vdwg.mxu0
      %2057 = vmatpush.bf16.msra.mxu0 %v1634
      %2058 = vmatpush.bf16.msra.mxu0 %v1633
      %2059 = vmatpush.bf16.msra.mxu0 %v1632
      %2060 = vmatpush.bf16.msra.mxu0 %v1631
      %2061 = vmatpush.bf16.msra.mxu0 %v1630
      %2062 = vmatpush.bf16.msra.mxu0 %v1629
      %2063 = vmatpush.bf16.msra.mxu0 %v1628
      %2064 = vmatpush.bf16.msra.mxu0 %v1627
      %2065 = vmatmul.bf16.gmra.mxu0 %v742
      %v2066 = vpop.f32.mrf.mxu0
      %v2067 = vadd.f32 %v2053, %v2066
      %v2068 = vpop.f32.mrf.mxu0
      %v2069 = vadd.f32 %v2055, %v2068
      %2070 = vdwg.mxu0
      %2071 = vmatpush.bf16.msra.mxu0 %v1642
      %2072 = vmatpush.bf16.msra.mxu0 %v1641
      %2073 = vmatpush.bf16.msra.mxu0 %v1640
      %2074 = vmatpush.bf16.msra.mxu0 %v1639
      %2075 = vmatpush.bf16.msra.mxu0 %v1638
      %2076 = vmatpush.bf16.msra.mxu0 %v1637
      %2077 = vmatpush.bf16.msra.mxu0 %v1636
      %2078 = vmatpush.bf16.msra.mxu0 %v1635
      %2079 = vmatmul.bf16.gmra.mxu0 %v743
      %v2080 = vpop.f32.mrf.mxu0
      %v2081 = vadd.f32 %v2067, %v2080
      %v2082 = vpop.f32.mrf.mxu0
      %v2083 = vadd.f32 %v2069, %v2082
      %2084 = vdwg.mxu0
      %2085 = vmatpush.bf16.msra.mxu0 %v1650
      %2086 = vmatpush.bf16.msra.mxu0 %v1649
      %2087 = vmatpush.bf16.msra.mxu0 %v1648
      %2088 = vmatpush.bf16.msra.mxu0 %v1647
      %2089 = vmatpush.bf16.msra.mxu0 %v1646
      %2090 = vmatpush.bf16.msra.mxu0 %v1645
      %2091 = vmatpush.bf16.msra.mxu0 %v1644
      %2092 = vmatpush.bf16.msra.mxu0 %v1643
      %2093 = vmatmul.bf16.gmra.mxu0 %v744
      %v2094 = vpop.f32.mrf.mxu0
      %v2095 = vadd.f32 %v2081, %v2094
      %v2096 = vpop.f32.mrf.mxu0
      %v2097 = vadd.f32 %v2083, %v2096
      %2098 = vdwg.mxu0
      %2099 = vmatpush.bf16.msra.mxu0 %v1658
      %2100 = vmatpush.bf16.msra.mxu0 %v1657
      %2101 = vmatpush.bf16.msra.mxu0 %v1656
      %2102 = vmatpush.bf16.msra.mxu0 %v1655
      %2103 = vmatpush.bf16.msra.mxu0 %v1654
      %2104 = vmatpush.bf16.msra.mxu0 %v1653
      %2105 = vmatpush.bf16.msra.mxu0 %v1652
      %2106 = vmatpush.bf16.msra.mxu0 %v1651
      %2107 = vmatmul.bf16.gmra.mxu0 %v745
      %v2108 = vpop.f32.mrf.mxu0
      %v2109 = vadd.f32 %v2095, %v2108
      %v2110 = vpop.f32.mrf.mxu0
      %v2111 = vadd.f32 %v2097, %v2110
      %2112 = vdwg.mxu0
      %2113 = vmatpush.bf16.msra.mxu0 %v1666
      %2114 = vmatpush.bf16.msra.mxu0 %v1665
      %2115 = vmatpush.bf16.msra.mxu0 %v1664
      %2116 = vmatpush.bf16.msra.mxu0 %v1663
      %2117 = vmatpush.bf16.msra.mxu0 %v1662
      %2118 = vmatpush.bf16.msra.mxu0 %v1661
      %2119 = vmatpush.bf16.msra.mxu0 %v1660
      %2120 = vmatpush.bf16.msra.mxu0 %v1659
      %2121 = vmatmul.bf16.gmra.mxu0 %v746
      %v2122 = vpop.f32.mrf.mxu0
      %v2123 = vadd.f32 %v2109, %v2122
      %v2124 = vpop.f32.mrf.mxu0
      %v2125 = vadd.f32 %v2111, %v2124
      %2126 = vdwg.mxu0
      %2127 = vmatpush.bf16.msra.mxu0 %v1674
      %2128 = vmatpush.bf16.msra.mxu0 %v1673
      %2129 = vmatpush.bf16.msra.mxu0 %v1672
      %2130 = vmatpush.bf16.msra.mxu0 %v1671
      %2131 = vmatpush.bf16.msra.mxu0 %v1670
      %2132 = vmatpush.bf16.msra.mxu0 %v1669
      %2133 = vmatpush.bf16.msra.mxu0 %v1668
      %2134 = vmatpush.bf16.msra.mxu0 %v1667
      %2135 = vmatmul.bf16.gmra.mxu0 %v747
      %v2136 = vpop.f32.mrf.mxu0
      %v2137 = vadd.f32 %v2123, %v2136
      %v2138 = vpop.f32.mrf.mxu0
      %v2139 = vadd.f32 %v2125, %v2138
      %2140 = vdwg.mxu0
      %2141 = vmatpush.bf16.msra.mxu0 %v1682
      %2142 = vmatpush.bf16.msra.mxu0 %v1681
      %2143 = vmatpush.bf16.msra.mxu0 %v1680
      %2144 = vmatpush.bf16.msra.mxu0 %v1679
      %2145 = vmatpush.bf16.msra.mxu0 %v1678
      %2146 = vmatpush.bf16.msra.mxu0 %v1677
      %2147 = vmatpush.bf16.msra.mxu0 %v1676
      %2148 = vmatpush.bf16.msra.mxu0 %v1675
      %2149 = vmatmul.bf16.gmra.mxu0 %v748
      %v2150 = vpop.f32.mrf.mxu0
      %v2151 = vadd.f32 %v2137, %v2150
      %v2152 = vpop.f32.mrf.mxu0
      %v2153 = vadd.f32 %v2139, %v2152
      %2154 = vdwg.mxu0
      %2155 = vmatpush.bf16.msra.mxu0 %v1690
      %2156 = vmatpush.bf16.msra.mxu0 %v1689
      %2157 = vmatpush.bf16.msra.mxu0 %v1688
      %2158 = vmatpush.bf16.msra.mxu0 %v1687
      %2159 = vmatpush.bf16.msra.mxu0 %v1686
      %2160 = vmatpush.bf16.msra.mxu0 %v1685
      %2161 = vmatpush.bf16.msra.mxu0 %v1684
      %2162 = vmatpush.bf16.msra.mxu0 %v1683
      %2163 = vmatmul.bf16.gmra.mxu0 %v749
      %v2164 = vpop.f32.mrf.mxu0
      %v2165 = vadd.f32 %v2151, %v2164
      %v2166 = vpop.f32.mrf.mxu0
      %v2167 = vadd.f32 %v2153, %v2166
      %2168 = vdwg.mxu0
      %2169 = vmatpush.bf16.msra.mxu0 %v1698
      %2170 = vmatpush.bf16.msra.mxu0 %v1697
      %2171 = vmatpush.bf16.msra.mxu0 %v1696
      %2172 = vmatpush.bf16.msra.mxu0 %v1695
      %2173 = vmatpush.bf16.msra.mxu0 %v1694
      %2174 = vmatpush.bf16.msra.mxu0 %v1693
      %2175 = vmatpush.bf16.msra.mxu0 %v1692
      %2176 = vmatpush.bf16.msra.mxu0 %v1691
      %2177 = vmatmul.bf16.gmra.mxu0 %v750
      %v2178 = vpop.f32.mrf.mxu0
      %v2179 = vadd.f32 %v2165, %v2178
      %v2180 = vpop.f32.mrf.mxu0
      %v2181 = vadd.f32 %v2167, %v2180
      %2182 = vdwg.mxu0
      %2183 = vmatpush.bf16.msra.mxu0 %v1706
      %2184 = vmatpush.bf16.msra.mxu0 %v1705
      %2185 = vmatpush.bf16.msra.mxu0 %v1704
      %2186 = vmatpush.bf16.msra.mxu0 %v1703
      %2187 = vmatpush.bf16.msra.mxu0 %v1702
      %2188 = vmatpush.bf16.msra.mxu0 %v1701
      %2189 = vmatpush.bf16.msra.mxu0 %v1700
      %2190 = vmatpush.bf16.msra.mxu0 %v1699
      %2191 = vmatmul.bf16.gmra.mxu0 %v751
      %v2192 = vpop.f32.mrf.mxu0
      %v2193 = vadd.f32 %v2179, %v2192
      %v2194 = vpop.f32.mrf.mxu0
      %v2195 = vadd.f32 %v2181, %v2194
      %2196 = vdwg.mxu0
      %2197 = vmatpush.bf16.msra.mxu0 %v1714
      %2198 = vmatpush.bf16.msra.mxu0 %v1713
      %2199 = vmatpush.bf16.msra.mxu0 %v1712
      %2200 = vmatpush.bf16.msra.mxu0 %v1711
      %2201 = vmatpush.bf16.msra.mxu0 %v1710
      %2202 = vmatpush.bf16.msra.mxu0 %v1709
      %2203 = vmatpush.bf16.msra.mxu0 %v1708
      %2204 = vmatpush.bf16.msra.mxu0 %v1707
      %2205 = vmatmul.bf16.gmra.mxu0 %v752
      %v2206 = vpop.f32.mrf.mxu0
      %v2207 = vadd.f32 %v2193, %v2206
      %v2208 = vpop.f32.mrf.mxu0
      %v2209 = vadd.f32 %v2195, %v2208
      %2210 = vdwg.mxu0
      %2211 = vmatpush.bf16.msra.mxu0 %v1722
      %2212 = vmatpush.bf16.msra.mxu0 %v1721
      %2213 = vmatpush.bf16.msra.mxu0 %v1720
      %2214 = vmatpush.bf16.msra.mxu0 %v1719
      %2215 = vmatpush.bf16.msra.mxu0 %v1718
      %2216 = vmatpush.bf16.msra.mxu0 %v1717
      %2217 = vmatpush.bf16.msra.mxu0 %v1716
      %2218 = vmatpush.bf16.msra.mxu0 %v1715
      %2219 = vmatmul.bf16.gmra.mxu0 %v753
      %v2220 = vpop.f32.mrf.mxu0
      %v2221 = vadd.f32 %v2207, %v2220
      %v2222 = vpop.f32.mrf.mxu0
      %v2223 = vadd.f32 %v2209, %v2222
      %2224 = vdwg.mxu0
      %2225 = vmatpush.bf16.msra.mxu0 %v1730
      %2226 = vmatpush.bf16.msra.mxu0 %v1729
      %2227 = vmatpush.bf16.msra.mxu0 %v1728
      %2228 = vmatpush.bf16.msra.mxu0 %v1727
      %2229 = vmatpush.bf16.msra.mxu0 %v1726
      %2230 = vmatpush.bf16.msra.mxu0 %v1725
      %2231 = vmatpush.bf16.msra.mxu0 %v1724
      %2232 = vmatpush.bf16.msra.mxu0 %v1723
      %2233 = vmatmul.bf16.gmra.mxu0 %v754
      %v2234 = vpop.f32.mrf.mxu0
      %v2235 = vadd.f32 %v2221, %v2234
      %v2236 = vpop.f32.mrf.mxu0
      %v2237 = vadd.f32 %v2223, %v2236
      %2238 = vdwg.mxu0
      %2239 = vmatpush.bf16.msra.mxu0 %v1738
      %2240 = vmatpush.bf16.msra.mxu0 %v1737
      %2241 = vmatpush.bf16.msra.mxu0 %v1736
      %2242 = vmatpush.bf16.msra.mxu0 %v1735
      %2243 = vmatpush.bf16.msra.mxu0 %v1734
      %2244 = vmatpush.bf16.msra.mxu0 %v1733
      %2245 = vmatpush.bf16.msra.mxu0 %v1732
      %2246 = vmatpush.bf16.msra.mxu0 %v1731
      %2247 = vmatmul.bf16.gmra.mxu0 %v755
      %v2248 = vpop.f32.mrf.mxu0
      %v2249 = vadd.f32 %v2235, %v2248
      %v2250 = vpop.f32.mrf.mxu0
      %v2251 = vadd.f32 %v2237, %v2250
      %2252 = vdwg.mxu0
      %2253 = vmatpush.bf16.msra.mxu0 %v1746
      %2254 = vmatpush.bf16.msra.mxu0 %v1745
      %2255 = vmatpush.bf16.msra.mxu0 %v1744
      %2256 = vmatpush.bf16.msra.mxu0 %v1743
      %2257 = vmatpush.bf16.msra.mxu0 %v1742
      %2258 = vmatpush.bf16.msra.mxu0 %v1741
      %2259 = vmatpush.bf16.msra.mxu0 %v1740
      %2260 = vmatpush.bf16.msra.mxu0 %v1739
      %2261 = vmatmul.bf16.gmra.mxu0 %v756
      %v2262 = vpop.f32.mrf.mxu0
      %v2263 = vadd.f32 %v2249, %v2262
      %v2264 = vpop.f32.mrf.mxu0
      %v2265 = vadd.f32 %v2251, %v2264
      %2266 = vdwg.mxu0
      %2267 = vmatpush.bf16.msra.mxu0 %v1754
      %2268 = vmatpush.bf16.msra.mxu0 %v1753
      %2269 = vmatpush.bf16.msra.mxu0 %v1752
      %2270 = vmatpush.bf16.msra.mxu0 %v1751
      %2271 = vmatpush.bf16.msra.mxu0 %v1750
      %2272 = vmatpush.bf16.msra.mxu0 %v1749
      %2273 = vmatpush.bf16.msra.mxu0 %v1748
      %2274 = vmatpush.bf16.msra.mxu0 %v1747
      %2275 = vmatmul.bf16.gmra.mxu0 %v757
      %v2276 = vpop.f32.mrf.mxu0
      %v2277 = vadd.f32 %v2263, %v2276
      %v2278 = vpop.f32.mrf.mxu0
      %v2279 = vadd.f32 %v2265, %v2278
      %2280 = vdwg.mxu0
      %2281 = vmatpush.bf16.msra.mxu0 %v1762
      %2282 = vmatpush.bf16.msra.mxu0 %v1761
      %2283 = vmatpush.bf16.msra.mxu0 %v1760
      %2284 = vmatpush.bf16.msra.mxu0 %v1759
      %2285 = vmatpush.bf16.msra.mxu0 %v1758
      %2286 = vmatpush.bf16.msra.mxu0 %v1757
      %2287 = vmatpush.bf16.msra.mxu0 %v1756
      %2288 = vmatpush.bf16.msra.mxu0 %v1755
      %2289 = vmatmul.bf16.gmra.mxu0 %v758
      %v2290 = vpop.f32.mrf.mxu0
      %v2291 = vadd.f32 %v2277, %v2290
      %v2292 = vpop.f32.mrf.mxu0
      %v2293 = vadd.f32 %v2279, %v2292
      %2294 = vdwg.mxu0
      %2295 = vmatpush.bf16.msra.mxu0 %v1770
      %2296 = vmatpush.bf16.msra.mxu0 %v1769
      %2297 = vmatpush.bf16.msra.mxu0 %v1768
      %2298 = vmatpush.bf16.msra.mxu0 %v1767
      %2299 = vmatpush.bf16.msra.mxu0 %v1766
      %2300 = vmatpush.bf16.msra.mxu0 %v1765
      %2301 = vmatpush.bf16.msra.mxu0 %v1764
      %2302 = vmatpush.bf16.msra.mxu0 %v1763
      %2303 = vmatmul.bf16.gmra.mxu0 %v759
      %v2304 = vpop.f32.mrf.mxu0
      %v2305 = vadd.f32 %v2291, %v2304
      %v2306 = vpop.f32.mrf.mxu0
      %v2307 = vadd.f32 %v2293, %v2306
      %2308 = vdwg.mxu0
      %2309 = vmatpush.bf16.msra.mxu0 %v1778
      %2310 = vmatpush.bf16.msra.mxu0 %v1777
      %2311 = vmatpush.bf16.msra.mxu0 %v1776
      %2312 = vmatpush.bf16.msra.mxu0 %v1775
      %2313 = vmatpush.bf16.msra.mxu0 %v1774
      %2314 = vmatpush.bf16.msra.mxu0 %v1773
      %2315 = vmatpush.bf16.msra.mxu0 %v1772
      %2316 = vmatpush.bf16.msra.mxu0 %v1771
      %2317 = vmatmul.bf16.gmra.mxu0 %v760
      %v2318 = vpop.f32.mrf.mxu0
      %v2319 = vadd.f32 %v2305, %v2318
      %v2320 = vpop.f32.mrf.mxu0
      %v2321 = vadd.f32 %v2307, %v2320
      %2322 = vdwg.mxu0
      %2323 = vmatpush.bf16.msra.mxu0 %v1786
      %2324 = vmatpush.bf16.msra.mxu0 %v1785
      %2325 = vmatpush.bf16.msra.mxu0 %v1784
      %2326 = vmatpush.bf16.msra.mxu0 %v1783
      %2327 = vmatpush.bf16.msra.mxu0 %v1782
      %2328 = vmatpush.bf16.msra.mxu0 %v1781
      %2329 = vmatpush.bf16.msra.mxu0 %v1780
      %2330 = vmatpush.bf16.msra.mxu0 %v1779
      %2331 = vmatmul.bf16.gmra.mxu0 %v761
      %v2332 = vpop.f32.mrf.mxu0
      %v2333 = vadd.f32 %v2319, %v2332
      %v2334 = vpop.f32.mrf.mxu0
      %v2335 = vadd.f32 %v2321, %v2334
      %2336 = vdwg.mxu0
      %v2337 = vmul.f32 %v2333, %v2333
      %v2338 = vmul.f32 %v2335, %v2335
      %v2339 = vpack.c.bf16 %v2338, %v2337
      %v2340 = vld [vmem:[%s3] sm:$0xf]
      %v2341 = vld [vmem:[%s3 + $0x4] sm:$0xf]
      %v2342 = vld [vmem:[%s3 + $0x8] sm:$0xf]
      %v2343 = vld [vmem:[%s3 + $0xc] sm:$0xf]
      %v2344 = vld [vmem:[%s3 + $0x10] sm:$0xf]
      %v2345 = vld [vmem:[%s3 + $0x14] sm:$0xf]
      %v2346 = vld [vmem:[%s3 + $0x18] sm:$0xf]
      %v2347 = vld [vmem:[%s3 + $0x1c] sm:$0xf]
      %v2348 = vld [vmem:[%s3 + $0x20] sm:$0xf]
      %v2349 = vld [vmem:[%s3 + $0x24] sm:$0xf]
      %v2350 = vld [vmem:[%s3 + $0x28] sm:$0xf]
      %v2351 = vld [vmem:[%s3 + $0x2c] sm:$0xf]
      %v2352 = vld [vmem:[%s3 + $0x30] sm:$0xf]
      %v2353 = vld [vmem:[%s3 + $0x34] sm:$0xf]
      %v2354 = vld [vmem:[%s3 + $0x38] sm:$0xf]
      %v2355 = vld [vmem:[%s3 + $0x3c] sm:$0xf]
      %v2356 = vld [vmem:[%s4] sm:$0x1]
      %v2358 = vperm.slane %v2356, 0
      %v2376 = vunpack.c.l.b16 %v2340
      %v2377 = vunpack.c.l.b16 %v2341
      %v2378 = vunpack.c.l.b16 %v2342
      %v2379 = vunpack.c.l.b16 %v2343
      %v2380 = vunpack.c.l.b16 %v2344
      %v2381 = vunpack.c.l.b16 %v2345
      %v2382 = vunpack.c.l.b16 %v2346
      %v2383 = vunpack.c.l.b16 %v2347
      %v2384 = vunpack.c.l.b16 %v2348
      %v2385 = vunpack.c.l.b16 %v2349
      %v2386 = vunpack.c.l.b16 %v2350
      %v2387 = vunpack.c.l.b16 %v2351
      %v2388 = vunpack.c.l.b16 %v2352
      %v2389 = vunpack.c.l.b16 %v2353
      %v2390 = vunpack.c.l.b16 %v2354
      %v2391 = vunpack.c.l.b16 %v2355
      %v2392 = vpack.c.b16 %v2377, %v2376
      %v2393 = vpack.c.b16 %v2379, %v2378
      %v2394 = vpack.c.b16 %v2381, %v2380
      %v2395 = vpack.c.b16 %v2383, %v2382
      %v2396 = vpack.c.b16 %v2385, %v2384
      %v2397 = vpack.c.b16 %v2387, %v2386
      %v2398 = vpack.c.b16 %v2389, %v2388
      %v2399 = vpack.c.b16 %v2391, %v2390
      %2408 = vmatpush.bf16.msra.mxu0 %v2399
      %2409 = vmatpush.bf16.msra.mxu0 %v2398
      %2410 = vmatpush.bf16.msra.mxu0 %v2397
      %2411 = vmatpush.bf16.msra.mxu0 %v2396
      %2412 = vmatpush.bf16.msra.mxu0 %v2395
      %2413 = vmatpush.bf16.msra.mxu0 %v2394
      %2414 = vmatpush.bf16.msra.mxu0 %v2393
      %2415 = vmatpush.bf16.msra.mxu0 %v2392
      %2416 = vmatmul.bf16.gmra.mxu0 %v2339
      %v2417 = vpop.f32.mrf.mxu0
      %v2418 = vadd.f32 %v2358, %v2417
      %v2419 = vpop.f32.mrf.mxu0
      %v2420 = vadd.f32 %v2358, %v2419
      %2421 = vdwg.mxu0
      %v2422 = vrsqrt.pop %v2418
      %v2423 = vmul.f32 %v2422, %v2418
      %v2424 = vmul.f32 %v2423, %v2422
      %v2425 = vmul.f32 0.5, %v2424
      %v2426 = vsub.f32 1.5, %v2425
      %v2427 = vmul.f32 %v2422, %v2426
      %vm2428 = vweird.f32 %v2418
      %vm2429 = vweird.f32 %v2422
      %vm2430 = vmor %vm2428, %vm2429
      %v2431 = vsel %vm2430, %v2422, %v2427
      %v2432 = vrsqrt.pop %v2420
      %v2433 = vmul.f32 %v2432, %v2420
      %v2434 = vmul.f32 %v2433, %v2432
      %v2435 = vmul.f32 0.5, %v2434
      %v2436 = vsub.f32 1.5, %v2435
      %v2437 = vmul.f32 %v2432, %v2436
      %vm2438 = vweird.f32 %v2420
      %vm2439 = vweird.f32 %v2432
      %vm2440 = vmor %vm2438, %vm2439
      %v2441 = vsel %vm2440, %v2432, %v2437
      %v2442 = vmul.f32 %v2333, %v2431
      %v2443 = vmul.f32 %v2335, %v2441
      %v2444 = vpack.c.bf16 %v2442, %v2442
      %v2445 = vpack.c.bf16 %v2443, %v2443
      %2446 = vst [vmem:[%s229] sm:$0xf] %v2444
      %2447 = vst [vmem:[%s229 + $0x4] sm:$0xf] %v2445
      %s2448 = smul.u32 2, %s16
      %p2449 = scmp.lt.s32.totalorder %s2448, 3
      %s2450 = scalar_select %p2449, %s2448, 3
      %s2451 = smul.addr %s2450, 4
      %s2452 = scalar_lea.vmem %s5, %s2451
      // Predicated region
      $region41: #{expand_encoder.5} parent=39 // pred_check
        %p2453 = pneg %p144
      $region42: #{expand_encoder.5} parent=39 // pred_check_branch
        %2455 = sbr.rel (%p2453) target = $region44
      $region43: #{expand_encoder.5} parent=39 // pred_region
        %s2456 = smul.u32 2, %s16
      $region44: #{expand_encoder.5} parent=39 // pred_fallthru
        _
    $region40: #{expand_encoder.5} parent=5 // pred_fallthru
      _
    %p2457 = scmp.le.s32.totalorder 2, %s11
    // Predicated region
    $region45: #{expand_encoder.5} parent=5 // pred_check
      %p2458 = pneg %p2457
    $region46: #{expand_encoder.5} parent=5 // pred_check_branch
      %2460 = sbr.rel (%p2458) target = $region48
    $region47: #{expand_encoder.5} parent=5 // pred_region
      %s2461 = ssub.s32 %s11, 2
      // Predicated region
      $region49: #{expand_encoder.5} parent=47 // pred_check
        %p2462 = pneg %p150
      $region50: #{expand_encoder.5} parent=47 // pred_check_branch
        %2464 = sbr.rel (%p2462) target = $region52
      $region51: #{expand_encoder.5} parent=47 // pred_region
        %s2465 = smul.u32 2, %s17
        %p2466 = scmp.lt.s32.totalorder %s2465, 3
        %s2467 = scalar_select %p2466, %s2465, 3
        %s2468 = smul.addr %s2467, 4
        %s2469 = scalar_lea.vmem %s5, %s2468
      $region52: #{expand_encoder.5} parent=47 // pred_fallthru
        _
    $region48: #{expand_encoder.5} parent=5 // pred_fallthru
      _
  $region6: #{expand_encoder.5} parent=0 // loop_footer
    %s15 = sadd.s32 1, %s11
  $region7: #{expand_encoder.5} parent=0 // loop_footer_branch
    %10 = sbr.rel target = $region3
  $region8: #{expand_encoder.5} parent=0 // loop_exit
    _

// kernel: expand_encoder.6
$region0: #{expand_encoder.6}
  #allocation0 [shape = 'u32[]', space=smem, size = 0x4, offset = 0x4, fixed_abs, tag = 'smem constant byte address 0x4 - core index']
  #allocation1 [shape = 'u32[72,128]{1,0:T(1,128)}', space=vmem, size = 0x9000, scoped, tag = 'internal scratch']
  %s0 = inlined_call_operand.vmem [shape: bf16[32,1152], index: 0, kind: input, shape index: {}]
  %s1 = inlined_call_operand.vmem [shape: bf16[1152,128], index: 1, kind: input, shape index: {}]
  %s2 = inlined_call_operand.vmem [shape: f32[1,128], index: 2, kind: input, shape index: {}]
  %s3 = inlined_call_operand.vmem [shape: bf16[128,128], index: 3, kind: input, shape index: {}]
  %s4 = inlined_call_operand.vmem [shape: f32[1,128], index: 4, kind: input, shape index: {}]
  %s5 = inlined_call_operand.vmem [shape: bf16[32,128], index: 5, kind: output, shape index: {}]
  %s6 = sld [smem:[#allocation0]]
  $region53: #{expand_encoder.6} parent=0
    _
  %s8 = ssub.s32 1, %s6
  %s9 = scalar_select 0, %s8, %s6
  loop: start=0, step=1, limit=4
  $region2: #{expand_encoder.6} parent=0 // loop_pre_header
    _
  $region3: #{expand_encoder.6} parent=0 // loop_header
    %s11 = sphi 0, %s15
    %p12 = scmp.ge.s32.totalorder %s11, 4
    %s21 = sphi 0, %s23
    %s24 = sphi 0, %s21
    %s25 = sphi 0, %s24
    %s41 = sphi 0, %s25
    %s45 = sphi 0, %s45
    %s47 = sphi 0, %s45
    %s48 = sphi 0, %s47
    %s62 = sphi 0, %s48
    %s66 = sphi 0, %s66
    %s68 = sphi 0, %s66
    %s69 = sphi 0, %s68
    %s83 = sphi 0, %s69
    %s87 = sphi 0, %s87
    %s89 = sphi 0, %s87
    %s90 = sphi 0, %s89
    %s104 = sphi 0, %s90
    %s108 = sphi 0, %s108
    %s110 = sphi 0, %s108
    %s111 = sphi 0, %s110
    %s125 = sphi 0, %s111
    %s131 = sphi 0, %s133
    %s134 = sphi 0, %s131
    %s135 = sphi 0, %s134
    %s151 = sphi 0, %s135
  $region4: #{expand_encoder.6} parent=0 // loop_header_branch
    %14 = sbr.rel (%p12) target = $region8
  $region5: #{expand_encoder.6} parent=0 // loop_body
    %s16 = ssub.s32 %s11, 1
    %s17 = ssub.s32 %s11, 2
    %s18 = sadd.s32 %s11, 1
    %s19 = ssub.s32 %s11, %s18
    %p20 = scmp.eq.s32.totalorder %s19, 0
    %s22 = sadd.s32 %s21, 1
    %s23 = scalar_select %p20, %s21, %s22
    %p26 = pneg %p20
    %p27 = scmp.eq.s32.totalorder %s11, 1
    %p28 = por %p26, %p27
    %p29 = scmp.ne.s32.totalorder %s21, %s24
    %p30 = scmp.eq.s32.totalorder %s11, 0
    %p31 = por %p29, %p30
    %p32 = scmp.ne.s32.totalorder %s21, %s24
    %p33 = scmp.eq.s32.totalorder %s16, 1
    %p34 = por %p32, %p33
    %p35 = scmp.ne.s32.totalorder %s24, %s25
    %p36 = scmp.eq.s32.totalorder %s16, 0
    %p37 = por %p35, %p36
    %p38 = scmp.ne.s32.totalorder %s24, %s25
    %p39 = scmp.eq.s32.totalorder %s17, 1
    %p40 = por %p38, %p39
    %p42 = scmp.ne.s32.totalorder %s25, %s41
    %p43 = scmp.eq.s32.totalorder %s17, 0
    %p44 = por %p42, %p43
    %s46 = sadd.s32 %s45, 1
    %p49 = scmp.eq.s32.totalorder %s11, 1
    %p50 = scmp.ne.s32.totalorder %s45, %s47
    %p51 = scmp.eq.s32.totalorder %s11, 0
    %p52 = por %p50, %p51
    %p53 = scmp.ne.s32.totalorder %s45, %s47
    %p54 = scmp.eq.s32.totalorder %s16, 1
    %p55 = por %p53, %p54
    %p56 = scmp.ne.s32.totalorder %s47, %s48
    %p57 = scmp.eq.s32.totalorder %s16, 0
    %p58 = por %p56, %p57
    %p59 = scmp.ne.s32.totalorder %s47, %s48
    %p60 = scmp.eq.s32.totalorder %s17, 1
    %p61 = por %p59, %p60
    %p63 = scmp.ne.s32.totalorder %s48, %s62
    %p64 = scmp.eq.s32.totalorder %s17, 0
    %p65 = por %p63, %p64
    %s67 = sadd.s32 %s66, 1
    %p70 = scmp.eq.s32.totalorder %s11, 1
    %p71 = scmp.ne.s32.totalorder %s66, %s68
    %p72 = scmp.eq.s32.totalorder %s11, 0
    %p73 = por %p71, %p72
    %p74 = scmp.ne.s32.totalorder %s66, %s68
    %p75 = scmp.eq.s32.totalorder %s16, 1
    %p76 = por %p74, %p75
    %p77 = scmp.ne.s32.totalorder %s68, %s69
    %p78 = scmp.eq.s32.totalorder %s16, 0
    %p79 = por %p77, %p78
    %p80 = scmp.ne.s32.totalorder %s68, %s69
    %p81 = scmp.eq.s32.totalorder %s17, 1
    %p82 = por %p80, %p81
    %p84 = scmp.ne.s32.totalorder %s69, %s83
    %p85 = scmp.eq.s32.totalorder %s17, 0
    %p86 = por %p84, %p85
    %s88 = sadd.s32 %s87, 1
    %p91 = scmp.eq.s32.totalorder %s11, 1
    %p92 = scmp.ne.s32.totalorder %s87, %s89
    %p93 = scmp.eq.s32.totalorder %s11, 0
    %p94 = por %p92, %p93
    %p95 = scmp.ne.s32.totalorder %s87, %s89
    %p96 = scmp.eq.s32.totalorder %s16, 1
    %p97 = por %p95, %p96
    %p98 = scmp.ne.s32.totalorder %s89, %s90
    %p99 = scmp.eq.s32.totalorder %s16, 0
    %p100 = por %p98, %p99
    %p101 = scmp.ne.s32.totalorder %s89, %s90
    %p102 = scmp.eq.s32.totalorder %s17, 1
    %p103 = por %p101, %p102
    %p105 = scmp.ne.s32.totalorder %s90, %s104
    %p106 = scmp.eq.s32.totalorder %s17, 0
    %p107 = por %p105, %p106
    %s109 = sadd.s32 %s108, 1
    %p112 = scmp.eq.s32.totalorder %s11, 1
    %p113 = scmp.ne.s32.totalorder %s108, %s110
    %p114 = scmp.eq.s32.totalorder %s11, 0
    %p115 = por %p113, %p114
    %p116 = scmp.ne.s32.totalorder %s108, %s110
    %p117 = scmp.eq.s32.totalorder %s16, 1
    %p118 = por %p116, %p117
    %p119 = scmp.ne.s32.totalorder %s110, %s111
    %p120 = scmp.eq.s32.totalorder %s16, 0
    %p121 = por %p119, %p120
    %p122 = scmp.ne.s32.totalorder %s110, %s111
    %p123 = scmp.eq.s32.totalorder %s17, 1
    %p124 = por %p122, %p123
    %p126 = scmp.ne.s32.totalorder %s111, %s125
    %p127 = scmp.eq.s32.totalorder %s17, 0
    %p128 = por %p126, %p127
    %s129 = ssub.s32 %s11, %s18
    %p130 = scmp.eq.s32.totalorder %s129, 0
    %s132 = sadd.s32 %s131, 1
    %s133 = scalar_select %p130, %s131, %s132
    %p136 = pneg %p130
    %p137 = scmp.eq.s32.totalorder %s11, 1
    %p138 = por %p136, %p137
    %p139 = scmp.ne.s32.totalorder %s131, %s134
    %p140 = scmp.eq.s32.totalorder %s11, 0
    %p141 = por %p139, %p140
    %p142 = scmp.ne.s32.totalorder %s131, %s134
    %p143 = scmp.eq.s32.totalorder %s16, 1
    %p144 = por %p142, %p143
    %p145 = scmp.ne.s32.totalorder %s134, %s135
    %p146 = scmp.eq.s32.totalorder %s16, 0
    %p147 = por %p145, %p146
    %p148 = scmp.ne.s32.totalorder %s134, %s135
    %p149 = scmp.eq.s32.totalorder %s17, 1
    %p150 = por %p148, %p149
    %p152 = scmp.ne.s32.totalorder %s135, %s151
    %p153 = scmp.eq.s32.totalorder %s17, 0
    %p154 = por %p152, %p153
    %p155 = scmp.le.s32.totalorder 1, %s11
    %p156 = scmp.lt.s32.totalorder %s11, 3
    %p157 = pnand %p155, %p156
    %p158 = pneg %p157
    // Predicated region
    $region9: #{expand_encoder.6} parent=5 // pred_check
      _
    $region10: #{expand_encoder.6} parent=5 // pred_check_branch
      %160 = sbr.rel (%p157) target = $region12
    $region11: #{expand_encoder.6} parent=5 // pred_region
      %s161 = ssub.s32 %s11, 1
      // Predicated region
      $region13: #{expand_encoder.6} parent=11 // pred_check
        %p162 = pneg %p58
      $region14: #{expand_encoder.6} parent=11 // pred_check_branch
        %164 = sbr.rel (%p162) target = $region16
      $region15: #{expand_encoder.6} parent=11 // pred_region
        _
      $region16: #{expand_encoder.6} parent=11 // pred_fallthru
        _
      // Predicated region
      $region17: #{expand_encoder.6} parent=11 // pred_check
        %p165 = pneg %p79
      $region18: #{expand_encoder.6} parent=11 // pred_check_branch
        %167 = sbr.rel (%p165) target = $region20
      $region19: #{expand_encoder.6} parent=11 // pred_region
        _
      $region20: #{expand_encoder.6} parent=11 // pred_fallthru
        _
      // Predicated region
      $region21: #{expand_encoder.6} parent=11 // pred_check
        %p168 = pneg %p100
      $region22: #{expand_encoder.6} parent=11 // pred_check_branch
        %170 = sbr.rel (%p168) target = $region24
      $region23: #{expand_encoder.6} parent=11 // pred_region
        _
      $region24: #{expand_encoder.6} parent=11 // pred_fallthru
        _
      // Predicated region
      $region25: #{expand_encoder.6} parent=11 // pred_check
        %p171 = pneg %p121
      $region26: #{expand_encoder.6} parent=11 // pred_check_branch
        %173 = sbr.rel (%p171) target = $region28
      $region27: #{expand_encoder.6} parent=11 // pred_region
        _
      $region28: #{expand_encoder.6} parent=11 // pred_fallthru
        _
    $region12: #{expand_encoder.6} parent=5 // pred_fallthru
      _
    %p174 = scmp.lt.s32.totalorder %s11, 2
    // Predicated region
    $region29: #{expand_encoder.6} parent=5 // pred_check
      %p175 = pneg %p174
    $region30: #{expand_encoder.6} parent=5 // pred_check_branch
      %177 = sbr.rel (%p175) target = $region32
    $region31: #{expand_encoder.6} parent=5 // pred_region
      // Predicated region
      $region33: #{expand_encoder.6} parent=31 // pred_check
        %p178 = pneg %p31
      $region34: #{expand_encoder.6} parent=31 // pred_check_branch
        %180 = sbr.rel (%p178) target = $region36
      $region35: #{expand_encoder.6} parent=31 // pred_region
        %s181 = smul.u32 2, %s11
        %p182 = scmp.lt.s32.totalorder %s181, 3
        %s183 = scalar_select %p182, %s181, 3
        %s184 = smul.addr %s183, 9
        %s185 = smul.addr %s184, 4
        %s186 = scalar_lea.vmem %s0, %s185
        %s187 = smul.u32 2, %s11
      $region36: #{expand_encoder.6} parent=31 // pred_fallthru
        _
    $region32: #{expand_encoder.6} parent=5 // pred_fallthru
      _
    %p188 = scmp.le.s32.totalorder 1, %s11
    %p189 = scmp.lt.s32.totalorder %s11, 3
    %p190 = pnand %p188, %p189
    %p191 = pneg %p190
    // Predicated region
    $region37: #{expand_encoder.6} parent=5 // pred_check
      _
    $region38: #{expand_encoder.6} parent=5 // pred_check_branch
      %193 = sbr.rel (%p190) target = $region40
    $region39: #{expand_encoder.6} parent=5 // pred_region
      %s194 = ssub.s32 %s11, 1
      %s195 = smul.u32 2, %s16
      %p196 = scmp.lt.s32.totalorder %s195, 3
      %s197 = scalar_select %p196, %s195, 3
      %s198 = smul.addr %s197, 9
      %s199 = smul.addr %s198, 4
      %s200 = scalar_lea.vmem %s0, %s199
      %p201 = pneg %p37
      %p202 = pneg %p34
      %p203 = pneg %p58
      %p204 = pneg %p55
      %p205 = pneg %p79
      %p206 = pneg %p76
      %p207 = pneg %p100
      %p208 = pneg %p97
      %p209 = pneg %p121
      %p210 = pneg %p118
      %p211 = pneg %p147
      %p212 = pneg %p144
      %s213 = smul.u32 2, %s16
      %p214 = scmp.lt.s32.totalorder %s213, 3
      %s215 = scalar_select %p214, %s213, 3
      %s216 = smul.addr %s215, 4
      %s217 = scalar_lea.vmem %s5, %s216
      %s218 = smul.u32 2, %s16
      %p219 = scmp.lt.s32.totalorder %s218, 3
      %s220 = scalar_select %p219, %s218, 3
      %s221 = smul.addr %s220, 9
      %s222 = smul.addr %s221, 4
      %s223 = scalar_lea.vmem %s0, %s222
      %s224 = smul.u32 2, %s16
      %s225 = smul.u32 2, %s16
      %p226 = scmp.lt.s32.totalorder %s225, 3
      %s227 = scalar_select %p226, %s225, 3
      %s228 = smul.addr %s227, 4
      %s229 = scalar_lea.vmem %s5, %s228
      %s230 = smul.u32 2, %s16
      %v231 = vld [vmem:[%s223] sm:$0xff]
      %v232 = vld [vmem:[%s223 + $0x8] sm:$0xff]
      %v233 = vld [vmem:[%s223 + $0x10] sm:$0xff]
      %v234 = vld [vmem:[%s223 + $0x18] sm:$0xff]
      %v235 = vld [vmem:[%s223 + $0x20] sm:$0xf]
      %v236 = vld [vmem:[%s223 + $0x24] sm:$0xff]
      %v237 = vld [vmem:[%s223 + $0x2c] sm:$0xff]
      %v238 = vld [vmem:[%s223 + $0x34] sm:$0xff]
      %v239 = vld [vmem:[%s223 + $0x3c] sm:$0xff]
      %v240 = vld [vmem:[%s223 + $0x44] sm:$0xf]
      %v241 = vld [vmem:[%s1] sm:$0xf]
      %v242 = vld [vmem:[%s1 + $0x4] sm:$0xf]
      %v243 = vld [vmem:[%s1 + $0x8] sm:$0xf]
      %v244 = vld [vmem:[%s1 + $0xc] sm:$0xf]
      %v245 = vld [vmem:[%s1 + $0x10] sm:$0xf]
      %v246 = vld [vmem:[%s1 + $0x14] sm:$0xf]
      %v247 = vld [vmem:[%s1 + $0x18] sm:$0xf]
      %v248 = vld [vmem:[%s1 + $0x1c] sm:$0xf]
      %v249 = vld [vmem:[%s1 + $0x20] sm:$0xf]
      %v250 = vld [vmem:[%s1 + $0x24] sm:$0xf]
      %v251 = vld [vmem:[%s1 + $0x28] sm:$0xf]
      %v252 = vld [vmem:[%s1 + $0x2c] sm:$0xf]
      %v253 = vld [vmem:[%s1 + $0x30] sm:$0xf]
      %v254 = vld [vmem:[%s1 + $0x34] sm:$0xf]
      %v255 = vld [vmem:[%s1 + $0x38] sm:$0xf]
      %v256 = vld [vmem:[%s1 + $0x3c] sm:$0xf]
      %v257 = vld [vmem:[%s1 + $0x40] sm:$0xf]
      %v258 = vld [vmem:[%s1 + $0x44] sm:$0xf]
      %v259 = vld [vmem:[%s1 + $0x48] sm:$0xf]
      %v260 = vld [vmem:[%s1 + $0x4c] sm:$0xf]
      %v261 = vld [vmem:[%s1 + $0x50] sm:$0xf]
      %v262 = vld [vmem:[%s1 + $0x54] sm:$0xf]
      %v263 = vld [vmem:[%s1 + $0x58] sm:$0xf]
      %v264 = vld [vmem:[%s1 + $0x5c] sm:$0xf]
      %v265 = vld [vmem:[%s1 + $0x60] sm:$0xf]
      %v266 = vld [vmem:[%s1 + $0x64] sm:$0xf]
      %v267 = vld [vmem:[%s1 + $0x68] sm:$0xf]
      %v268 = vld [vmem:[%s1 + $0x6c] sm:$0xf]
      %v269 = vld [vmem:[%s1 + $0x70] sm:$0xf]
      %v270 = vld [vmem:[%s1 + $0x74] sm:$0xf]
      %v271 = vld [vmem:[%s1 + $0x78] sm:$0xf]
      %v272 = vld [vmem:[%s1 + $0x7c] sm:$0xf]
      %v273 = vld [vmem:[%s1 + $0x80] sm:$0xf]
      %v274 = vld [vmem:[%s1 + $0x84] sm:$0xf]
      %v275 = vld [vmem:[%s1 + $0x88] sm:$0xf]
      %v276 = vld [vmem:[%s1 + $0x8c] sm:$0xf]
      %v277 = vld [vmem:[%s1 + $0x90] sm:$0xf]
      %v278 = vld [vmem:[%s1 + $0x94] sm:$0xf]
      %v279 = vld [vmem:[%s1 + $0x98] sm:$0xf]
      %v280 = vld [vmem:[%s1 + $0x9c] sm:$0xf]
      %v281 = vld [vmem:[%s1 + $0xa0] sm:$0xf]
      %v282 = vld [vmem:[%s1 + $0xa4] sm:$0xf]
      %v283 = vld [vmem:[%s1 + $0xa8] sm:$0xf]
      %v284 = vld [vmem:[%s1 + $0xac] sm:$0xf]
      %v285 = vld [vmem:[%s1 + $0xb0] sm:$0xf]
      %v286 = vld [vmem:[%s1 + $0xb4] sm:$0xf]
      %v287 = vld [vmem:[%s1 + $0xb8] sm:$0xf]
      %v288 = vld [vmem:[%s1 + $0xbc] sm:$0xf]
      %v289 = vld [vmem:[%s1 + $0xc0] sm:$0xf]
      %v290 = vld [vmem:[%s1 + $0xc4] sm:$0xf]
      %v291 = vld [vmem:[%s1 + $0xc8] sm:$0xf]
      %v292 = vld [vmem:[%s1 + $0xcc] sm:$0xf]
      %v293 = vld [vmem:[%s1 + $0xd0] sm:$0xf]
      %v294 = vld [vmem:[%s1 + $0xd4] sm:$0xf]
      %v295 = vld [vmem:[%s1 + $0xd8] sm:$0xf]
      %v296 = vld [vmem:[%s1 + $0xdc] sm:$0xf]
      %v297 = vld [vmem:[%s1 + $0xe0] sm:$0xf]
      %v298 = vld [vmem:[%s1 + $0xe4] sm:$0xf]
      %v299 = vld [vmem:[%s1 + $0xe8] sm:$0xf]
      %v300 = vld [vmem:[%s1 + $0xec] sm:$0xf]
      %v301 = vld [vmem:[%s1 + $0xf0] sm:$0xf]
      %v302 = vld [vmem:[%s1 + $0xf4] sm:$0xf]
      %v303 = vld [vmem:[%s1 + $0xf8] sm:$0xf]
      %v304 = vld [vmem:[%s1 + $0xfc] sm:$0xf]
      %v305 = vld [vmem:[%s1 + $0x100] sm:$0xf]
      %v306 = vld [vmem:[%s1 + $0x104] sm:$0xf]
      %v307 = vld [vmem:[%s1 + $0x108] sm:$0xf]
      %v308 = vld [vmem:[%s1 + $0x10c] sm:$0xf]
      %v309 = vld [vmem:[%s1 + $0x110] sm:$0xf]
      %v310 = vld [vmem:[%s1 + $0x114] sm:$0xf]
      %v311 = vld [vmem:[%s1 + $0x118] sm:$0xf]
      %v312 = vld [vmem:[%s1 + $0x11c] sm:$0xf]
      %v313 = vld [vmem:[%s1 + $0x120] sm:$0xf]
      %v314 = vld [vmem:[%s1 + $0x124] sm:$0xf]
      %v315 = vld [vmem:[%s1 + $0x128] sm:$0xf]
      %v316 = vld [vmem:[%s1 + $0x12c] sm:$0xf]
      %v317 = vld [vmem:[%s1 + $0x130] sm:$0xf]
      %v318 = vld [vmem:[%s1 + $0x134] sm:$0xf]
      %v319 = vld [vmem:[%s1 + $0x138] sm:$0xf]
      %v320 = vld [vmem:[%s1 + $0x13c] sm:$0xf]
      %v321 = vld [vmem:[%s1 + $0x140] sm:$0xf]
      %v322 = vld [vmem:[%s1 + $0x144] sm:$0xf]
      %v323 = vld [vmem:[%s1 + $0x148] sm:$0xf]
      %v324 = vld [vmem:[%s1 + $0x14c] sm:$0xf]
      %v325 = vld [vmem:[%s1 + $0x150] sm:$0xf]
      %v326 = vld [vmem:[%s1 + $0x154] sm:$0xf]
      %v327 = vld [vmem:[%s1 + $0x158] sm:$0xf]
      %v328 = vld [vmem:[%s1 + $0x15c] sm:$0xf]
      %v329 = vld [vmem:[%s1 + $0x160] sm:$0xf]
      %v330 = vld [vmem:[%s1 + $0x164] sm:$0xf]
      %v331 = vld [vmem:[%s1 + $0x168] sm:$0xf]
      %v332 = vld [vmem:[%s1 + $0x16c] sm:$0xf]
      %v333 = vld [vmem:[%s1 + $0x170] sm:$0xf]
      %v334 = vld [vmem:[%s1 + $0x174] sm:$0xf]
      %v335 = vld [vmem:[%s1 + $0x178] sm:$0xf]
      %v336 = vld [vmem:[%s1 + $0x17c] sm:$0xf]
      %v337 = vld [vmem:[%s1 + $0x180] sm:$0xf]
      %v338 = vld [vmem:[%s1 + $0x184] sm:$0xf]
      %v339 = vld [vmem:[%s1 + $0x188] sm:$0xf]
      %v340 = vld [vmem:[%s1 + $0x18c] sm:$0xf]
      %v341 = vld [vmem:[%s1 + $0x190] sm:$0xf]
      %v342 = vld [vmem:[%s1 + $0x194] sm:$0xf]
      %v343 = vld [vmem:[%s1 + $0x198] sm:$0xf]
      %v344 = vld [vmem:[%s1 + $0x19c] sm:$0xf]
      %v345 = vld [vmem:[%s1 + $0x1a0] sm:$0xf]
      %v346 = vld [vmem:[%s1 + $0x1a4] sm:$0xf]
      %v347 = vld [vmem:[%s1 + $0x1a8] sm:$0xf]
      %v348 = vld [vmem:[%s1 + $0x1ac] sm:$0xf]
      %v349 = vld [vmem:[%s1 + $0x1b0] sm:$0xf]
      %v350 = vld [vmem:[%s1 + $0x1b4] sm:$0xf]
      %v351 = vld [vmem:[%s1 + $0x1b8] sm:$0xf]
      %v352 = vld [vmem:[%s1 + $0x1bc] sm:$0xf]
      %v353 = vld [vmem:[%s1 + $0x1c0] sm:$0xf]
      %v354 = vld [vmem:[%s1 + $0x1c4] sm:$0xf]
      %v355 = vld [vmem:[%s1 + $0x1c8] sm:$0xf]
      %v356 = vld [vmem:[%s1 + $0x1cc] sm:$0xf]
      %v357 = vld [vmem:[%s1 + $0x1d0] sm:$0xf]
      %v358 = vld [vmem:[%s1 + $0x1d4] sm:$0xf]
      %v359 = vld [vmem:[%s1 + $0x1d8] sm:$0xf]
      %v360 = vld [vmem:[%s1 + $0x1dc] sm:$0xf]
      %v361 = vld [vmem:[%s1 + $0x1e0] sm:$0xf]
      %v362 = vld [vmem:[%s1 + $0x1e4] sm:$0xf]
      %v363 = vld [vmem:[%s1 + $0x1e8] sm:$0xf]
      %v364 = vld [vmem:[%s1 + $0x1ec] sm:$0xf]
      %v365 = vld [vmem:[%s1 + $0x1f0] sm:$0xf]
      %v366 = vld [vmem:[%s1 + $0x1f4] sm:$0xf]
      %v367 = vld [vmem:[%s1 + $0x1f8] sm:$0xf]
      %v368 = vld [vmem:[%s1 + $0x1fc] sm:$0xf]
      %v369 = vld [vmem:[%s1 + $0x200] sm:$0xf]
      %v370 = vld [vmem:[%s1 + $0x204] sm:$0xf]
      %v371 = vld [vmem:[%s1 + $0x208] sm:$0xf]
      %v372 = vld [vmem:[%s1 + $0x20c] sm:$0xf]
      %v373 = vld [vmem:[%s1 + $0x210] sm:$0xf]
      %v374 = vld [vmem:[%s1 + $0x214] sm:$0xf]
      %v375 = vld [vmem:[%s1 + $0x218] sm:$0xf]
      %v376 = vld [vmem:[%s1 + $0x21c] sm:$0xf]
      %v377 = vld [vmem:[%s1 + $0x220] sm:$0xf]
      %v378 = vld [vmem:[%s1 + $0x224] sm:$0xf]
      %v379 = vld [vmem:[%s1 + $0x228] sm:$0xf]
      %v380 = vld [vmem:[%s1 + $0x22c] sm:$0xf]
      %v381 = vld [vmem:[%s1 + $0x230] sm:$0xf]
      %v382 = vld [vmem:[%s1 + $0x234] sm:$0xf]
      %v383 = vld [vmem:[%s1 + $0x238] sm:$0xf]
      %v384 = vld [vmem:[%s1 + $0x23c] sm:$0xf]
      %v385 = vld [vmem:[%s2] sm:$0x1]
      %v387 = vperm.slane %v385, 0
      %v399 = vunpack.c.l.b16 %v231
      %v400 = vunpack.c.h.b16 %v231
      %v401 = vunpack.c.l.b16 %v232
      %v402 = vunpack.c.h.b16 %v232
      %v403 = vunpack.c.l.b16 %v233
      %v404 = vunpack.c.h.b16 %v233
      %v405 = vunpack.c.l.b16 %v234
      %v406 = vunpack.c.h.b16 %v234
      %v407 = vunpack.c.l.b16 %v235
      %v408 = vunpack.c.l.b16 %v236
      %v409 = vunpack.c.h.b16 %v236
      %v410 = vunpack.c.l.b16 %v237
      %v411 = vunpack.c.h.b16 %v237
      %v412 = vunpack.c.l.b16 %v238
      %v413 = vunpack.c.h.b16 %v238
      %v414 = vunpack.c.l.b16 %v239
      %v415 = vunpack.c.h.b16 %v239
      %v416 = vunpack.c.l.b16 %v240
      %v417 = vpack.c.b16 %v408, %v399
      %v418 = vpack.c.b16 %v409, %v400
      %v419 = vpack.c.b16 %v410, %v401
      %v420 = vpack.c.b16 %v411, %v402
      %v421 = vpack.c.b16 %v412, %v403
      %v422 = vpack.c.b16 %v413, %v404
      %v423 = vpack.c.b16 %v414, %v405
      %v424 = vpack.c.b16 %v415, %v406
      %v425 = vpack.c.b16 %v416, %v407
      %v579 = vunpack.c.l.b16 %v241
      %v580 = vunpack.c.l.b16 %v242
      %v581 = vunpack.c.l.b16 %v243
      %v582 = vunpack.c.l.b16 %v244
      %v583 = vunpack.c.l.b16 %v245
      %v584 = vunpack.c.l.b16 %v246
      %v585 = vunpack.c.l.b16 %v247
      %v586 = vunpack.c.l.b16 %v248
      %v587 = vunpack.c.l.b16 %v249
      %v588 = vunpack.c.l.b16 %v250
      %v589 = vunpack.c.l.b16 %v251
      %v590 = vunpack.c.l.b16 %v252
      %v591 = vunpack.c.l.b16 %v253
      %v592 = vunpack.c.l.b16 %v254
      %v593 = vunpack.c.l.b16 %v255
      %v594 = vunpack.c.l.b16 %v256
      %v595 = vunpack.c.l.b16 %v257
      %v596 = vunpack.c.l.b16 %v258
      %v597 = vunpack.c.l.b16 %v259
      %v598 = vunpack.c.l.b16 %v260
      %v599 = vunpack.c.l.b16 %v261
      %v600 = vunpack.c.l.b16 %v262
      %v601 = vunpack.c.l.b16 %v263
      %v602 = vunpack.c.l.b16 %v264
      %v603 = vunpack.c.l.b16 %v265
      %v604 = vunpack.c.l.b16 %v266
      %v605 = vunpack.c.l.b16 %v267
      %v606 = vunpack.c.l.b16 %v268
      %v607 = vunpack.c.l.b16 %v269
      %v608 = vunpack.c.l.b16 %v270
      %v609 = vunpack.c.l.b16 %v271
      %v610 = vunpack.c.l.b16 %v272
      %v611 = vunpack.c.l.b16 %v273
      %v612 = vunpack.c.l.b16 %v274
      %v613 = vunpack.c.l.b16 %v275
      %v614 = vunpack.c.l.b16 %v276
      %v615 = vunpack.c.l.b16 %v277
      %v616 = vunpack.c.l.b16 %v278
      %v617 = vunpack.c.l.b16 %v279
      %v618 = vunpack.c.l.b16 %v280
      %v619 = vunpack.c.l.b16 %v281
      %v620 = vunpack.c.l.b16 %v282
      %v621 = vunpack.c.l.b16 %v283
      %v622 = vunpack.c.l.b16 %v284
      %v623 = vunpack.c.l.b16 %v285
      %v624 = vunpack.c.l.b16 %v286
      %v625 = vunpack.c.l.b16 %v287
      %v626 = vunpack.c.l.b16 %v288
      %v627 = vunpack.c.l.b16 %v289
      %v628 = vunpack.c.l.b16 %v290
      %v629 = vunpack.c.l.b16 %v291
      %v630 = vunpack.c.l.b16 %v292
      %v631 = vunpack.c.l.b16 %v293
      %v632 = vunpack.c.l.b16 %v294
      %v633 = vunpack.c.l.b16 %v295
      %v634 = vunpack.c.l.b16 %v296
      %v635 = vunpack.c.l.b16 %v297
      %v636 = vunpack.c.l.b16 %v298
      %v637 = vunpack.c.l.b16 %v299
      %v638 = vunpack.c.l.b16 %v300
      %v639 = vunpack.c.l.b16 %v301
      %v640 = vunpack.c.l.b16 %v302
      %v641 = vunpack.c.l.b16 %v303
      %v642 = vunpack.c.l.b16 %v304
      %v643 = vunpack.c.l.b16 %v305
      %v644 = vunpack.c.l.b16 %v306
      %v645 = vunpack.c.l.b16 %v307
      %v646 = vunpack.c.l.b16 %v308
      %v647 = vunpack.c.l.b16 %v309
      %v648 = vunpack.c.l.b16 %v310
      %v649 = vunpack.c.l.b16 %v311
      %v650 = vunpack.c.l.b16 %v312
      %v651 = vunpack.c.l.b16 %v313
      %v652 = vunpack.c.l.b16 %v314
      %v653 = vunpack.c.l.b16 %v315
      %v654 = vunpack.c.l.b16 %v316
      %v655 = vunpack.c.l.b16 %v317
      %v656 = vunpack.c.l.b16 %v318
      %v657 = vunpack.c.l.b16 %v319
      %v658 = vunpack.c.l.b16 %v320
      %v659 = vunpack.c.l.b16 %v321
      %v660 = vunpack.c.l.b16 %v322
      %v661 = vunpack.c.l.b16 %v323
      %v662 = vunpack.c.l.b16 %v324
      %v663 = vunpack.c.l.b16 %v325
      %v664 = vunpack.c.l.b16 %v326
      %v665 = vunpack.c.l.b16 %v327
      %v666 = vunpack.c.l.b16 %v328
      %v667 = vunpack.c.l.b16 %v329
      %v668 = vunpack.c.l.b16 %v330
      %v669 = vunpack.c.l.b16 %v331
      %v670 = vunpack.c.l.b16 %v332
      %v671 = vunpack.c.l.b16 %v333
      %v672 = vunpack.c.l.b16 %v334
      %v673 = vunpack.c.l.b16 %v335
      %v674 = vunpack.c.l.b16 %v336
      %v675 = vunpack.c.l.b16 %v337
      %v676 = vunpack.c.l.b16 %v338
      %v677 = vunpack.c.l.b16 %v339
      %v678 = vunpack.c.l.b16 %v340
      %v679 = vunpack.c.l.b16 %v341
      %v680 = vunpack.c.l.b16 %v342
      %v681 = vunpack.c.l.b16 %v343
      %v682 = vunpack.c.l.b16 %v344
      %v683 = vunpack.c.l.b16 %v345
      %v684 = vunpack.c.l.b16 %v346
      %v685 = vunpack.c.l.b16 %v347
      %v686 = vunpack.c.l.b16 %v348
      %v687 = vunpack.c.l.b16 %v349
      %v688 = vunpack.c.l.b16 %v350
      %v689 = vunpack.c.l.b16 %v351
      %v690 = vunpack.c.l.b16 %v352
      %v691 = vunpack.c.l.b16 %v353
      %v692 = vunpack.c.l.b16 %v354
      %v693 = vunpack.c.l.b16 %v355
      %v694 = vunpack.c.l.b16 %v356
      %v695 = vunpack.c.l.b16 %v357
      %v696 = vunpack.c.l.b16 %v358
      %v697 = vunpack.c.l.b16 %v359
      %v698 = vunpack.c.l.b16 %v360
      %v699 = vunpack.c.l.b16 %v361
      %v700 = vunpack.c.l.b16 %v362
      %v701 = vunpack.c.l.b16 %v363
      %v702 = vunpack.c.l.b16 %v364
      %v703 = vunpack.c.l.b16 %v365
      %v704 = vunpack.c.l.b16 %v366
      %v705 = vunpack.c.l.b16 %v367
      %v706 = vunpack.c.l.b16 %v368
      %v707 = vunpack.c.l.b16 %v369
      %v708 = vunpack.c.l.b16 %v370
      %v709 = vunpack.c.l.b16 %v371
      %v710 = vunpack.c.l.b16 %v372
      %v711 = vunpack.c.l.b16 %v373
      %v712 = vunpack.c.l.b16 %v374
      %v713 = vunpack.c.l.b16 %v375
      %v714 = vunpack.c.l.b16 %v376
      %v715 = vunpack.c.l.b16 %v377
      %v716 = vunpack.c.l.b16 %v378
      %v717 = vunpack.c.l.b16 %v379
      %v718 = vunpack.c.l.b16 %v380
      %v719 = vunpack.c.l.b16 %v381
      %v720 = vunpack.c.l.b16 %v382
      %v721 = vunpack.c.l.b16 %v383
      %v722 = vunpack.c.l.b16 %v384
      %v723 = vpack.c.b16 %v580, %v579
      %v724 = vpack.c.b16 %v582, %v581
      %v725 = vpack.c.b16 %v584, %v583
      %v726 = vpack.c.b16 %v586, %v585
      %v727 = vpack.c.b16 %v588, %v587
      %v728 = vpack.c.b16 %v590, %v589
      %v729 = vpack.c.b16 %v592, %v591
      %v730 = vpack.c.b16 %v594, %v593
      %v731 = vpack.c.b16 %v596, %v595
      %v732 = vpack.c.b16 %v598, %v597
      %v733 = vpack.c.b16 %v600, %v599
      %v734 = vpack.c.b16 %v602, %v601
      %v735 = vpack.c.b16 %v604, %v603
      %v736 = vpack.c.b16 %v606, %v605
      %v737 = vpack.c.b16 %v608, %v607
      %v738 = vpack.c.b16 %v610, %v609
      %v739 = vpack.c.b16 %v612, %v611
      %v740 = vpack.c.b16 %v614, %v613
      %v741 = vpack.c.b16 %v616, %v615
      %v742 = vpack.c.b16 %v618, %v617
      %v743 = vpack.c.b16 %v620, %v619
      %v744 = vpack.c.b16 %v622, %v621
      %v745 = vpack.c.b16 %v624, %v623
      %v746 = vpack.c.b16 %v626, %v625
      %v747 = vpack.c.b16 %v628, %v627
      %v748 = vpack.c.b16 %v630, %v629
      %v749 = vpack.c.b16 %v632, %v631
      %v750 = vpack.c.b16 %v634, %v633
      %v751 = vpack.c.b16 %v636, %v635
      %v752 = vpack.c.b16 %v638, %v637
      %v753 = vpack.c.b16 %v640, %v639
      %v754 = vpack.c.b16 %v642, %v641
      %v755 = vpack.c.b16 %v644, %v643
      %v756 = vpack.c.b16 %v646, %v645
      %v757 = vpack.c.b16 %v648, %v647
      %v758 = vpack.c.b16 %v650, %v649
      %v759 = vpack.c.b16 %v652, %v651
      %v760 = vpack.c.b16 %v654, %v653
      %v761 = vpack.c.b16 %v656, %v655
      %v762 = vpack.c.b16 %v658, %v657
      %v763 = vpack.c.b16 %v660, %v659
      %v764 = vpack.c.b16 %v662, %v661
      %v765 = vpack.c.b16 %v664, %v663
      %v766 = vpack.c.b16 %v666, %v665
      %v767 = vpack.c.b16 %v668, %v667
      %v768 = vpack.c.b16 %v670, %v669
      %v769 = vpack.c.b16 %v672, %v671
      %v770 = vpack.c.b16 %v674, %v673
      %v771 = vpack.c.b16 %v676, %v675
      %v772 = vpack.c.b16 %v678, %v677
      %v773 = vpack.c.b16 %v680, %v679
      %v774 = vpack.c.b16 %v682, %v681
      %v775 = vpack.c.b16 %v684, %v683
      %v776 = vpack.c.b16 %v686, %v685
      %v777 = vpack.c.b16 %v688, %v687
      %v778 = vpack.c.b16 %v690, %v689
      %v779 = vpack.c.b16 %v692, %v691
      %v780 = vpack.c.b16 %v694, %v693
      %v781 = vpack.c.b16 %v696, %v695
      %v782 = vpack.c.b16 %v698, %v697
      %v783 = vpack.c.b16 %v700, %v699
      %v784 = vpack.c.b16 %v702, %v701
      %v785 = vpack.c.b16 %v704, %v703
      %v786 = vpack.c.b16 %v706, %v705
      %v787 = vpack.c.b16 %v708, %v707
      %v788 = vpack.c.b16 %v710, %v709
      %v789 = vpack.c.b16 %v712, %v711
      %v790 = vpack.c.b16 %v714, %v713
      %v791 = vpack.c.b16 %v716, %v715
      %v792 = vpack.c.b16 %v718, %v717
      %v793 = vpack.c.b16 %v720, %v719
      %v794 = vpack.c.b16 %v722, %v721
      %867 = vmatpush.bf16.msra.mxu0 %v730
      %868 = vmatpush.bf16.msra.mxu0 %v729
      %869 = vmatpush.bf16.msra.mxu0 %v728
      %870 = vmatpush.bf16.msra.mxu0 %v727
      %871 = vmatpush.bf16.msra.mxu0 %v726
      %872 = vmatpush.bf16.msra.mxu0 %v725
      %873 = vmatpush.bf16.msra.mxu0 %v724
      %874 = vmatpush.bf16.msra.mxu0 %v723
      %875 = vmatmul.bf16.gmra.mxu0 %v417
      %v876 = vpop.f32.mrf.mxu0
      %v877 = vadd.f32 %v387, %v876
      %v878 = vpop.f32.mrf.mxu0
      %v879 = vadd.f32 %v387, %v878
      %880 = vdwg.mxu0
      %881 = vmatpush.bf16.msra.mxu0 %v738
      %882 = vmatpush.bf16.msra.mxu0 %v737
      %883 = vmatpush.bf16.msra.mxu0 %v736
      %884 = vmatpush.bf16.msra.mxu0 %v735
      %885 = vmatpush.bf16.msra.mxu0 %v734
      %886 = vmatpush.bf16.msra.mxu0 %v733
      %887 = vmatpush.bf16.msra.mxu0 %v732
      %888 = vmatpush.bf16.msra.mxu0 %v731
      %889 = vmatmul.bf16.gmra.mxu0 %v418
      %v890 = vpop.f32.mrf.mxu0
      %v891 = vadd.f32 %v877, %v890
      %v892 = vpop.f32.mrf.mxu0
      %v893 = vadd.f32 %v879, %v892
      %894 = vdwg.mxu0
      %895 = vmatpush.bf16.msra.mxu0 %v746
      %896 = vmatpush.bf16.msra.mxu0 %v745
      %897 = vmatpush.bf16.msra.mxu0 %v744
      %898 = vmatpush.bf16.msra.mxu0 %v743
      %899 = vmatpush.bf16.msra.mxu0 %v742
      %900 = vmatpush.bf16.msra.mxu0 %v741
      %901 = vmatpush.bf16.msra.mxu0 %v740
      %902 = vmatpush.bf16.msra.mxu0 %v739
      %903 = vmatmul.bf16.gmra.mxu0 %v419
      %v904 = vpop.f32.mrf.mxu0
      %v905 = vadd.f32 %v891, %v904
      %v906 = vpop.f32.mrf.mxu0
      %v907 = vadd.f32 %v893, %v906
      %908 = vdwg.mxu0
      %909 = vmatpush.bf16.msra.mxu0 %v754
      %910 = vmatpush.bf16.msra.mxu0 %v753
      %911 = vmatpush.bf16.msra.mxu0 %v752
      %912 = vmatpush.bf16.msra.mxu0 %v751
      %913 = vmatpush.bf16.msra.mxu0 %v750
      %914 = vmatpush.bf16.msra.mxu0 %v749
      %915 = vmatpush.bf16.msra.mxu0 %v748
      %916 = vmatpush.bf16.msra.mxu0 %v747
      %917 = vmatmul.bf16.gmra.mxu0 %v420
      %v918 = vpop.f32.mrf.mxu0
      %v919 = vadd.f32 %v905, %v918
      %v920 = vpop.f32.mrf.mxu0
      %v921 = vadd.f32 %v907, %v920
      %922 = vdwg.mxu0
      %923 = vmatpush.bf16.msra.mxu0 %v762
      %924 = vmatpush.bf16.msra.mxu0 %v761
      %925 = vmatpush.bf16.msra.mxu0 %v760
      %926 = vmatpush.bf16.msra.mxu0 %v759
      %927 = vmatpush.bf16.msra.mxu0 %v758
      %928 = vmatpush.bf16.msra.mxu0 %v757
      %929 = vmatpush.bf16.msra.mxu0 %v756
      %930 = vmatpush.bf16.msra.mxu0 %v755
      %931 = vmatmul.bf16.gmra.mxu0 %v421
      %v932 = vpop.f32.mrf.mxu0
      %v933 = vadd.f32 %v919, %v932
      %v934 = vpop.f32.mrf.mxu0
      %v935 = vadd.f32 %v921, %v934
      %936 = vdwg.mxu0
      %937 = vmatpush.bf16.msra.mxu0 %v770
      %938 = vmatpush.bf16.msra.mxu0 %v769
      %939 = vmatpush.bf16.msra.mxu0 %v768
      %940 = vmatpush.bf16.msra.mxu0 %v767
      %941 = vmatpush.bf16.msra.mxu0 %v766
      %942 = vmatpush.bf16.msra.mxu0 %v765
      %943 = vmatpush.bf16.msra.mxu0 %v764
      %944 = vmatpush.bf16.msra.mxu0 %v763
      %945 = vmatmul.bf16.gmra.mxu0 %v422
      %v946 = vpop.f32.mrf.mxu0
      %v947 = vadd.f32 %v933, %v946
      %v948 = vpop.f32.mrf.mxu0
      %v949 = vadd.f32 %v935, %v948
      %950 = vdwg.mxu0
      %951 = vmatpush.bf16.msra.mxu0 %v778
      %952 = vmatpush.bf16.msra.mxu0 %v777
      %953 = vmatpush.bf16.msra.mxu0 %v776
      %954 = vmatpush.bf16.msra.mxu0 %v775
      %955 = vmatpush.bf16.msra.mxu0 %v774
      %956 = vmatpush.bf16.msra.mxu0 %v773
      %957 = vmatpush.bf16.msra.mxu0 %v772
      %958 = vmatpush.bf16.msra.mxu0 %v771
      %959 = vmatmul.bf16.gmra.mxu0 %v423
      %v960 = vpop.f32.mrf.mxu0
      %v961 = vadd.f32 %v947, %v960
      %v962 = vpop.f32.mrf.mxu0
      %v963 = vadd.f32 %v949, %v962
      %964 = vdwg.mxu0
      %965 = vmatpush.bf16.msra.mxu0 %v786
      %966 = vmatpush.bf16.msra.mxu0 %v785
      %967 = vmatpush.bf16.msra.mxu0 %v784
      %968 = vmatpush.bf16.msra.mxu0 %v783
      %969 = vmatpush.bf16.msra.mxu0 %v782
      %970 = vmatpush.bf16.msra.mxu0 %v781
      %971 = vmatpush.bf16.msra.mxu0 %v780
      %972 = vmatpush.bf16.msra.mxu0 %v779
      %973 = vmatmul.bf16.gmra.mxu0 %v424
      %v974 = vpop.f32.mrf.mxu0
      %v975 = vadd.f32 %v961, %v974
      %v976 = vpop.f32.mrf.mxu0
      %v977 = vadd.f32 %v963, %v976
      %978 = vdwg.mxu0
      %979 = vmatpush.bf16.msra.mxu0 %v794
      %980 = vmatpush.bf16.msra.mxu0 %v793
      %981 = vmatpush.bf16.msra.mxu0 %v792
      %982 = vmatpush.bf16.msra.mxu0 %v791
      %983 = vmatpush.bf16.msra.mxu0 %v790
      %984 = vmatpush.bf16.msra.mxu0 %v789
      %985 = vmatpush.bf16.msra.mxu0 %v788
      %986 = vmatpush.bf16.msra.mxu0 %v787
      %987 = vmatmul.bf16.gmra.mxu0 %v425
      %v988 = vpop.f32.mrf.mxu0
      %v989 = vadd.f32 %v975, %v988
      %v990 = vpop.f32.mrf.mxu0
      %v991 = vadd.f32 %v977, %v990
      %992 = vdwg.mxu0
      %v993 = vmul.f32 %v989, %v989
      %v994 = vmul.f32 %v991, %v991
      %v995 = vpack.c.bf16 %v994, %v993
      %v996 = vld [vmem:[%s3] sm:$0xf]
      %v997 = vld [vmem:[%s3 + $0x4] sm:$0xf]
      %v998 = vld [vmem:[%s3 + $0x8] sm:$0xf]
      %v999 = vld [vmem:[%s3 + $0xc] sm:$0xf]
      %v1000 = vld [vmem:[%s3 + $0x10] sm:$0xf]
      %v1001 = vld [vmem:[%s3 + $0x14] sm:$0xf]
      %v1002 = vld [vmem:[%s3 + $0x18] sm:$0xf]
      %v1003 = vld [vmem:[%s3 + $0x1c] sm:$0xf]
      %v1004 = vld [vmem:[%s3 + $0x20] sm:$0xf]
      %v1005 = vld [vmem:[%s3 + $0x24] sm:$0xf]
      %v1006 = vld [vmem:[%s3 + $0x28] sm:$0xf]
      %v1007 = vld [vmem:[%s3 + $0x2c] sm:$0xf]
      %v1008 = vld [vmem:[%s3 + $0x30] sm:$0xf]
      %v1009 = vld [vmem:[%s3 + $0x34] sm:$0xf]
      %v1010 = vld [vmem:[%s3 + $0x38] sm:$0xf]
      %v1011 = vld [vmem:[%s3 + $0x3c] sm:$0xf]
      %v1012 = vld [vmem:[%s4] sm:$0x1]
      %v1014 = vperm.slane %v1012, 0
      %v1032 = vunpack.c.l.b16 %v996
      %v1033 = vunpack.c.l.b16 %v997
      %v1034 = vunpack.c.l.b16 %v998
      %v1035 = vunpack.c.l.b16 %v999
      %v1036 = vunpack.c.l.b16 %v1000
      %v1037 = vunpack.c.l.b16 %v1001
      %v1038 = vunpack.c.l.b16 %v1002
      %v1039 = vunpack.c.l.b16 %v1003
      %v1040 = vunpack.c.l.b16 %v1004
      %v1041 = vunpack.c.l.b16 %v1005
      %v1042 = vunpack.c.l.b16 %v1006
      %v1043 = vunpack.c.l.b16 %v1007
      %v1044 = vunpack.c.l.b16 %v1008
      %v1045 = vunpack.c.l.b16 %v1009
      %v1046 = vunpack.c.l.b16 %v1010
      %v1047 = vunpack.c.l.b16 %v1011
      %v1048 = vpack.c.b16 %v1033, %v1032
      %v1049 = vpack.c.b16 %v1035, %v1034
      %v1050 = vpack.c.b16 %v1037, %v1036
      %v1051 = vpack.c.b16 %v1039, %v1038
      %v1052 = vpack.c.b16 %v1041, %v1040
      %v1053 = vpack.c.b16 %v1043, %v1042
      %v1054 = vpack.c.b16 %v1045, %v1044
      %v1055 = vpack.c.b16 %v1047, %v1046
      %1064 = vmatpush.bf16.msra.mxu0 %v1055
      %1065 = vmatpush.bf16.msra.mxu0 %v1054
      %1066 = vmatpush.bf16.msra.mxu0 %v1053
      %1067 = vmatpush.bf16.msra.mxu0 %v1052
      %1068 = vmatpush.bf16.msra.mxu0 %v1051
      %1069 = vmatpush.bf16.msra.mxu0 %v1050
      %1070 = vmatpush.bf16.msra.mxu0 %v1049
      %1071 = vmatpush.bf16.msra.mxu0 %v1048
      %1072 = vmatmul.bf16.gmra.mxu0 %v995
      %v1073 = vpop.f32.mrf.mxu0
      %v1074 = vadd.f32 %v1014, %v1073
      %v1075 = vpop.f32.mrf.mxu0
      %v1076 = vadd.f32 %v1014, %v1075
      %1077 = vdwg.mxu0
      %v1078 = vrsqrt.pop %v1074
      %v1079 = vmul.f32 %v1078, %v1074
      %v1080 = vmul.f32 %v1079, %v1078
      %v1081 = vmul.f32 0.5, %v1080
      %v1082 = vsub.f32 1.5, %v1081
      %v1083 = vmul.f32 %v1078, %v1082
      %vm1084 = vweird.f32 %v1074
      %vm1085 = vweird.f32 %v1078
      %vm1086 = vmor %vm1084, %vm1085
      %v1087 = vsel %vm1086, %v1078, %v1083
      %v1088 = vrsqrt.pop %v1076
      %v1089 = vmul.f32 %v1088, %v1076
      %v1090 = vmul.f32 %v1089, %v1088
      %v1091 = vmul.f32 0.5, %v1090
      %v1092 = vsub.f32 1.5, %v1091
      %v1093 = vmul.f32 %v1088, %v1092
      %vm1094 = vweird.f32 %v1076
      %vm1095 = vweird.f32 %v1088
      %vm1096 = vmor %vm1094, %vm1095
      %v1097 = vsel %vm1096, %v1088, %v1093
      %v1098 = vmul.f32 %v989, %v1087
      %v1099 = vmul.f32 %v991, %v1097
      %v1100 = vpack.c.bf16 %v1098, %v1098
      %v1101 = vpack.c.bf16 %v1099, %v1099
      %1102 = vst [vmem:[%s229] sm:$0xf] %v1100
      %1103 = vst [vmem:[%s229 + $0x4] sm:$0xf] %v1101
      %s1104 = smul.u32 2, %s16
      %p1105 = scmp.lt.s32.totalorder %s1104, 3
      %s1106 = scalar_select %p1105, %s1104, 3
      %s1107 = smul.addr %s1106, 4
      %s1108 = scalar_lea.vmem %s5, %s1107
      // Predicated region
      $region41: #{expand_encoder.6} parent=39 // pred_check
        %p1109 = pneg %p144
      $region42: #{expand_encoder.6} parent=39 // pred_check_branch
        %1111 = sbr.rel (%p1109) target = $region44
      $region43: #{expand_encoder.6} parent=39 // pred_region
        %s1112 = smul.u32 2, %s16
      $region44: #{expand_encoder.6} parent=39 // pred_fallthru
        _
    $region40: #{expand_encoder.6} parent=5 // pred_fallthru
      _
    %p1113 = scmp.le.s32.totalorder 2, %s11
    // Predicated region
    $region45: #{expand_encoder.6} parent=5 // pred_check
      %p1114 = pneg %p1113
    $region46: #{expand_encoder.6} parent=5 // pred_check_branch
      %1116 = sbr.rel (%p1114) target = $region48
    $region47: #{expand_encoder.6} parent=5 // pred_region
      %s1117 = ssub.s32 %s11, 2
      // Predicated region
      $region49: #{expand_encoder.6} parent=47 // pred_check
        %p1118 = pneg %p150
      $region50: #{expand_encoder.6} parent=47 // pred_check_branch
        %1120 = sbr.rel (%p1118) target = $region52
      $region51: #{expand_encoder.6} parent=47 // pred_region
        %s1121 = smul.u32 2, %s17
        %p1122 = scmp.lt.s32.totalorder %s1121, 3
        %s1123 = scalar_select %p1122, %s1121, 3
        %s1124 = smul.addr %s1123, 4
        %s1125 = scalar_lea.vmem %s5, %s1124
      $region52: #{expand_encoder.6} parent=47 // pred_fallthru
        _
    $region48: #{expand_encoder.6} parent=5 // pred_fallthru
      _
  $region6: #{expand_encoder.6} parent=0 // loop_footer
    %s15 = sadd.s32 1, %s11
  $region7: #{expand_encoder.6} parent=0 // loop_footer_branch
    %10 = sbr.rel target = $region3
  $region8: #{expand_encoder.6} parent=0 // loop_exit
    _

// kernel: expand_encoder.7
$region0: #{expand_encoder.7}
  #allocation0 [shape = 'u32[]', space=smem, size = 0x4, offset = 0x4, fixed_abs, tag = 'smem constant byte address 0x4 - core index']
  #allocation1 [shape = 'u32[72,128]{1,0:T(1,128)}', space=vmem, size = 0x9000, scoped, tag = 'internal scratch']
  %s0 = inlined_call_operand.vmem [shape: bf16[8,3200], index: 0, kind: input, shape index: {}]
  %s1 = inlined_call_operand.vmem [shape: bf16[3200,128], index: 1, kind: input, shape index: {}]
  %s2 = inlined_call_operand.vmem [shape: f32[8,128], index: 2, kind: output, shape index: {}]
  %s3 = sld [smem:[#allocation0]]
  $region18: #{expand_encoder.7} parent=0
    _
  %s5 = ssub.s32 1, %s3
  %s6 = scalar_select 0, %s5, %s3
  // Predicated region
  $region2: #{expand_encoder.7} parent=0 // pred_check
    _
  $region3: #{expand_encoder.7} parent=0 // pred_check_branch
    %8 = sbr.rel (0) target = $region5
  $region4: #{expand_encoder.7} parent=0 // pred_region
    _
  $region5: #{expand_encoder.7} parent=0 // pred_fallthru
    _
  // Predicated region
  $region6: #{expand_encoder.7} parent=0 // pred_check
    _
  $region7: #{expand_encoder.7} parent=0 // pred_check_branch
    %10 = sbr.rel (0) target = $region9
  $region8: #{expand_encoder.7} parent=0 // pred_region
    _
  $region9: #{expand_encoder.7} parent=0 // pred_fallthru
    _
  %v11 = vld [vmem:[%s0] sm:$0xff]
  %v12 = vld [vmem:[%s0 + $0x8] sm:$0xff]
  %v13 = vld [vmem:[%s0 + $0x10] sm:$0xff]
  %v14 = vld [vmem:[%s0 + $0x18] sm:$0xff]
  %v15 = vld [vmem:[%s0 + $0x20] sm:$0xff]
  %v16 = vld [vmem:[%s0 + $0x28] sm:$0xff]
  %v17 = vld [vmem:[%s0 + $0x30] sm:$0xff]
  %v18 = vld [vmem:[%s0 + $0x38] sm:$0xff]
  %v19 = vld [vmem:[%s0 + $0x40] sm:$0xff]
  %v20 = vld [vmem:[%s0 + $0x48] sm:$0xff]
  %v21 = vld [vmem:[%s0 + $0x50] sm:$0xff]
  %v22 = vld [vmem:[%s0 + $0x58] sm:$0xff]
  %v23 = vld [vmem:[%s0 + $0x60] sm:$0xf]
  %v24 = vld [vmem:[%s1] sm:$0xf]
  %v25 = vld [vmem:[%s1 + $0x4] sm:$0xf]
  %v26 = vld [vmem:[%s1 + $0x8] sm:$0xf]
  %v27 = vld [vmem:[%s1 + $0xc] sm:$0xf]
  %v28 = vld [vmem:[%s1 + $0x10] sm:$0xf]
  %v29 = vld [vmem:[%s1 + $0x14] sm:$0xf]
  %v30 = vld [vmem:[%s1 + $0x18] sm:$0xf]
  %v31 = vld [vmem:[%s1 + $0x1c] sm:$0xf]
  %v32 = vld [vmem:[%s1 + $0x20] sm:$0xf]
  %v33 = vld [vmem:[%s1 + $0x24] sm:$0xf]
  %v34 = vld [vmem:[%s1 + $0x28] sm:$0xf]
  %v35 = vld [vmem:[%s1 + $0x2c] sm:$0xf]
  %v36 = vld [vmem:[%s1 + $0x30] sm:$0xf]
  %v37 = vld [vmem:[%s1 + $0x34] sm:$0xf]
  %v38 = vld [vmem:[%s1 + $0x38] sm:$0xf]
  %v39 = vld [vmem:[%s1 + $0x3c] sm:$0xf]
  %v40 = vld [vmem:[%s1 + $0x40] sm:$0xf]
  %v41 = vld [vmem:[%s1 + $0x44] sm:$0xf]
  %v42 = vld [vmem:[%s1 + $0x48] sm:$0xf]
  %v43 = vld [vmem:[%s1 + $0x4c] sm:$0xf]
  %v44 = vld [vmem:[%s1 + $0x50] sm:$0xf]
  %v45 = vld [vmem:[%s1 + $0x54] sm:$0xf]
  %v46 = vld [vmem:[%s1 + $0x58] sm:$0xf]
  %v47 = vld [vmem:[%s1 + $0x5c] sm:$0xf]
  %v48 = vld [vmem:[%s1 + $0x60] sm:$0xf]
  %v49 = vld [vmem:[%s1 + $0x64] sm:$0xf]
  %v50 = vld [vmem:[%s1 + $0x68] sm:$0xf]
  %v51 = vld [vmem:[%s1 + $0x6c] sm:$0xf]
  %v52 = vld [vmem:[%s1 + $0x70] sm:$0xf]
  %v53 = vld [vmem:[%s1 + $0x74] sm:$0xf]
  %v54 = vld [vmem:[%s1 + $0x78] sm:$0xf]
  %v55 = vld [vmem:[%s1 + $0x7c] sm:$0xf]
  %v56 = vld [vmem:[%s1 + $0x80] sm:$0xf]
  %v57 = vld [vmem:[%s1 + $0x84] sm:$0xf]
  %v58 = vld [vmem:[%s1 + $0x88] sm:$0xf]
  %v59 = vld [vmem:[%s1 + $0x8c] sm:$0xf]
  %v60 = vld [vmem:[%s1 + $0x90] sm:$0xf]
  %v61 = vld [vmem:[%s1 + $0x94] sm:$0xf]
  %v62 = vld [vmem:[%s1 + $0x98] sm:$0xf]
  %v63 = vld [vmem:[%s1 + $0x9c] sm:$0xf]
  %v64 = vld [vmem:[%s1 + $0xa0] sm:$0xf]
  %v65 = vld [vmem:[%s1 + $0xa4] sm:$0xf]
  %v66 = vld [vmem:[%s1 + $0xa8] sm:$0xf]
  %v67 = vld [vmem:[%s1 + $0xac] sm:$0xf]
  %v68 = vld [vmem:[%s1 + $0xb0] sm:$0xf]
  %v69 = vld [vmem:[%s1 + $0xb4] sm:$0xf]
  %v70 = vld [vmem:[%s1 + $0xb8] sm:$0xf]
  %v71 = vld [vmem:[%s1 + $0xbc] sm:$0xf]
  %v72 = vld [vmem:[%s1 + $0xc0] sm:$0xf]
  %v73 = vld [vmem:[%s1 + $0xc4] sm:$0xf]
  %v74 = vld [vmem:[%s1 + $0xc8] sm:$0xf]
  %v75 = vld [vmem:[%s1 + $0xcc] sm:$0xf]
  %v76 = vld [vmem:[%s1 + $0xd0] sm:$0xf]
  %v77 = vld [vmem:[%s1 + $0xd4] sm:$0xf]
  %v78 = vld [vmem:[%s1 + $0xd8] sm:$0xf]
  %v79 = vld [vmem:[%s1 + $0xdc] sm:$0xf]
  %v80 = vld [vmem:[%s1 + $0xe0] sm:$0xf]
  %v81 = vld [vmem:[%s1 + $0xe4] sm:$0xf]
  %v82 = vld [vmem:[%s1 + $0xe8] sm:$0xf]
  %v83 = vld [vmem:[%s1 + $0xec] sm:$0xf]
  %v84 = vld [vmem:[%s1 + $0xf0] sm:$0xf]
  %v85 = vld [vmem:[%s1 + $0xf4] sm:$0xf]
  %v86 = vld [vmem:[%s1 + $0xf8] sm:$0xf]
  %v87 = vld [vmem:[%s1 + $0xfc] sm:$0xf]
  %v88 = vld [vmem:[%s1 + $0x100] sm:$0xf]
  %v89 = vld [vmem:[%s1 + $0x104] sm:$0xf]
  %v90 = vld [vmem:[%s1 + $0x108] sm:$0xf]
  %v91 = vld [vmem:[%s1 + $0x10c] sm:$0xf]
  %v92 = vld [vmem:[%s1 + $0x110] sm:$0xf]
  %v93 = vld [vmem:[%s1 + $0x114] sm:$0xf]
  %v94 = vld [vmem:[%s1 + $0x118] sm:$0xf]
  %v95 = vld [vmem:[%s1 + $0x11c] sm:$0xf]
  %v96 = vld [vmem:[%s1 + $0x120] sm:$0xf]
  %v97 = vld [vmem:[%s1 + $0x124] sm:$0xf]
  %v98 = vld [vmem:[%s1 + $0x128] sm:$0xf]
  %v99 = vld [vmem:[%s1 + $0x12c] sm:$0xf]
  %v100 = vld [vmem:[%s1 + $0x130] sm:$0xf]
  %v101 = vld [vmem:[%s1 + $0x134] sm:$0xf]
  %v102 = vld [vmem:[%s1 + $0x138] sm:$0xf]
  %v103 = vld [vmem:[%s1 + $0x13c] sm:$0xf]
  %v104 = vld [vmem:[%s1 + $0x140] sm:$0xf]
  %v105 = vld [vmem:[%s1 + $0x144] sm:$0xf]
  %v106 = vld [vmem:[%s1 + $0x148] sm:$0xf]
  %v107 = vld [vmem:[%s1 + $0x14c] sm:$0xf]
  %v108 = vld [vmem:[%s1 + $0x150] sm:$0xf]
  %v109 = vld [vmem:[%s1 + $0x154] sm:$0xf]
  %v110 = vld [vmem:[%s1 + $0x158] sm:$0xf]
  %v111 = vld [vmem:[%s1 + $0x15c] sm:$0xf]
  %v112 = vld [vmem:[%s1 + $0x160] sm:$0xf]
  %v113 = vld [vmem:[%s1 + $0x164] sm:$0xf]
  %v114 = vld [vmem:[%s1 + $0x168] sm:$0xf]
  %v115 = vld [vmem:[%s1 + $0x16c] sm:$0xf]
  %v116 = vld [vmem:[%s1 + $0x170] sm:$0xf]
  %v117 = vld [vmem:[%s1 + $0x174] sm:$0xf]
  %v118 = vld [vmem:[%s1 + $0x178] sm:$0xf]
  %v119 = vld [vmem:[%s1 + $0x17c] sm:$0xf]
  %v120 = vld [vmem:[%s1 + $0x180] sm:$0xf]
  %v121 = vld [vmem:[%s1 + $0x184] sm:$0xf]
  %v122 = vld [vmem:[%s1 + $0x188] sm:$0xf]
  %v123 = vld [vmem:[%s1 + $0x18c] sm:$0xf]
  %v124 = vld [vmem:[%s1 + $0x190] sm:$0xf]
  %v125 = vld [vmem:[%s1 + $0x194] sm:$0xf]
  %v126 = vld [vmem:[%s1 + $0x198] sm:$0xf]
  %v127 = vld [vmem:[%s1 + $0x19c] sm:$0xf]
  %v128 = vld [vmem:[%s1 + $0x1a0] sm:$0xf]
  %v129 = vld [vmem:[%s1 + $0x1a4] sm:$0xf]
  %v130 = vld [vmem:[%s1 + $0x1a8] sm:$0xf]
  %v131 = vld [vmem:[%s1 + $0x1ac] sm:$0xf]
  %v132 = vld [vmem:[%s1 + $0x1b0] sm:$0xf]
  %v133 = vld [vmem:[%s1 + $0x1b4] sm:$0xf]
  %v134 = vld [vmem:[%s1 + $0x1b8] sm:$0xf]
  %v135 = vld [vmem:[%s1 + $0x1bc] sm:$0xf]
  %v136 = vld [vmem:[%s1 + $0x1c0] sm:$0xf]
  %v137 = vld [vmem:[%s1 + $0x1c4] sm:$0xf]
  %v138 = vld [vmem:[%s1 + $0x1c8] sm:$0xf]
  %v139 = vld [vmem:[%s1 + $0x1cc] sm:$0xf]
  %v140 = vld [vmem:[%s1 + $0x1d0] sm:$0xf]
  %v141 = vld [vmem:[%s1 + $0x1d4] sm:$0xf]
  %v142 = vld [vmem:[%s1 + $0x1d8] sm:$0xf]
  %v143 = vld [vmem:[%s1 + $0x1dc] sm:$0xf]
  %v144 = vld [vmem:[%s1 + $0x1e0] sm:$0xf]
  %v145 = vld [vmem:[%s1 + $0x1e4] sm:$0xf]
  %v146 = vld [vmem:[%s1 + $0x1e8] sm:$0xf]
  %v147 = vld [vmem:[%s1 + $0x1ec] sm:$0xf]
  %v148 = vld [vmem:[%s1 + $0x1f0] sm:$0xf]
  %v149 = vld [vmem:[%s1 + $0x1f4] sm:$0xf]
  %v150 = vld [vmem:[%s1 + $0x1f8] sm:$0xf]
  %v151 = vld [vmem:[%s1 + $0x1fc] sm:$0xf]
  %v152 = vld [vmem:[%s1 + $0x200] sm:$0xf]
  %v153 = vld [vmem:[%s1 + $0x204] sm:$0xf]
  %v154 = vld [vmem:[%s1 + $0x208] sm:$0xf]
  %v155 = vld [vmem:[%s1 + $0x20c] sm:$0xf]
  %v156 = vld [vmem:[%s1 + $0x210] sm:$0xf]
  %v157 = vld [vmem:[%s1 + $0x214] sm:$0xf]
  %v158 = vld [vmem:[%s1 + $0x218] sm:$0xf]
  %v159 = vld [vmem:[%s1 + $0x21c] sm:$0xf]
  %v160 = vld [vmem:[%s1 + $0x220] sm:$0xf]
  %v161 = vld [vmem:[%s1 + $0x224] sm:$0xf]
  %v162 = vld [vmem:[%s1 + $0x228] sm:$0xf]
  %v163 = vld [vmem:[%s1 + $0x22c] sm:$0xf]
  %v164 = vld [vmem:[%s1 + $0x230] sm:$0xf]
  %v165 = vld [vmem:[%s1 + $0x234] sm:$0xf]
  %v166 = vld [vmem:[%s1 + $0x238] sm:$0xf]
  %v167 = vld [vmem:[%s1 + $0x23c] sm:$0xf]
  %v168 = vld [vmem:[%s1 + $0x240] sm:$0xf]
  %v169 = vld [vmem:[%s1 + $0x244] sm:$0xf]
  %v170 = vld [vmem:[%s1 + $0x248] sm:$0xf]
  %v171 = vld [vmem:[%s1 + $0x24c] sm:$0xf]
  %v172 = vld [vmem:[%s1 + $0x250] sm:$0xf]
  %v173 = vld [vmem:[%s1 + $0x254] sm:$0xf]
  %v174 = vld [vmem:[%s1 + $0x258] sm:$0xf]
  %v175 = vld [vmem:[%s1 + $0x25c] sm:$0xf]
  %v176 = vld [vmem:[%s1 + $0x260] sm:$0xf]
  %v177 = vld [vmem:[%s1 + $0x264] sm:$0xf]
  %v178 = vld [vmem:[%s1 + $0x268] sm:$0xf]
  %v179 = vld [vmem:[%s1 + $0x26c] sm:$0xf]
  %v180 = vld [vmem:[%s1 + $0x270] sm:$0xf]
  %v181 = vld [vmem:[%s1 + $0x274] sm:$0xf]
  %v182 = vld [vmem:[%s1 + $0x278] sm:$0xf]
  %v183 = vld [vmem:[%s1 + $0x27c] sm:$0xf]
  %v184 = vld [vmem:[%s1 + $0x280] sm:$0xf]
  %v185 = vld [vmem:[%s1 + $0x284] sm:$0xf]
  %v186 = vld [vmem:[%s1 + $0x288] sm:$0xf]
  %v187 = vld [vmem:[%s1 + $0x28c] sm:$0xf]
  %v188 = vld [vmem:[%s1 + $0x290] sm:$0xf]
  %v189 = vld [vmem:[%s1 + $0x294] sm:$0xf]
  %v190 = vld [vmem:[%s1 + $0x298] sm:$0xf]
  %v191 = vld [vmem:[%s1 + $0x29c] sm:$0xf]
  %v192 = vld [vmem:[%s1 + $0x2a0] sm:$0xf]
  %v193 = vld [vmem:[%s1 + $0x2a4] sm:$0xf]
  %v194 = vld [vmem:[%s1 + $0x2a8] sm:$0xf]
  %v195 = vld [vmem:[%s1 + $0x2ac] sm:$0xf]
  %v196 = vld [vmem:[%s1 + $0x2b0] sm:$0xf]
  %v197 = vld [vmem:[%s1 + $0x2b4] sm:$0xf]
  %v198 = vld [vmem:[%s1 + $0x2b8] sm:$0xf]
  %v199 = vld [vmem:[%s1 + $0x2bc] sm:$0xf]
  %v200 = vld [vmem:[%s1 + $0x2c0] sm:$0xf]
  %v201 = vld [vmem:[%s1 + $0x2c4] sm:$0xf]
  %v202 = vld [vmem:[%s1 + $0x2c8] sm:$0xf]
  %v203 = vld [vmem:[%s1 + $0x2cc] sm:$0xf]
  %v204 = vld [vmem:[%s1 + $0x2d0] sm:$0xf]
  %v205 = vld [vmem:[%s1 + $0x2d4] sm:$0xf]
  %v206 = vld [vmem:[%s1 + $0x2d8] sm:$0xf]
  %v207 = vld [vmem:[%s1 + $0x2dc] sm:$0xf]
  %v208 = vld [vmem:[%s1 + $0x2e0] sm:$0xf]
  %v209 = vld [vmem:[%s1 + $0x2e4] sm:$0xf]
  %v210 = vld [vmem:[%s1 + $0x2e8] sm:$0xf]
  %v211 = vld [vmem:[%s1 + $0x2ec] sm:$0xf]
  %v212 = vld [vmem:[%s1 + $0x2f0] sm:$0xf]
  %v213 = vld [vmem:[%s1 + $0x2f4] sm:$0xf]
  %v214 = vld [vmem:[%s1 + $0x2f8] sm:$0xf]
  %v215 = vld [vmem:[%s1 + $0x2fc] sm:$0xf]
  %v216 = vld [vmem:[%s1 + $0x300] sm:$0xf]
  %v217 = vld [vmem:[%s1 + $0x304] sm:$0xf]
  %v218 = vld [vmem:[%s1 + $0x308] sm:$0xf]
  %v219 = vld [vmem:[%s1 + $0x30c] sm:$0xf]
  %v220 = vld [vmem:[%s1 + $0x310] sm:$0xf]
  %v221 = vld [vmem:[%s1 + $0x314] sm:$0xf]
  %v222 = vld [vmem:[%s1 + $0x318] sm:$0xf]
  %v223 = vld [vmem:[%s1 + $0x31c] sm:$0xf]
  %v224 = vld [vmem:[%s1 + $0x320] sm:$0xf]
  %v225 = vld [vmem:[%s1 + $0x324] sm:$0xf]
  %v226 = vld [vmem:[%s1 + $0x328] sm:$0xf]
  %v227 = vld [vmem:[%s1 + $0x32c] sm:$0xf]
  %v228 = vld [vmem:[%s1 + $0x330] sm:$0xf]
  %v229 = vld [vmem:[%s1 + $0x334] sm:$0xf]
  %v230 = vld [vmem:[%s1 + $0x338] sm:$0xf]
  %v231 = vld [vmem:[%s1 + $0x33c] sm:$0xf]
  %v232 = vld [vmem:[%s1 + $0x340] sm:$0xf]
  %v233 = vld [vmem:[%s1 + $0x344] sm:$0xf]
  %v234 = vld [vmem:[%s1 + $0x348] sm:$0xf]
  %v235 = vld [vmem:[%s1 + $0x34c] sm:$0xf]
  %v236 = vld [vmem:[%s1 + $0x350] sm:$0xf]
  %v237 = vld [vmem:[%s1 + $0x354] sm:$0xf]
  %v238 = vld [vmem:[%s1 + $0x358] sm:$0xf]
  %v239 = vld [vmem:[%s1 + $0x35c] sm:$0xf]
  %v240 = vld [vmem:[%s1 + $0x360] sm:$0xf]
  %v241 = vld [vmem:[%s1 + $0x364] sm:$0xf]
  %v242 = vld [vmem:[%s1 + $0x368] sm:$0xf]
  %v243 = vld [vmem:[%s1 + $0x36c] sm:$0xf]
  %v244 = vld [vmem:[%s1 + $0x370] sm:$0xf]
  %v245 = vld [vmem:[%s1 + $0x374] sm:$0xf]
  %v246 = vld [vmem:[%s1 + $0x378] sm:$0xf]
  %v247 = vld [vmem:[%s1 + $0x37c] sm:$0xf]
  %v248 = vld [vmem:[%s1 + $0x380] sm:$0xf]
  %v249 = vld [vmem:[%s1 + $0x384] sm:$0xf]
  %v250 = vld [vmem:[%s1 + $0x388] sm:$0xf]
  %v251 = vld [vmem:[%s1 + $0x38c] sm:$0xf]
  %v252 = vld [vmem:[%s1 + $0x390] sm:$0xf]
  %v253 = vld [vmem:[%s1 + $0x394] sm:$0xf]
  %v254 = vld [vmem:[%s1 + $0x398] sm:$0xf]
  %v255 = vld [vmem:[%s1 + $0x39c] sm:$0xf]
  %v256 = vld [vmem:[%s1 + $0x3a0] sm:$0xf]
  %v257 = vld [vmem:[%s1 + $0x3a4] sm:$0xf]
  %v258 = vld [vmem:[%s1 + $0x3a8] sm:$0xf]
  %v259 = vld [vmem:[%s1 + $0x3ac] sm:$0xf]
  %v260 = vld [vmem:[%s1 + $0x3b0] sm:$0xf]
  %v261 = vld [vmem:[%s1 + $0x3b4] sm:$0xf]
  %v262 = vld [vmem:[%s1 + $0x3b8] sm:$0xf]
  %v263 = vld [vmem:[%s1 + $0x3bc] sm:$0xf]
  %v264 = vld [vmem:[%s1 + $0x3c0] sm:$0xf]
  %v265 = vld [vmem:[%s1 + $0x3c4] sm:$0xf]
  %v266 = vld [vmem:[%s1 + $0x3c8] sm:$0xf]
  %v267 = vld [vmem:[%s1 + $0x3cc] sm:$0xf]
  %v268 = vld [vmem:[%s1 + $0x3d0] sm:$0xf]
  %v269 = vld [vmem:[%s1 + $0x3d4] sm:$0xf]
  %v270 = vld [vmem:[%s1 + $0x3d8] sm:$0xf]
  %v271 = vld [vmem:[%s1 + $0x3dc] sm:$0xf]
  %v272 = vld [vmem:[%s1 + $0x3e0] sm:$0xf]
  %v273 = vld [vmem:[%s1 + $0x3e4] sm:$0xf]
  %v274 = vld [vmem:[%s1 + $0x3e8] sm:$0xf]
  %v275 = vld [vmem:[%s1 + $0x3ec] sm:$0xf]
  %v276 = vld [vmem:[%s1 + $0x3f0] sm:$0xf]
  %v277 = vld [vmem:[%s1 + $0x3f4] sm:$0xf]
  %v278 = vld [vmem:[%s1 + $0x3f8] sm:$0xf]
  %v279 = vld [vmem:[%s1 + $0x3fc] sm:$0xf]
  %v280 = vld [vmem:[%s1 + $0x400] sm:$0xf]
  %v281 = vld [vmem:[%s1 + $0x404] sm:$0xf]
  %v282 = vld [vmem:[%s1 + $0x408] sm:$0xf]
  %v283 = vld [vmem:[%s1 + $0x40c] sm:$0xf]
  %v284 = vld [vmem:[%s1 + $0x410] sm:$0xf]
  %v285 = vld [vmem:[%s1 + $0x414] sm:$0xf]
  %v286 = vld [vmem:[%s1 + $0x418] sm:$0xf]
  %v287 = vld [vmem:[%s1 + $0x41c] sm:$0xf]
  %v288 = vld [vmem:[%s1 + $0x420] sm:$0xf]
  %v289 = vld [vmem:[%s1 + $0x424] sm:$0xf]
  %v290 = vld [vmem:[%s1 + $0x428] sm:$0xf]
  %v291 = vld [vmem:[%s1 + $0x42c] sm:$0xf]
  %v292 = vld [vmem:[%s1 + $0x430] sm:$0xf]
  %v293 = vld [vmem:[%s1 + $0x434] sm:$0xf]
  %v294 = vld [vmem:[%s1 + $0x438] sm:$0xf]
  %v295 = vld [vmem:[%s1 + $0x43c] sm:$0xf]
  %v296 = vld [vmem:[%s1 + $0x440] sm:$0xf]
  %v297 = vld [vmem:[%s1 + $0x444] sm:$0xf]
  %v298 = vld [vmem:[%s1 + $0x448] sm:$0xf]
  %v299 = vld [vmem:[%s1 + $0x44c] sm:$0xf]
  %v300 = vld [vmem:[%s1 + $0x450] sm:$0xf]
  %v301 = vld [vmem:[%s1 + $0x454] sm:$0xf]
  %v302 = vld [vmem:[%s1 + $0x458] sm:$0xf]
  %v303 = vld [vmem:[%s1 + $0x45c] sm:$0xf]
  %v304 = vld [vmem:[%s1 + $0x460] sm:$0xf]
  %v305 = vld [vmem:[%s1 + $0x464] sm:$0xf]
  %v306 = vld [vmem:[%s1 + $0x468] sm:$0xf]
  %v307 = vld [vmem:[%s1 + $0x46c] sm:$0xf]
  %v308 = vld [vmem:[%s1 + $0x470] sm:$0xf]
  %v309 = vld [vmem:[%s1 + $0x474] sm:$0xf]
  %v310 = vld [vmem:[%s1 + $0x478] sm:$0xf]
  %v311 = vld [vmem:[%s1 + $0x47c] sm:$0xf]
  %v312 = vld [vmem:[%s1 + $0x480] sm:$0xf]
  %v313 = vld [vmem:[%s1 + $0x484] sm:$0xf]
  %v314 = vld [vmem:[%s1 + $0x488] sm:$0xf]
  %v315 = vld [vmem:[%s1 + $0x48c] sm:$0xf]
  %v316 = vld [vmem:[%s1 + $0x490] sm:$0xf]
  %v317 = vld [vmem:[%s1 + $0x494] sm:$0xf]
  %v318 = vld [vmem:[%s1 + $0x498] sm:$0xf]
  %v319 = vld [vmem:[%s1 + $0x49c] sm:$0xf]
  %v320 = vld [vmem:[%s1 + $0x4a0] sm:$0xf]
  %v321 = vld [vmem:[%s1 + $0x4a4] sm:$0xf]
  %v322 = vld [vmem:[%s1 + $0x4a8] sm:$0xf]
  %v323 = vld [vmem:[%s1 + $0x4ac] sm:$0xf]
  %v324 = vld [vmem:[%s1 + $0x4b0] sm:$0xf]
  %v325 = vld [vmem:[%s1 + $0x4b4] sm:$0xf]
  %v326 = vld [vmem:[%s1 + $0x4b8] sm:$0xf]
  %v327 = vld [vmem:[%s1 + $0x4bc] sm:$0xf]
  %v328 = vld [vmem:[%s1 + $0x4c0] sm:$0xf]
  %v329 = vld [vmem:[%s1 + $0x4c4] sm:$0xf]
  %v330 = vld [vmem:[%s1 + $0x4c8] sm:$0xf]
  %v331 = vld [vmem:[%s1 + $0x4cc] sm:$0xf]
  %v332 = vld [vmem:[%s1 + $0x4d0] sm:$0xf]
  %v333 = vld [vmem:[%s1 + $0x4d4] sm:$0xf]
  %v334 = vld [vmem:[%s1 + $0x4d8] sm:$0xf]
  %v335 = vld [vmem:[%s1 + $0x4dc] sm:$0xf]
  %v336 = vld [vmem:[%s1 + $0x4e0] sm:$0xf]
  %v337 = vld [vmem:[%s1 + $0x4e4] sm:$0xf]
  %v338 = vld [vmem:[%s1 + $0x4e8] sm:$0xf]
  %v339 = vld [vmem:[%s1 + $0x4ec] sm:$0xf]
  %v340 = vld [vmem:[%s1 + $0x4f0] sm:$0xf]
  %v341 = vld [vmem:[%s1 + $0x4f4] sm:$0xf]
  %v342 = vld [vmem:[%s1 + $0x4f8] sm:$0xf]
  %v343 = vld [vmem:[%s1 + $0x4fc] sm:$0xf]
  %v344 = vld [vmem:[%s1 + $0x500] sm:$0xf]
  %v345 = vld [vmem:[%s1 + $0x504] sm:$0xf]
  %v346 = vld [vmem:[%s1 + $0x508] sm:$0xf]
  %v347 = vld [vmem:[%s1 + $0x50c] sm:$0xf]
  %v348 = vld [vmem:[%s1 + $0x510] sm:$0xf]
  %v349 = vld [vmem:[%s1 + $0x514] sm:$0xf]
  %v350 = vld [vmem:[%s1 + $0x518] sm:$0xf]
  %v351 = vld [vmem:[%s1 + $0x51c] sm:$0xf]
  %v352 = vld [vmem:[%s1 + $0x520] sm:$0xf]
  %v353 = vld [vmem:[%s1 + $0x524] sm:$0xf]
  %v354 = vld [vmem:[%s1 + $0x528] sm:$0xf]
  %v355 = vld [vmem:[%s1 + $0x52c] sm:$0xf]
  %v356 = vld [vmem:[%s1 + $0x530] sm:$0xf]
  %v357 = vld [vmem:[%s1 + $0x534] sm:$0xf]
  %v358 = vld [vmem:[%s1 + $0x538] sm:$0xf]
  %v359 = vld [vmem:[%s1 + $0x53c] sm:$0xf]
  %v360 = vld [vmem:[%s1 + $0x540] sm:$0xf]
  %v361 = vld [vmem:[%s1 + $0x544] sm:$0xf]
  %v362 = vld [vmem:[%s1 + $0x548] sm:$0xf]
  %v363 = vld [vmem:[%s1 + $0x54c] sm:$0xf]
  %v364 = vld [vmem:[%s1 + $0x550] sm:$0xf]
  %v365 = vld [vmem:[%s1 + $0x554] sm:$0xf]
  %v366 = vld [vmem:[%s1 + $0x558] sm:$0xf]
  %v367 = vld [vmem:[%s1 + $0x55c] sm:$0xf]
  %v368 = vld [vmem:[%s1 + $0x560] sm:$0xf]
  %v369 = vld [vmem:[%s1 + $0x564] sm:$0xf]
  %v370 = vld [vmem:[%s1 + $0x568] sm:$0xf]
  %v371 = vld [vmem:[%s1 + $0x56c] sm:$0xf]
  %v372 = vld [vmem:[%s1 + $0x570] sm:$0xf]
  %v373 = vld [vmem:[%s1 + $0x574] sm:$0xf]
  %v374 = vld [vmem:[%s1 + $0x578] sm:$0xf]
  %v375 = vld [vmem:[%s1 + $0x57c] sm:$0xf]
  %v376 = vld [vmem:[%s1 + $0x580] sm:$0xf]
  %v377 = vld [vmem:[%s1 + $0x584] sm:$0xf]
  %v378 = vld [vmem:[%s1 + $0x588] sm:$0xf]
  %v379 = vld [vmem:[%s1 + $0x58c] sm:$0xf]
  %v380 = vld [vmem:[%s1 + $0x590] sm:$0xf]
  %v381 = vld [vmem:[%s1 + $0x594] sm:$0xf]
  %v382 = vld [vmem:[%s1 + $0x598] sm:$0xf]
  %v383 = vld [vmem:[%s1 + $0x59c] sm:$0xf]
  %v384 = vld [vmem:[%s1 + $0x5a0] sm:$0xf]
  %v385 = vld [vmem:[%s1 + $0x5a4] sm:$0xf]
  %v386 = vld [vmem:[%s1 + $0x5a8] sm:$0xf]
  %v387 = vld [vmem:[%s1 + $0x5ac] sm:$0xf]
  %v388 = vld [vmem:[%s1 + $0x5b0] sm:$0xf]
  %v389 = vld [vmem:[%s1 + $0x5b4] sm:$0xf]
  %v390 = vld [vmem:[%s1 + $0x5b8] sm:$0xf]
  %v391 = vld [vmem:[%s1 + $0x5bc] sm:$0xf]
  %v392 = vld [vmem:[%s1 + $0x5c0] sm:$0xf]
  %v393 = vld [vmem:[%s1 + $0x5c4] sm:$0xf]
  %v394 = vld [vmem:[%s1 + $0x5c8] sm:$0xf]
  %v395 = vld [vmem:[%s1 + $0x5cc] sm:$0xf]
  %v396 = vld [vmem:[%s1 + $0x5d0] sm:$0xf]
  %v397 = vld [vmem:[%s1 + $0x5d4] sm:$0xf]
  %v398 = vld [vmem:[%s1 + $0x5d8] sm:$0xf]
  %v399 = vld [vmem:[%s1 + $0x5dc] sm:$0xf]
  %v400 = vld [vmem:[%s1 + $0x5e0] sm:$0xf]
  %v401 = vld [vmem:[%s1 + $0x5e4] sm:$0xf]
  %v402 = vld [vmem:[%s1 + $0x5e8] sm:$0xf]
  %v403 = vld [vmem:[%s1 + $0x5ec] sm:$0xf]
  %v404 = vld [vmem:[%s1 + $0x5f0] sm:$0xf]
  %v405 = vld [vmem:[%s1 + $0x5f4] sm:$0xf]
  %v406 = vld [vmem:[%s1 + $0x5f8] sm:$0xf]
  %v407 = vld [vmem:[%s1 + $0x5fc] sm:$0xf]
  %v408 = vld [vmem:[%s1 + $0x600] sm:$0xf]
  %v409 = vld [vmem:[%s1 + $0x604] sm:$0xf]
  %v410 = vld [vmem:[%s1 + $0x608] sm:$0xf]
  %v411 = vld [vmem:[%s1 + $0x60c] sm:$0xf]
  %v412 = vld [vmem:[%s1 + $0x610] sm:$0xf]
  %v413 = vld [vmem:[%s1 + $0x614] sm:$0xf]
  %v414 = vld [vmem:[%s1 + $0x618] sm:$0xf]
  %v415 = vld [vmem:[%s1 + $0x61c] sm:$0xf]
  %v416 = vld [vmem:[%s1 + $0x620] sm:$0xf]
  %v417 = vld [vmem:[%s1 + $0x624] sm:$0xf]
  %v418 = vld [vmem:[%s1 + $0x628] sm:$0xf]
  %v419 = vld [vmem:[%s1 + $0x62c] sm:$0xf]
  %v420 = vld [vmem:[%s1 + $0x630] sm:$0xf]
  %v421 = vld [vmem:[%s1 + $0x634] sm:$0xf]
  %v422 = vld [vmem:[%s1 + $0x638] sm:$0xf]
  %v423 = vld [vmem:[%s1 + $0x63c] sm:$0xf]
  %v437 = vunpack.c.l.b16 %v11
  %v438 = vunpack.c.h.b16 %v11
  %v439 = vunpack.c.l.b16 %v12
  %v440 = vunpack.c.h.b16 %v12
  %v441 = vunpack.c.l.b16 %v13
  %v442 = vunpack.c.h.b16 %v13
  %v443 = vunpack.c.l.b16 %v14
  %v444 = vunpack.c.h.b16 %v14
  %v445 = vunpack.c.l.b16 %v15
  %v446 = vunpack.c.h.b16 %v15
  %v447 = vunpack.c.l.b16 %v16
  %v448 = vunpack.c.h.b16 %v16
  %v449 = vunpack.c.l.b16 %v17
  %v450 = vunpack.c.h.b16 %v17
  %v451 = vunpack.c.l.b16 %v18
  %v452 = vunpack.c.h.b16 %v18
  %v453 = vunpack.c.l.b16 %v19
  %v454 = vunpack.c.h.b16 %v19
  %v455 = vunpack.c.l.b16 %v20
  %v456 = vunpack.c.h.b16 %v20
  %v457 = vunpack.c.l.b16 %v21
  %v458 = vunpack.c.h.b16 %v21
  %v459 = vunpack.c.l.b16 %v22
  %v460 = vunpack.c.h.b16 %v22
  %v461 = vunpack.c.l.b16 %v23
  %v462 = vpack.c.b16 %v437, %v437
  %v463 = vpack.c.b16 %v438, %v438
  %v464 = vpack.c.b16 %v439, %v439
  %v465 = vpack.c.b16 %v440, %v440
  %v466 = vpack.c.b16 %v441, %v441
  %v467 = vpack.c.b16 %v442, %v442
  %v468 = vpack.c.b16 %v443, %v443
  %v469 = vpack.c.b16 %v444, %v444
  %v470 = vpack.c.b16 %v445, %v445
  %v471 = vpack.c.b16 %v446, %v446
  %v472 = vpack.c.b16 %v447, %v447
  %v473 = vpack.c.b16 %v448, %v448
  %v474 = vpack.c.b16 %v449, %v449
  %v475 = vpack.c.b16 %v450, %v450
  %v476 = vpack.c.b16 %v451, %v451
  %v477 = vpack.c.b16 %v452, %v452
  %v478 = vpack.c.b16 %v453, %v453
  %v479 = vpack.c.b16 %v454, %v454
  %v480 = vpack.c.b16 %v455, %v455
  %v481 = vpack.c.b16 %v456, %v456
  %v482 = vpack.c.b16 %v457, %v457
  %v483 = vpack.c.b16 %v458, %v458
  %v484 = vpack.c.b16 %v459, %v459
  %v485 = vpack.c.b16 %v460, %v460
  %v486 = vpack.c.b16 %v461, %v461
  %v912 = vunpack.c.l.b16 %v24
  %v913 = vunpack.c.l.b16 %v25
  %v914 = vunpack.c.l.b16 %v26
  %v915 = vunpack.c.l.b16 %v27
  %v916 = vunpack.c.l.b16 %v28
  %v917 = vunpack.c.l.b16 %v29
  %v918 = vunpack.c.l.b16 %v30
  %v919 = vunpack.c.l.b16 %v31
  %v920 = vunpack.c.l.b16 %v32
  %v921 = vunpack.c.l.b16 %v33
  %v922 = vunpack.c.l.b16 %v34
  %v923 = vunpack.c.l.b16 %v35
  %v924 = vunpack.c.l.b16 %v36
  %v925 = vunpack.c.l.b16 %v37
  %v926 = vunpack.c.l.b16 %v38
  %v927 = vunpack.c.l.b16 %v39
  %v928 = vunpack.c.l.b16 %v40
  %v929 = vunpack.c.l.b16 %v41
  %v930 = vunpack.c.l.b16 %v42
  %v931 = vunpack.c.l.b16 %v43
  %v932 = vunpack.c.l.b16 %v44
  %v933 = vunpack.c.l.b16 %v45
  %v934 = vunpack.c.l.b16 %v46
  %v935 = vunpack.c.l.b16 %v47
  %v936 = vunpack.c.l.b16 %v48
  %v937 = vunpack.c.l.b16 %v49
  %v938 = vunpack.c.l.b16 %v50
  %v939 = vunpack.c.l.b16 %v51
  %v940 = vunpack.c.l.b16 %v52
  %v941 = vunpack.c.l.b16 %v53
  %v942 = vunpack.c.l.b16 %v54
  %v943 = vunpack.c.l.b16 %v55
  %v944 = vunpack.c.l.b16 %v56
  %v945 = vunpack.c.l.b16 %v57
  %v946 = vunpack.c.l.b16 %v58
  %v947 = vunpack.c.l.b16 %v59
  %v948 = vunpack.c.l.b16 %v60
  %v949 = vunpack.c.l.b16 %v61
  %v950 = vunpack.c.l.b16 %v62
  %v951 = vunpack.c.l.b16 %v63
  %v952 = vunpack.c.l.b16 %v64
  %v953 = vunpack.c.l.b16 %v65
  %v954 = vunpack.c.l.b16 %v66
  %v955 = vunpack.c.l.b16 %v67
  %v956 = vunpack.c.l.b16 %v68
  %v957 = vunpack.c.l.b16 %v69
  %v958 = vunpack.c.l.b16 %v70
  %v959 = vunpack.c.l.b16 %v71
  %v960 = vunpack.c.l.b16 %v72
  %v961 = vunpack.c.l.b16 %v73
  %v962 = vunpack.c.l.b16 %v74
  %v963 = vunpack.c.l.b16 %v75
  %v964 = vunpack.c.l.b16 %v76
  %v965 = vunpack.c.l.b16 %v77
  %v966 = vunpack.c.l.b16 %v78
  %v967 = vunpack.c.l.b16 %v79
  %v968 = vunpack.c.l.b16 %v80
  %v969 = vunpack.c.l.b16 %v81
  %v970 = vunpack.c.l.b16 %v82
  %v971 = vunpack.c.l.b16 %v83
  %v972 = vunpack.c.l.b16 %v84
  %v973 = vunpack.c.l.b16 %v85
  %v974 = vunpack.c.l.b16 %v86
  %v975 = vunpack.c.l.b16 %v87
  %v976 = vunpack.c.l.b16 %v88
  %v977 = vunpack.c.l.b16 %v89
  %v978 = vunpack.c.l.b16 %v90
  %v979 = vunpack.c.l.b16 %v91
  %v980 = vunpack.c.l.b16 %v92
  %v981 = vunpack.c.l.b16 %v93
  %v982 = vunpack.c.l.b16 %v94
  %v983 = vunpack.c.l.b16 %v95
  %v984 = vunpack.c.l.b16 %v96
  %v985 = vunpack.c.l.b16 %v97
  %v986 = vunpack.c.l.b16 %v98
  %v987 = vunpack.c.l.b16 %v99
  %v988 = vunpack.c.l.b16 %v100
  %v989 = vunpack.c.l.b16 %v101
  %v990 = vunpack.c.l.b16 %v102
  %v991 = vunpack.c.l.b16 %v103
  %v992 = vunpack.c.l.b16 %v104
  %v993 = vunpack.c.l.b16 %v105
  %v994 = vunpack.c.l.b16 %v106
  %v995 = vunpack.c.l.b16 %v107
  %v996 = vunpack.c.l.b16 %v108
  %v997 = vunpack.c.l.b16 %v109
  %v998 = vunpack.c.l.b16 %v110
  %v999 = vunpack.c.l.b16 %v111
  %v1000 = vunpack.c.l.b16 %v112
  %v1001 = vunpack.c.l.b16 %v113
  %v1002 = vunpack.c.l.b16 %v114
  %v1003 = vunpack.c.l.b16 %v115
  %v1004 = vunpack.c.l.b16 %v116
  %v1005 = vunpack.c.l.b16 %v117
  %v1006 = vunpack.c.l.b16 %v118
  %v1007 = vunpack.c.l.b16 %v119
  %v1008 = vunpack.c.l.b16 %v120
  %v1009 = vunpack.c.l.b16 %v121
  %v1010 = vunpack.c.l.b16 %v122
  %v1011 = vunpack.c.l.b16 %v123
  %v1012 = vunpack.c.l.b16 %v124
  %v1013 = vunpack.c.l.b16 %v125
  %v1014 = vunpack.c.l.b16 %v126
  %v1015 = vunpack.c.l.b16 %v127
  %v1016 = vunpack.c.l.b16 %v128
  %v1017 = vunpack.c.l.b16 %v129
  %v1018 = vunpack.c.l.b16 %v130
  %v1019 = vunpack.c.l.b16 %v131
  %v1020 = vunpack.c.l.b16 %v132
  %v1021 = vunpack.c.l.b16 %v133
  %v1022 = vunpack.c.l.b16 %v134
  %v1023 = vunpack.c.l.b16 %v135
  %v1024 = vunpack.c.l.b16 %v136
  %v1025 = vunpack.c.l.b16 %v137
  %v1026 = vunpack.c.l.b16 %v138
  %v1027 = vunpack.c.l.b16 %v139
  %v1028 = vunpack.c.l.b16 %v140
  %v1029 = vunpack.c.l.b16 %v141
  %v1030 = vunpack.c.l.b16 %v142
  %v1031 = vunpack.c.l.b16 %v143
  %v1032 = vunpack.c.l.b16 %v144
  %v1033 = vunpack.c.l.b16 %v145
  %v1034 = vunpack.c.l.b16 %v146
  %v1035 = vunpack.c.l.b16 %v147
  %v1036 = vunpack.c.l.b16 %v148
  %v1037 = vunpack.c.l.b16 %v149
  %v1038 = vunpack.c.l.b16 %v150
  %v1039 = vunpack.c.l.b16 %v151
  %v1040 = vunpack.c.l.b16 %v152
  %v1041 = vunpack.c.l.b16 %v153
  %v1042 = vunpack.c.l.b16 %v154
  %v1043 = vunpack.c.l.b16 %v155
  %v1044 = vunpack.c.l.b16 %v156
  %v1045 = vunpack.c.l.b16 %v157
  %v1046 = vunpack.c.l.b16 %v158
  %v1047 = vunpack.c.l.b16 %v159
  %v1048 = vunpack.c.l.b16 %v160
  %v1049 = vunpack.c.l.b16 %v161
  %v1050 = vunpack.c.l.b16 %v162
  %v1051 = vunpack.c.l.b16 %v163
  %v1052 = vunpack.c.l.b16 %v164
  %v1053 = vunpack.c.l.b16 %v165
  %v1054 = vunpack.c.l.b16 %v166
  %v1055 = vunpack.c.l.b16 %v167
  %v1056 = vunpack.c.l.b16 %v168
  %v1057 = vunpack.c.l.b16 %v169
  %v1058 = vunpack.c.l.b16 %v170
  %v1059 = vunpack.c.l.b16 %v171
  %v1060 = vunpack.c.l.b16 %v172
  %v1061 = vunpack.c.l.b16 %v173
  %v1062 = vunpack.c.l.b16 %v174
  %v1063 = vunpack.c.l.b16 %v175
  %v1064 = vunpack.c.l.b16 %v176
  %v1065 = vunpack.c.l.b16 %v177
  %v1066 = vunpack.c.l.b16 %v178
  %v1067 = vunpack.c.l.b16 %v179
  %v1068 = vunpack.c.l.b16 %v180
  %v1069 = vunpack.c.l.b16 %v181
  %v1070 = vunpack.c.l.b16 %v182
  %v1071 = vunpack.c.l.b16 %v183
  %v1072 = vunpack.c.l.b16 %v184
  %v1073 = vunpack.c.l.b16 %v185
  %v1074 = vunpack.c.l.b16 %v186
  %v1075 = vunpack.c.l.b16 %v187
  %v1076 = vunpack.c.l.b16 %v188
  %v1077 = vunpack.c.l.b16 %v189
  %v1078 = vunpack.c.l.b16 %v190
  %v1079 = vunpack.c.l.b16 %v191
  %v1080 = vunpack.c.l.b16 %v192
  %v1081 = vunpack.c.l.b16 %v193
  %v1082 = vunpack.c.l.b16 %v194
  %v1083 = vunpack.c.l.b16 %v195
  %v1084 = vunpack.c.l.b16 %v196
  %v1085 = vunpack.c.l.b16 %v197
  %v1086 = vunpack.c.l.b16 %v198
  %v1087 = vunpack.c.l.b16 %v199
  %v1088 = vunpack.c.l.b16 %v200
  %v1089 = vunpack.c.l.b16 %v201
  %v1090 = vunpack.c.l.b16 %v202
  %v1091 = vunpack.c.l.b16 %v203
  %v1092 = vunpack.c.l.b16 %v204
  %v1093 = vunpack.c.l.b16 %v205
  %v1094 = vunpack.c.l.b16 %v206
  %v1095 = vunpack.c.l.b16 %v207
  %v1096 = vunpack.c.l.b16 %v208
  %v1097 = vunpack.c.l.b16 %v209
  %v1098 = vunpack.c.l.b16 %v210
  %v1099 = vunpack.c.l.b16 %v211
  %v1100 = vunpack.c.l.b16 %v212
  %v1101 = vunpack.c.l.b16 %v213
  %v1102 = vunpack.c.l.b16 %v214
  %v1103 = vunpack.c.l.b16 %v215
  %v1104 = vunpack.c.l.b16 %v216
  %v1105 = vunpack.c.l.b16 %v217
  %v1106 = vunpack.c.l.b16 %v218
  %v1107 = vunpack.c.l.b16 %v219
  %v1108 = vunpack.c.l.b16 %v220
  %v1109 = vunpack.c.l.b16 %v221
  %v1110 = vunpack.c.l.b16 %v222
  %v1111 = vunpack.c.l.b16 %v223
  %v1112 = vunpack.c.l.b16 %v224
  %v1113 = vunpack.c.l.b16 %v225
  %v1114 = vunpack.c.l.b16 %v226
  %v1115 = vunpack.c.l.b16 %v227
  %v1116 = vunpack.c.l.b16 %v228
  %v1117 = vunpack.c.l.b16 %v229
  %v1118 = vunpack.c.l.b16 %v230
  %v1119 = vunpack.c.l.b16 %v231
  %v1120 = vunpack.c.l.b16 %v232
  %v1121 = vunpack.c.l.b16 %v233
  %v1122 = vunpack.c.l.b16 %v234
  %v1123 = vunpack.c.l.b16 %v235
  %v1124 = vunpack.c.l.b16 %v236
  %v1125 = vunpack.c.l.b16 %v237
  %v1126 = vunpack.c.l.b16 %v238
  %v1127 = vunpack.c.l.b16 %v239
  %v1128 = vunpack.c.l.b16 %v240
  %v1129 = vunpack.c.l.b16 %v241
  %v1130 = vunpack.c.l.b16 %v242
  %v1131 = vunpack.c.l.b16 %v243
  %v1132 = vunpack.c.l.b16 %v244
  %v1133 = vunpack.c.l.b16 %v245
  %v1134 = vunpack.c.l.b16 %v246
  %v1135 = vunpack.c.l.b16 %v247
  %v1136 = vunpack.c.l.b16 %v248
  %v1137 = vunpack.c.l.b16 %v249
  %v1138 = vunpack.c.l.b16 %v250
  %v1139 = vunpack.c.l.b16 %v251
  %v1140 = vunpack.c.l.b16 %v252
  %v1141 = vunpack.c.l.b16 %v253
  %v1142 = vunpack.c.l.b16 %v254
  %v1143 = vunpack.c.l.b16 %v255
  %v1144 = vunpack.c.l.b16 %v256
  %v1145 = vunpack.c.l.b16 %v257
  %v1146 = vunpack.c.l.b16 %v258
  %v1147 = vunpack.c.l.b16 %v259
  %v1148 = vunpack.c.l.b16 %v260
  %v1149 = vunpack.c.l.b16 %v261
  %v1150 = vunpack.c.l.b16 %v262
  %v1151 = vunpack.c.l.b16 %v263
  %v1152 = vunpack.c.l.b16 %v264
  %v1153 = vunpack.c.l.b16 %v265
  %v1154 = vunpack.c.l.b16 %v266
  %v1155 = vunpack.c.l.b16 %v267
  %v1156 = vunpack.c.l.b16 %v268
  %v1157 = vunpack.c.l.b16 %v269
  %v1158 = vunpack.c.l.b16 %v270
  %v1159 = vunpack.c.l.b16 %v271
  %v1160 = vunpack.c.l.b16 %v272
  %v1161 = vunpack.c.l.b16 %v273
  %v1162 = vunpack.c.l.b16 %v274
  %v1163 = vunpack.c.l.b16 %v275
  %v1164 = vunpack.c.l.b16 %v276
  %v1165 = vunpack.c.l.b16 %v277
  %v1166 = vunpack.c.l.b16 %v278
  %v1167 = vunpack.c.l.b16 %v279
  %v1168 = vunpack.c.l.b16 %v280
  %v1169 = vunpack.c.l.b16 %v281
  %v1170 = vunpack.c.l.b16 %v282
  %v1171 = vunpack.c.l.b16 %v283
  %v1172 = vunpack.c.l.b16 %v284
  %v1173 = vunpack.c.l.b16 %v285
  %v1174 = vunpack.c.l.b16 %v286
  %v1175 = vunpack.c.l.b16 %v287
  %v1176 = vunpack.c.l.b16 %v288
  %v1177 = vunpack.c.l.b16 %v289
  %v1178 = vunpack.c.l.b16 %v290
  %v1179 = vunpack.c.l.b16 %v291
  %v1180 = vunpack.c.l.b16 %v292
  %v1181 = vunpack.c.l.b16 %v293
  %v1182 = vunpack.c.l.b16 %v294
  %v1183 = vunpack.c.l.b16 %v295
  %v1184 = vunpack.c.l.b16 %v296
  %v1185 = vunpack.c.l.b16 %v297
  %v1186 = vunpack.c.l.b16 %v298
  %v1187 = vunpack.c.l.b16 %v299
  %v1188 = vunpack.c.l.b16 %v300
  %v1189 = vunpack.c.l.b16 %v301
  %v1190 = vunpack.c.l.b16 %v302
  %v1191 = vunpack.c.l.b16 %v303
  %v1192 = vunpack.c.l.b16 %v304
  %v1193 = vunpack.c.l.b16 %v305
  %v1194 = vunpack.c.l.b16 %v306
  %v1195 = vunpack.c.l.b16 %v307
  %v1196 = vunpack.c.l.b16 %v308
  %v1197 = vunpack.c.l.b16 %v309
  %v1198 = vunpack.c.l.b16 %v310
  %v1199 = vunpack.c.l.b16 %v311
  %v1200 = vunpack.c.l.b16 %v312
  %v1201 = vunpack.c.l.b16 %v313
  %v1202 = vunpack.c.l.b16 %v314
  %v1203 = vunpack.c.l.b16 %v315
  %v1204 = vunpack.c.l.b16 %v316
  %v1205 = vunpack.c.l.b16 %v317
  %v1206 = vunpack.c.l.b16 %v318
  %v1207 = vunpack.c.l.b16 %v319
  %v1208 = vunpack.c.l.b16 %v320
  %v1209 = vunpack.c.l.b16 %v321
  %v1210 = vunpack.c.l.b16 %v322
  %v1211 = vunpack.c.l.b16 %v323
  %v1212 = vunpack.c.l.b16 %v324
  %v1213 = vunpack.c.l.b16 %v325
  %v1214 = vunpack.c.l.b16 %v326
  %v1215 = vunpack.c.l.b16 %v327
  %v1216 = vunpack.c.l.b16 %v328
  %v1217 = vunpack.c.l.b16 %v329
  %v1218 = vunpack.c.l.b16 %v330
  %v1219 = vunpack.c.l.b16 %v331
  %v1220 = vunpack.c.l.b16 %v332
  %v1221 = vunpack.c.l.b16 %v333
  %v1222 = vunpack.c.l.b16 %v334
  %v1223 = vunpack.c.l.b16 %v335
  %v1224 = vunpack.c.l.b16 %v336
  %v1225 = vunpack.c.l.b16 %v337
  %v1226 = vunpack.c.l.b16 %v338
  %v1227 = vunpack.c.l.b16 %v339
  %v1228 = vunpack.c.l.b16 %v340
  %v1229 = vunpack.c.l.b16 %v341
  %v1230 = vunpack.c.l.b16 %v342
  %v1231 = vunpack.c.l.b16 %v343
  %v1232 = vunpack.c.l.b16 %v344
  %v1233 = vunpack.c.l.b16 %v345
  %v1234 = vunpack.c.l.b16 %v346
  %v1235 = vunpack.c.l.b16 %v347
  %v1236 = vunpack.c.l.b16 %v348
  %v1237 = vunpack.c.l.b16 %v349
  %v1238 = vunpack.c.l.b16 %v350
  %v1239 = vunpack.c.l.b16 %v351
  %v1240 = vunpack.c.l.b16 %v352
  %v1241 = vunpack.c.l.b16 %v353
  %v1242 = vunpack.c.l.b16 %v354
  %v1243 = vunpack.c.l.b16 %v355
  %v1244 = vunpack.c.l.b16 %v356
  %v1245 = vunpack.c.l.b16 %v357
  %v1246 = vunpack.c.l.b16 %v358
  %v1247 = vunpack.c.l.b16 %v359
  %v1248 = vunpack.c.l.b16 %v360
  %v1249 = vunpack.c.l.b16 %v361
  %v1250 = vunpack.c.l.b16 %v362
  %v1251 = vunpack.c.l.b16 %v363
  %v1252 = vunpack.c.l.b16 %v364
  %v1253 = vunpack.c.l.b16 %v365
  %v1254 = vunpack.c.l.b16 %v366
  %v1255 = vunpack.c.l.b16 %v367
  %v1256 = vunpack.c.l.b16 %v368
  %v1257 = vunpack.c.l.b16 %v369
  %v1258 = vunpack.c.l.b16 %v370
  %v1259 = vunpack.c.l.b16 %v371
  %v1260 = vunpack.c.l.b16 %v372
  %v1261 = vunpack.c.l.b16 %v373
  %v1262 = vunpack.c.l.b16 %v374
  %v1263 = vunpack.c.l.b16 %v375
  %v1264 = vunpack.c.l.b16 %v376
  %v1265 = vunpack.c.l.b16 %v377
  %v1266 = vunpack.c.l.b16 %v378
  %v1267 = vunpack.c.l.b16 %v379
  %v1268 = vunpack.c.l.b16 %v380
  %v1269 = vunpack.c.l.b16 %v381
  %v1270 = vunpack.c.l.b16 %v382
  %v1271 = vunpack.c.l.b16 %v383
  %v1272 = vunpack.c.l.b16 %v384
  %v1273 = vunpack.c.l.b16 %v385
  %v1274 = vunpack.c.l.b16 %v386
  %v1275 = vunpack.c.l.b16 %v387
  %v1276 = vunpack.c.l.b16 %v388
  %v1277 = vunpack.c.l.b16 %v389
  %v1278 = vunpack.c.l.b16 %v390
  %v1279 = vunpack.c.l.b16 %v391
  %v1280 = vunpack.c.l.b16 %v392
  %v1281 = vunpack.c.l.b16 %v393
  %v1282 = vunpack.c.l.b16 %v394
  %v1283 = vunpack.c.l.b16 %v395
  %v1284 = vunpack.c.l.b16 %v396
  %v1285 = vunpack.c.l.b16 %v397
  %v1286 = vunpack.c.l.b16 %v398
  %v1287 = vunpack.c.l.b16 %v399
  %v1288 = vunpack.c.l.b16 %v400
  %v1289 = vunpack.c.l.b16 %v401
  %v1290 = vunpack.c.l.b16 %v402
  %v1291 = vunpack.c.l.b16 %v403
  %v1292 = vunpack.c.l.b16 %v404
  %v1293 = vunpack.c.l.b16 %v405
  %v1294 = vunpack.c.l.b16 %v406
  %v1295 = vunpack.c.l.b16 %v407
  %v1296 = vunpack.c.l.b16 %v408
  %v1297 = vunpack.c.l.b16 %v409
  %v1298 = vunpack.c.l.b16 %v410
  %v1299 = vunpack.c.l.b16 %v411
  %v1300 = vunpack.c.l.b16 %v412
  %v1301 = vunpack.c.l.b16 %v413
  %v1302 = vunpack.c.l.b16 %v414
  %v1303 = vunpack.c.l.b16 %v415
  %v1304 = vunpack.c.l.b16 %v416
  %v1305 = vunpack.c.l.b16 %v417
  %v1306 = vunpack.c.l.b16 %v418
  %v1307 = vunpack.c.l.b16 %v419
  %v1308 = vunpack.c.l.b16 %v420
  %v1309 = vunpack.c.l.b16 %v421
  %v1310 = vunpack.c.l.b16 %v422
  %v1311 = vunpack.c.l.b16 %v423
  %v1312 = vpack.c.b16 %v913, %v912
  %v1313 = vpack.c.b16 %v915, %v914
  %v1314 = vpack.c.b16 %v917, %v916
  %v1315 = vpack.c.b16 %v919, %v918
  %v1316 = vpack.c.b16 %v921, %v920
  %v1317 = vpack.c.b16 %v923, %v922
  %v1318 = vpack.c.b16 %v925, %v924
  %v1319 = vpack.c.b16 %v927, %v926
  %v1320 = vpack.c.b16 %v929, %v928
  %v1321 = vpack.c.b16 %v931, %v930
  %v1322 = vpack.c.b16 %v933, %v932
  %v1323 = vpack.c.b16 %v935, %v934
  %v1324 = vpack.c.b16 %v937, %v936
  %v1325 = vpack.c.b16 %v939, %v938
  %v1326 = vpack.c.b16 %v941, %v940
  %v1327 = vpack.c.b16 %v943, %v942
  %v1328 = vpack.c.b16 %v945, %v944
  %v1329 = vpack.c.b16 %v947, %v946
  %v1330 = vpack.c.b16 %v949, %v948
  %v1331 = vpack.c.b16 %v951, %v950
  %v1332 = vpack.c.b16 %v953, %v952
  %v1333 = vpack.c.b16 %v955, %v954
  %v1334 = vpack.c.b16 %v957, %v956
  %v1335 = vpack.c.b16 %v959, %v958
  %v1336 = vpack.c.b16 %v961, %v960
  %v1337 = vpack.c.b16 %v963, %v962
  %v1338 = vpack.c.b16 %v965, %v964
  %v1339 = vpack.c.b16 %v967, %v966
  %v1340 = vpack.c.b16 %v969, %v968
  %v1341 = vpack.c.b16 %v971, %v970
  %v1342 = vpack.c.b16 %v973, %v972
  %v1343 = vpack.c.b16 %v975, %v974
  %v1344 = vpack.c.b16 %v977, %v976
  %v1345 = vpack.c.b16 %v979, %v978
  %v1346 = vpack.c.b16 %v981, %v980
  %v1347 = vpack.c.b16 %v983, %v982
  %v1348 = vpack.c.b16 %v985, %v984
  %v1349 = vpack.c.b16 %v987, %v986
  %v1350 = vpack.c.b16 %v989, %v988
  %v1351 = vpack.c.b16 %v991, %v990
  %v1352 = vpack.c.b16 %v993, %v992
  %v1353 = vpack.c.b16 %v995, %v994
  %v1354 = vpack.c.b16 %v997, %v996
  %v1355 = vpack.c.b16 %v999, %v998
  %v1356 = vpack.c.b16 %v1001, %v1000
  %v1357 = vpack.c.b16 %v1003, %v1002
  %v1358 = vpack.c.b16 %v1005, %v1004
  %v1359 = vpack.c.b16 %v1007, %v1006
  %v1360 = vpack.c.b16 %v1009, %v1008
  %v1361 = vpack.c.b16 %v1011, %v1010
  %v1362 = vpack.c.b16 %v1013, %v1012
  %v1363 = vpack.c.b16 %v1015, %v1014
  %v1364 = vpack.c.b16 %v1017, %v1016
  %v1365 = vpack.c.b16 %v1019, %v1018
  %v1366 = vpack.c.b16 %v1021, %v1020
  %v1367 = vpack.c.b16 %v1023, %v1022
  %v1368 = vpack.c.b16 %v1025, %v1024
  %v1369 = vpack.c.b16 %v1027, %v1026
  %v1370 = vpack.c.b16 %v1029, %v1028
  %v1371 = vpack.c.b16 %v1031, %v1030
  %v1372 = vpack.c.b16 %v1033, %v1032
  %v1373 = vpack.c.b16 %v1035, %v1034
  %v1374 = vpack.c.b16 %v1037, %v1036
  %v1375 = vpack.c.b16 %v1039, %v1038
  %v1376 = vpack.c.b16 %v1041, %v1040
  %v1377 = vpack.c.b16 %v1043, %v1042
  %v1378 = vpack.c.b16 %v1045, %v1044
  %v1379 = vpack.c.b16 %v1047, %v1046
  %v1380 = vpack.c.b16 %v1049, %v1048
  %v1381 = vpack.c.b16 %v1051, %v1050
  %v1382 = vpack.c.b16 %v1053, %v1052
  %v1383 = vpack.c.b16 %v1055, %v1054
  %v1384 = vpack.c.b16 %v1057, %v1056
  %v1385 = vpack.c.b16 %v1059, %v1058
  %v1386 = vpack.c.b16 %v1061, %v1060
  %v1387 = vpack.c.b16 %v1063, %v1062
  %v1388 = vpack.c.b16 %v1065, %v1064
  %v1389 = vpack.c.b16 %v1067, %v1066
  %v1390 = vpack.c.b16 %v1069, %v1068
  %v1391 = vpack.c.b16 %v1071, %v1070
  %v1392 = vpack.c.b16 %v1073, %v1072
  %v1393 = vpack.c.b16 %v1075, %v1074
  %v1394 = vpack.c.b16 %v1077, %v1076
  %v1395 = vpack.c.b16 %v1079, %v1078
  %v1396 = vpack.c.b16 %v1081, %v1080
  %v1397 = vpack.c.b16 %v1083, %v1082
  %v1398 = vpack.c.b16 %v1085, %v1084
  %v1399 = vpack.c.b16 %v1087, %v1086
  %v1400 = vpack.c.b16 %v1089, %v1088
  %v1401 = vpack.c.b16 %v1091, %v1090
  %v1402 = vpack.c.b16 %v1093, %v1092
  %v1403 = vpack.c.b16 %v1095, %v1094
  %v1404 = vpack.c.b16 %v1097, %v1096
  %v1405 = vpack.c.b16 %v1099, %v1098
  %v1406 = vpack.c.b16 %v1101, %v1100
  %v1407 = vpack.c.b16 %v1103, %v1102
  %v1408 = vpack.c.b16 %v1105, %v1104
  %v1409 = vpack.c.b16 %v1107, %v1106
  %v1410 = vpack.c.b16 %v1109, %v1108
  %v1411 = vpack.c.b16 %v1111, %v1110
  %v1412 = vpack.c.b16 %v1113, %v1112
  %v1413 = vpack.c.b16 %v1115, %v1114
  %v1414 = vpack.c.b16 %v1117, %v1116
  %v1415 = vpack.c.b16 %v1119, %v1118
  %v1416 = vpack.c.b16 %v1121, %v1120
  %v1417 = vpack.c.b16 %v1123, %v1122
  %v1418 = vpack.c.b16 %v1125, %v1124
  %v1419 = vpack.c.b16 %v1127, %v1126
  %v1420 = vpack.c.b16 %v1129, %v1128
  %v1421 = vpack.c.b16 %v1131, %v1130
  %v1422 = vpack.c.b16 %v1133, %v1132
  %v1423 = vpack.c.b16 %v1135, %v1134
  %v1424 = vpack.c.b16 %v1137, %v1136
  %v1425 = vpack.c.b16 %v1139, %v1138
  %v1426 = vpack.c.b16 %v1141, %v1140
  %v1427 = vpack.c.b16 %v1143, %v1142
  %v1428 = vpack.c.b16 %v1145, %v1144
  %v1429 = vpack.c.b16 %v1147, %v1146
  %v1430 = vpack.c.b16 %v1149, %v1148
  %v1431 = vpack.c.b16 %v1151, %v1150
  %v1432 = vpack.c.b16 %v1153, %v1152
  %v1433 = vpack.c.b16 %v1155, %v1154
  %v1434 = vpack.c.b16 %v1157, %v1156
  %v1435 = vpack.c.b16 %v1159, %v1158
  %v1436 = vpack.c.b16 %v1161, %v1160
  %v1437 = vpack.c.b16 %v1163, %v1162
  %v1438 = vpack.c.b16 %v1165, %v1164
  %v1439 = vpack.c.b16 %v1167, %v1166
  %v1440 = vpack.c.b16 %v1169, %v1168
  %v1441 = vpack.c.b16 %v1171, %v1170
  %v1442 = vpack.c.b16 %v1173, %v1172
  %v1443 = vpack.c.b16 %v1175, %v1174
  %v1444 = vpack.c.b16 %v1177, %v1176
  %v1445 = vpack.c.b16 %v1179, %v1178
  %v1446 = vpack.c.b16 %v1181, %v1180
  %v1447 = vpack.c.b16 %v1183, %v1182
  %v1448 = vpack.c.b16 %v1185, %v1184
  %v1449 = vpack.c.b16 %v1187, %v1186
  %v1450 = vpack.c.b16 %v1189, %v1188
  %v1451 = vpack.c.b16 %v1191, %v1190
  %v1452 = vpack.c.b16 %v1193, %v1192
  %v1453 = vpack.c.b16 %v1195, %v1194
  %v1454 = vpack.c.b16 %v1197, %v1196
  %v1455 = vpack.c.b16 %v1199, %v1198
  %v1456 = vpack.c.b16 %v1201, %v1200
  %v1457 = vpack.c.b16 %v1203, %v1202
  %v1458 = vpack.c.b16 %v1205, %v1204
  %v1459 = vpack.c.b16 %v1207, %v1206
  %v1460 = vpack.c.b16 %v1209, %v1208
  %v1461 = vpack.c.b16 %v1211, %v1210
  %v1462 = vpack.c.b16 %v1213, %v1212
  %v1463 = vpack.c.b16 %v1215, %v1214
  %v1464 = vpack.c.b16 %v1217, %v1216
  %v1465 = vpack.c.b16 %v1219, %v1218
  %v1466 = vpack.c.b16 %v1221, %v1220
  %v1467 = vpack.c.b16 %v1223, %v1222
  %v1468 = vpack.c.b16 %v1225, %v1224
  %v1469 = vpack.c.b16 %v1227, %v1226
  %v1470 = vpack.c.b16 %v1229, %v1228
  %v1471 = vpack.c.b16 %v1231, %v1230
  %v1472 = vpack.c.b16 %v1233, %v1232
  %v1473 = vpack.c.b16 %v1235, %v1234
  %v1474 = vpack.c.b16 %v1237, %v1236
  %v1475 = vpack.c.b16 %v1239, %v1238
  %v1476 = vpack.c.b16 %v1241, %v1240
  %v1477 = vpack.c.b16 %v1243, %v1242
  %v1478 = vpack.c.b16 %v1245, %v1244
  %v1479 = vpack.c.b16 %v1247, %v1246
  %v1480 = vpack.c.b16 %v1249, %v1248
  %v1481 = vpack.c.b16 %v1251, %v1250
  %v1482 = vpack.c.b16 %v1253, %v1252
  %v1483 = vpack.c.b16 %v1255, %v1254
  %v1484 = vpack.c.b16 %v1257, %v1256
  %v1485 = vpack.c.b16 %v1259, %v1258
  %v1486 = vpack.c.b16 %v1261, %v1260
  %v1487 = vpack.c.b16 %v1263, %v1262
  %v1488 = vpack.c.b16 %v1265, %v1264
  %v1489 = vpack.c.b16 %v1267, %v1266
  %v1490 = vpack.c.b16 %v1269, %v1268
  %v1491 = vpack.c.b16 %v1271, %v1270
  %v1492 = vpack.c.b16 %v1273, %v1272
  %v1493 = vpack.c.b16 %v1275, %v1274
  %v1494 = vpack.c.b16 %v1277, %v1276
  %v1495 = vpack.c.b16 %v1279, %v1278
  %v1496 = vpack.c.b16 %v1281, %v1280
  %v1497 = vpack.c.b16 %v1283, %v1282
  %v1498 = vpack.c.b16 %v1285, %v1284
  %v1499 = vpack.c.b16 %v1287, %v1286
  %v1500 = vpack.c.b16 %v1289, %v1288
  %v1501 = vpack.c.b16 %v1291, %v1290
  %v1502 = vpack.c.b16 %v1293, %v1292
  %v1503 = vpack.c.b16 %v1295, %v1294
  %v1504 = vpack.c.b16 %v1297, %v1296
  %v1505 = vpack.c.b16 %v1299, %v1298
  %v1506 = vpack.c.b16 %v1301, %v1300
  %v1507 = vpack.c.b16 %v1303, %v1302
  %v1508 = vpack.c.b16 %v1305, %v1304
  %v1509 = vpack.c.b16 %v1307, %v1306
  %v1510 = vpack.c.b16 %v1309, %v1308
  %v1511 = vpack.c.b16 %v1311, %v1310
  %1712 = vmatpush.bf16.msra.mxu0 %v1319
  %1713 = vmatpush.bf16.msra.mxu0 %v1318
  %1714 = vmatpush.bf16.msra.mxu0 %v1317
  %1715 = vmatpush.bf16.msra.mxu0 %v1316
  %1716 = vmatpush.bf16.msra.mxu0 %v1315
  %1717 = vmatpush.bf16.msra.mxu0 %v1314
  %1718 = vmatpush.bf16.msra.mxu0 %v1313
  %1719 = vmatpush.bf16.msra.mxu0 %v1312
  %1720 = vmatmul.bf16.gmra.mxu0 %v462
  %v1721 = vpop.f32.mrf.mxu0
  %v1722 = vadd.f32 0.0, %v1721
  %v1723 = vpop.f32.mrf.mxu0
  %1724 = vdwg.mxu0
  %1725 = vmatpush.bf16.msra.mxu0 %v1327
  %1726 = vmatpush.bf16.msra.mxu0 %v1326
  %1727 = vmatpush.bf16.msra.mxu0 %v1325
  %1728 = vmatpush.bf16.msra.mxu0 %v1324
  %1729 = vmatpush.bf16.msra.mxu0 %v1323
  %1730 = vmatpush.bf16.msra.mxu0 %v1322
  %1731 = vmatpush.bf16.msra.mxu0 %v1321
  %1732 = vmatpush.bf16.msra.mxu0 %v1320
  %1733 = vmatmul.bf16.gmra.mxu0 %v463
  %v1734 = vpop.f32.mrf.mxu0
  %v1735 = vadd.f32 %v1722, %v1734
  %v1736 = vpop.f32.mrf.mxu0
  %1737 = vdwg.mxu0
  %1738 = vmatpush.bf16.msra.mxu0 %v1335
  %1739 = vmatpush.bf16.msra.mxu0 %v1334
  %1740 = vmatpush.bf16.msra.mxu0 %v1333
  %1741 = vmatpush.bf16.msra.mxu0 %v1332
  %1742 = vmatpush.bf16.msra.mxu0 %v1331
  %1743 = vmatpush.bf16.msra.mxu0 %v1330
  %1744 = vmatpush.bf16.msra.mxu0 %v1329
  %1745 = vmatpush.bf16.msra.mxu0 %v1328
  %1746 = vmatmul.bf16.gmra.mxu0 %v464
  %v1747 = vpop.f32.mrf.mxu0
  %v1748 = vadd.f32 %v1735, %v1747
  %v1749 = vpop.f32.mrf.mxu0
  %1750 = vdwg.mxu0
  %1751 = vmatpush.bf16.msra.mxu0 %v1343
  %1752 = vmatpush.bf16.msra.mxu0 %v1342
  %1753 = vmatpush.bf16.msra.mxu0 %v1341
  %1754 = vmatpush.bf16.msra.mxu0 %v1340
  %1755 = vmatpush.bf16.msra.mxu0 %v1339
  %1756 = vmatpush.bf16.msra.mxu0 %v1338
  %1757 = vmatpush.bf16.msra.mxu0 %v1337
  %1758 = vmatpush.bf16.msra.mxu0 %v1336
  %1759 = vmatmul.bf16.gmra.mxu0 %v465
  %v1760 = vpop.f32.mrf.mxu0
  %v1761 = vadd.f32 %v1748, %v1760
  %v1762 = vpop.f32.mrf.mxu0
  %1763 = vdwg.mxu0
  %1764 = vmatpush.bf16.msra.mxu0 %v1351
  %1765 = vmatpush.bf16.msra.mxu0 %v1350
  %1766 = vmatpush.bf16.msra.mxu0 %v1349
  %1767 = vmatpush.bf16.msra.mxu0 %v1348
  %1768 = vmatpush.bf16.msra.mxu0 %v1347
  %1769 = vmatpush.bf16.msra.mxu0 %v1346
  %1770 = vmatpush.bf16.msra.mxu0 %v1345
  %1771 = vmatpush.bf16.msra.mxu0 %v1344
  %1772 = vmatmul.bf16.gmra.mxu0 %v466
  %v1773 = vpop.f32.mrf.mxu0
  %v1774 = vadd.f32 %v1761, %v1773
  %v1775 = vpop.f32.mrf.mxu0
  %1776 = vdwg.mxu0
  %1777 = vmatpush.bf16.msra.mxu0 %v1359
  %1778 = vmatpush.bf16.msra.mxu0 %v1358
  %1779 = vmatpush.bf16.msra.mxu0 %v1357
  %1780 = vmatpush.bf16.msra.mxu0 %v1356
  %1781 = vmatpush.bf16.msra.mxu0 %v1355
  %1782 = vmatpush.bf16.msra.mxu0 %v1354
  %1783 = vmatpush.bf16.msra.mxu0 %v1353
  %1784 = vmatpush.bf16.msra.mxu0 %v1352
  %1785 = vmatmul.bf16.gmra.mxu0 %v467
  %v1786 = vpop.f32.mrf.mxu0
  %v1787 = vadd.f32 %v1774, %v1786
  %v1788 = vpop.f32.mrf.mxu0
  %1789 = vdwg.mxu0
  %1790 = vmatpush.bf16.msra.mxu0 %v1367
  %1791 = vmatpush.bf16.msra.mxu0 %v1366
  %1792 = vmatpush.bf16.msra.mxu0 %v1365
  %1793 = vmatpush.bf16.msra.mxu0 %v1364
  %1794 = vmatpush.bf16.msra.mxu0 %v1363
  %1795 = vmatpush.bf16.msra.mxu0 %v1362
  %1796 = vmatpush.bf16.msra.mxu0 %v1361
  %1797 = vmatpush.bf16.msra.mxu0 %v1360
  %1798 = vmatmul.bf16.gmra.mxu0 %v468
  %v1799 = vpop.f32.mrf.mxu0
  %v1800 = vadd.f32 %v1787, %v1799
  %v1801 = vpop.f32.mrf.mxu0
  %1802 = vdwg.mxu0
  %1803 = vmatpush.bf16.msra.mxu0 %v1375
  %1804 = vmatpush.bf16.msra.mxu0 %v1374
  %1805 = vmatpush.bf16.msra.mxu0 %v1373
  %1806 = vmatpush.bf16.msra.mxu0 %v1372
  %1807 = vmatpush.bf16.msra.mxu0 %v1371
  %1808 = vmatpush.bf16.msra.mxu0 %v1370
  %1809 = vmatpush.bf16.msra.mxu0 %v1369
  %1810 = vmatpush.bf16.msra.mxu0 %v1368
  %1811 = vmatmul.bf16.gmra.mxu0 %v469
  %v1812 = vpop.f32.mrf.mxu0
  %v1813 = vadd.f32 %v1800, %v1812
  %v1814 = vpop.f32.mrf.mxu0
  %1815 = vdwg.mxu0
  %1816 = vmatpush.bf16.msra.mxu0 %v1383
  %1817 = vmatpush.bf16.msra.mxu0 %v1382
  %1818 = vmatpush.bf16.msra.mxu0 %v1381
  %1819 = vmatpush.bf16.msra.mxu0 %v1380
  %1820 = vmatpush.bf16.msra.mxu0 %v1379
  %1821 = vmatpush.bf16.msra.mxu0 %v1378
  %1822 = vmatpush.bf16.msra.mxu0 %v1377
  %1823 = vmatpush.bf16.msra.mxu0 %v1376
  %1824 = vmatmul.bf16.gmra.mxu0 %v470
  %v1825 = vpop.f32.mrf.mxu0
  %v1826 = vadd.f32 %v1813, %v1825
  %v1827 = vpop.f32.mrf.mxu0
  %1828 = vdwg.mxu0
  %1829 = vmatpush.bf16.msra.mxu0 %v1391
  %1830 = vmatpush.bf16.msra.mxu0 %v1390
  %1831 = vmatpush.bf16.msra.mxu0 %v1389
  %1832 = vmatpush.bf16.msra.mxu0 %v1388
  %1833 = vmatpush.bf16.msra.mxu0 %v1387
  %1834 = vmatpush.bf16.msra.mxu0 %v1386
  %1835 = vmatpush.bf16.msra.mxu0 %v1385
  %1836 = vmatpush.bf16.msra.mxu0 %v1384
  %1837 = vmatmul.bf16.gmra.mxu0 %v471
  %v1838 = vpop.f32.mrf.mxu0
  %v1839 = vadd.f32 %v1826, %v1838
  %v1840 = vpop.f32.mrf.mxu0
  %1841 = vdwg.mxu0
  %1842 = vmatpush.bf16.msra.mxu0 %v1399
  %1843 = vmatpush.bf16.msra.mxu0 %v1398
  %1844 = vmatpush.bf16.msra.mxu0 %v1397
  %1845 = vmatpush.bf16.msra.mxu0 %v1396
  %1846 = vmatpush.bf16.msra.mxu0 %v1395
  %1847 = vmatpush.bf16.msra.mxu0 %v1394
  %1848 = vmatpush.bf16.msra.mxu0 %v1393
  %1849 = vmatpush.bf16.msra.mxu0 %v1392
  %1850 = vmatmul.bf16.gmra.mxu0 %v472
  %v1851 = vpop.f32.mrf.mxu0
  %v1852 = vadd.f32 %v1839, %v1851
  %v1853 = vpop.f32.mrf.mxu0
  %1854 = vdwg.mxu0
  %1855 = vmatpush.bf16.msra.mxu0 %v1407
  %1856 = vmatpush.bf16.msra.mxu0 %v1406
  %1857 = vmatpush.bf16.msra.mxu0 %v1405
  %1858 = vmatpush.bf16.msra.mxu0 %v1404
  %1859 = vmatpush.bf16.msra.mxu0 %v1403
  %1860 = vmatpush.bf16.msra.mxu0 %v1402
  %1861 = vmatpush.bf16.msra.mxu0 %v1401
  %1862 = vmatpush.bf16.msra.mxu0 %v1400
  %1863 = vmatmul.bf16.gmra.mxu0 %v473
  %v1864 = vpop.f32.mrf.mxu0
  %v1865 = vadd.f32 %v1852, %v1864
  %v1866 = vpop.f32.mrf.mxu0
  %1867 = vdwg.mxu0
  %1868 = vmatpush.bf16.msra.mxu0 %v1415
  %1869 = vmatpush.bf16.msra.mxu0 %v1414
  %1870 = vmatpush.bf16.msra.mxu0 %v1413
  %1871 = vmatpush.bf16.msra.mxu0 %v1412
  %1872 = vmatpush.bf16.msra.mxu0 %v1411
  %1873 = vmatpush.bf16.msra.mxu0 %v1410
  %1874 = vmatpush.bf16.msra.mxu0 %v1409
  %1875 = vmatpush.bf16.msra.mxu0 %v1408
  %1876 = vmatmul.bf16.gmra.mxu0 %v474
  %v1877 = vpop.f32.mrf.mxu0
  %v1878 = vadd.f32 %v1865, %v1877
  %v1879 = vpop.f32.mrf.mxu0
  %1880 = vdwg.mxu0
  %1881 = vmatpush.bf16.msra.mxu0 %v1423
  %1882 = vmatpush.bf16.msra.mxu0 %v1422
  %1883 = vmatpush.bf16.msra.mxu0 %v1421
  %1884 = vmatpush.bf16.msra.mxu0 %v1420
  %1885 = vmatpush.bf16.msra.mxu0 %v1419
  %1886 = vmatpush.bf16.msra.mxu0 %v1418
  %1887 = vmatpush.bf16.msra.mxu0 %v1417
  %1888 = vmatpush.bf16.msra.mxu0 %v1416
  %1889 = vmatmul.bf16.gmra.mxu0 %v475
  %v1890 = vpop.f32.mrf.mxu0
  %v1891 = vadd.f32 %v1878, %v1890
  %v1892 = vpop.f32.mrf.mxu0
  %1893 = vdwg.mxu0
  %1894 = vmatpush.bf16.msra.mxu0 %v1431
  %1895 = vmatpush.bf16.msra.mxu0 %v1430
  %1896 = vmatpush.bf16.msra.mxu0 %v1429
  %1897 = vmatpush.bf16.msra.mxu0 %v1428
  %1898 = vmatpush.bf16.msra.mxu0 %v1427
  %1899 = vmatpush.bf16.msra.mxu0 %v1426
  %1900 = vmatpush.bf16.msra.mxu0 %v1425
  %1901 = vmatpush.bf16.msra.mxu0 %v1424
  %1902 = vmatmul.bf16.gmra.mxu0 %v476
  %v1903 = vpop.f32.mrf.mxu0
  %v1904 = vadd.f32 %v1891, %v1903
  %v1905 = vpop.f32.mrf.mxu0
  %1906 = vdwg.mxu0
  %1907 = vmatpush.bf16.msra.mxu0 %v1439
  %1908 = vmatpush.bf16.msra.mxu0 %v1438
  %1909 = vmatpush.bf16.msra.mxu0 %v1437
  %1910 = vmatpush.bf16.msra.mxu0 %v1436
  %1911 = vmatpush.bf16.msra.mxu0 %v1435
  %1912 = vmatpush.bf16.msra.mxu0 %v1434
  %1913 = vmatpush.bf16.msra.mxu0 %v1433
  %1914 = vmatpush.bf16.msra.mxu0 %v1432
  %1915 = vmatmul.bf16.gmra.mxu0 %v477
  %v1916 = vpop.f32.mrf.mxu0
  %v1917 = vadd.f32 %v1904, %v1916
  %v1918 = vpop.f32.mrf.mxu0
  %1919 = vdwg.mxu0
  %1920 = vmatpush.bf16.msra.mxu0 %v1447
  %1921 = vmatpush.bf16.msra.mxu0 %v1446
  %1922 = vmatpush.bf16.msra.mxu0 %v1445
  %1923 = vmatpush.bf16.msra.mxu0 %v1444
  %1924 = vmatpush.bf16.msra.mxu0 %v1443
  %1925 = vmatpush.bf16.msra.mxu0 %v1442
  %1926 = vmatpush.bf16.msra.mxu0 %v1441
  %1927 = vmatpush.bf16.msra.mxu0 %v1440
  %1928 = vmatmul.bf16.gmra.mxu0 %v478
  %v1929 = vpop.f32.mrf.mxu0
  %v1930 = vadd.f32 %v1917, %v1929
  %v1931 = vpop.f32.mrf.mxu0
  %1932 = vdwg.mxu0
  %1933 = vmatpush.bf16.msra.mxu0 %v1455
  %1934 = vmatpush.bf16.msra.mxu0 %v1454
  %1935 = vmatpush.bf16.msra.mxu0 %v1453
  %1936 = vmatpush.bf16.msra.mxu0 %v1452
  %1937 = vmatpush.bf16.msra.mxu0 %v1451
  %1938 = vmatpush.bf16.msra.mxu0 %v1450
  %1939 = vmatpush.bf16.msra.mxu0 %v1449
  %1940 = vmatpush.bf16.msra.mxu0 %v1448
  %1941 = vmatmul.bf16.gmra.mxu0 %v479
  %v1942 = vpop.f32.mrf.mxu0
  %v1943 = vadd.f32 %v1930, %v1942
  %v1944 = vpop.f32.mrf.mxu0
  %1945 = vdwg.mxu0
  %1946 = vmatpush.bf16.msra.mxu0 %v1463
  %1947 = vmatpush.bf16.msra.mxu0 %v1462
  %1948 = vmatpush.bf16.msra.mxu0 %v1461
  %1949 = vmatpush.bf16.msra.mxu0 %v1460
  %1950 = vmatpush.bf16.msra.mxu0 %v1459
  %1951 = vmatpush.bf16.msra.mxu0 %v1458
  %1952 = vmatpush.bf16.msra.mxu0 %v1457
  %1953 = vmatpush.bf16.msra.mxu0 %v1456
  %1954 = vmatmul.bf16.gmra.mxu0 %v480
  %v1955 = vpop.f32.mrf.mxu0
  %v1956 = vadd.f32 %v1943, %v1955
  %v1957 = vpop.f32.mrf.mxu0
  %1958 = vdwg.mxu0
  %1959 = vmatpush.bf16.msra.mxu0 %v1471
  %1960 = vmatpush.bf16.msra.mxu0 %v1470
  %1961 = vmatpush.bf16.msra.mxu0 %v1469
  %1962 = vmatpush.bf16.msra.mxu0 %v1468
  %1963 = vmatpush.bf16.msra.mxu0 %v1467
  %1964 = vmatpush.bf16.msra.mxu0 %v1466
  %1965 = vmatpush.bf16.msra.mxu0 %v1465
  %1966 = vmatpush.bf16.msra.mxu0 %v1464
  %1967 = vmatmul.bf16.gmra.mxu0 %v481
  %v1968 = vpop.f32.mrf.mxu0
  %v1969 = vadd.f32 %v1956, %v1968
  %v1970 = vpop.f32.mrf.mxu0
  %1971 = vdwg.mxu0
  %1972 = vmatpush.bf16.msra.mxu0 %v1479
  %1973 = vmatpush.bf16.msra.mxu0 %v1478
  %1974 = vmatpush.bf16.msra.mxu0 %v1477
  %1975 = vmatpush.bf16.msra.mxu0 %v1476
  %1976 = vmatpush.bf16.msra.mxu0 %v1475
  %1977 = vmatpush.bf16.msra.mxu0 %v1474
  %1978 = vmatpush.bf16.msra.mxu0 %v1473
  %1979 = vmatpush.bf16.msra.mxu0 %v1472
  %1980 = vmatmul.bf16.gmra.mxu0 %v482
  %v1981 = vpop.f32.mrf.mxu0
  %v1982 = vadd.f32 %v1969, %v1981
  %v1983 = vpop.f32.mrf.mxu0
  %1984 = vdwg.mxu0
  %1985 = vmatpush.bf16.msra.mxu0 %v1487
  %1986 = vmatpush.bf16.msra.mxu0 %v1486
  %1987 = vmatpush.bf16.msra.mxu0 %v1485
  %1988 = vmatpush.bf16.msra.mxu0 %v1484
  %1989 = vmatpush.bf16.msra.mxu0 %v1483
  %1990 = vmatpush.bf16.msra.mxu0 %v1482
  %1991 = vmatpush.bf16.msra.mxu0 %v1481
  %1992 = vmatpush.bf16.msra.mxu0 %v1480
  %1993 = vmatmul.bf16.gmra.mxu0 %v483
  %v1994 = vpop.f32.mrf.mxu0
  %v1995 = vadd.f32 %v1982, %v1994
  %v1996 = vpop.f32.mrf.mxu0
  %1997 = vdwg.mxu0
  %1998 = vmatpush.bf16.msra.mxu0 %v1495
  %1999 = vmatpush.bf16.msra.mxu0 %v1494
  %2000 = vmatpush.bf16.msra.mxu0 %v1493
  %2001 = vmatpush.bf16.msra.mxu0 %v1492
  %2002 = vmatpush.bf16.msra.mxu0 %v1491
  %2003 = vmatpush.bf16.msra.mxu0 %v1490
  %2004 = vmatpush.bf16.msra.mxu0 %v1489
  %2005 = vmatpush.bf16.msra.mxu0 %v1488
  %2006 = vmatmul.bf16.gmra.mxu0 %v484
  %v2007 = vpop.f32.mrf.mxu0
  %v2008 = vadd.f32 %v1995, %v2007
  %v2009 = vpop.f32.mrf.mxu0
  %2010 = vdwg.mxu0
  %2011 = vmatpush.bf16.msra.mxu0 %v1503
  %2012 = vmatpush.bf16.msra.mxu0 %v1502
  %2013 = vmatpush.bf16.msra.mxu0 %v1501
  %2014 = vmatpush.bf16.msra.mxu0 %v1500
  %2015 = vmatpush.bf16.msra.mxu0 %v1499
  %2016 = vmatpush.bf16.msra.mxu0 %v1498
  %2017 = vmatpush.bf16.msra.mxu0 %v1497
  %2018 = vmatpush.bf16.msra.mxu0 %v1496
  %2019 = vmatmul.bf16.gmra.mxu0 %v485
  %v2020 = vpop.f32.mrf.mxu0
  %v2021 = vadd.f32 %v2008, %v2020
  %v2022 = vpop.f32.mrf.mxu0
  %2023 = vdwg.mxu0
  %2024 = vmatpush.bf16.msra.mxu0 %v1511
  %2025 = vmatpush.bf16.msra.mxu0 %v1510
  %2026 = vmatpush.bf16.msra.mxu0 %v1509
  %2027 = vmatpush.bf16.msra.mxu0 %v1508
  %2028 = vmatpush.bf16.msra.mxu0 %v1507
  %2029 = vmatpush.bf16.msra.mxu0 %v1506
  %2030 = vmatpush.bf16.msra.mxu0 %v1505
  %2031 = vmatpush.bf16.msra.mxu0 %v1504
  %2032 = vmatmul.bf16.gmra.mxu0 %v486
  %v2033 = vpop.f32.mrf.mxu0
  %v2034 = vadd.f32 %v2021, %v2033
  %v2035 = vpop.f32.mrf.mxu0
  %2036 = vdwg.mxu0
  %2037 = vst [vmem:[%s2] sm:$0xff] %v2034
  // Predicated region
  $region10: #{expand_encoder.7} parent=0 // pred_check
    _
  $region11: #{expand_encoder.7} parent=0 // pred_check_branch
    %2039 = sbr.rel (0) target = $region13
  $region12: #{expand_encoder.7} parent=0 // pred_region
    _
  $region13: #{expand_encoder.7} parent=0 // pred_fallthru
    _
  // Predicated region
  $region14: #{expand_encoder.7} parent=0 // pred_check
    _
  $region15: #{expand_encoder.7} parent=0 // pred_check_branch
    %2041 = sbr.rel (0) target = $region17
  $region16: #{expand_encoder.7} parent=0 // pred_region
    _
  $region17: #{expand_encoder.7} parent=0 // pred_fallthru
    _

</llo_original>
